<compile_context>
chip_gen: v6e
topology: v6e:2x2x1
jax: 0.10.0
libtpu: 0.0.40
codegen_flags: <defaults>
</compile_context>

<pallas_src>
import jax
import jax.numpy as jnp
import numpy as np
from jax.experimental import pallas as pl
from jax.experimental.pallas import tpu as pltpu


def _round_up(x, m):
    return (x + m - 1) // m * m


def _fourier_feat_kernel(coords_ref, b_ref, phase_ref, out_ref):
    # coords_ref: (TM, C)       tile of coordinate points
    # b_ref:      (C, 2F_pad)   [B | B] duplicated projection matrix (resident)
    # phase_ref:  (1, 2F_pad)   [0]*F + [pi/2]*F  (cos realized as phase-shifted sin)
    # out_ref:    (TM, 2F_pad)  sin(coords @ B_cat + phase)
    prod = jnp.dot(
        coords_ref[...],
        b_ref[...],
        preferred_element_type=jnp.float32,
        precision=jax.lax.Precision.HIGHEST,
    )
    out_ref[...] = jnp.sin(prod + phase_ref[...]).astype(out_ref.dtype)


def fourier_feat_pos_encode(coords, b_gauss_pi, *, tile_m=2048,
                            out_dtype=jnp.float32):
    """coords: (N, coord_size) float32; b_gauss_pi: (coord_size, freq_num).

    Returns (N, 2*freq_num) with [:, :F] = sin(coords @ B), [:, F:] = cos(coords @ B),
    matching the PyTorch last-dim concat convention.
    """
    coords = jnp.asarray(coords, jnp.float32)
    b_gauss_pi = jnp.asarray(b_gauss_pi, jnp.float32)
    N, C = coords.shape
    C2, F = b_gauss_pi.shape
    assert C == C2

    # --- phase trick: single lane-dense matmul of width 2F (padded to x128) ---
    two_f = 2 * F
    two_f_pad = _round_up(two_f, 128)
    b_cat = jnp.concatenate([b_gauss_pi, b_gauss_pi], axis=1)        # (C, 2F)
    if two_f_pad != two_f:
        b_cat = jnp.pad(b_cat, ((0, 0), (0, two_f_pad - two_f)))
    phase = jnp.concatenate([
        jnp.zeros((F,), jnp.float32),
        jnp.full((F,), jnp.pi / 2.0, jnp.float32),
    ])
    if two_f_pad != two_f:
        phase = jnp.pad(phase, (0, two_f_pad - two_f))
    phase = phase.reshape(1, two_f_pad)

    out_bytes = jnp.dtype(out_dtype).itemsize

    # --- VMEM budget for the point tile (double-buffered in & out blocks). ---
    # coords block lane-pads to 128 lanes -> tile_m*128*4 B; output block is
    # tile_m*2F_pad*out_bytes. Keep the double-buffered total under ~24 MiB so
    # it fits comfortably on v7x (64 MiB physical) as well as v5e/v6e.
    bytes_per_row = 2 * (128 * 4 + two_f_pad * out_bytes)
    budget = 24 << 20
    tile_m = int(min(tile_m, max(8, (budget // bytes_per_row) // 8 * 8)))
    # Don't allocate tiles far larger than the problem.
    tile_m = min(tile_m, _round_up(max(N, 1), 8))

    # --- pad N to a tile multiple; padded rows are computed and sliced off. ---
    n_pad = _round_up(max(N, 1), tile_m)
    coords_p = coords if n_pad == N else jnp.pad(coords, ((0, n_pad - N), (0, 0)))
    grid = (n_pad // tile_m,)

    out_padded = pl.pallas_call(
        _fourier_feat_kernel,
        out_shape=jax.ShapeDtypeStruct((n_pad, two_f_pad), out_dtype),
        grid_spec=pltpu.PrefetchScalarGridSpec(
            num_scalar_prefetch=0,
            grid=grid,
            in_specs=[
                # tile over points; coord dim is tiny so take the full width
                pl.BlockSpec((tile_m, C), lambda i: (i, 0)),
                # duplicated B matrix: small, resident, reused by every tile
                pl.BlockSpec((C, two_f_pad), lambda i: (0, 0)),
                # phase row (broadcast inside the kernel)
                pl.BlockSpec((1, two_f_pad), lambda i: (0, 0)),
            ],
            out_specs=pl.BlockSpec((tile_m, two_f_pad), lambda i: (i, 0)),
        ),
        compiler_params=pltpu.CompilerParams(
            dimension_semantics=("parallel",),
            vmem_limit_bytes=48 << 20,
        ),
    )(coords_p, b_cat, phase)

    return out_padded[:N, :two_f]


class FourierFeatPosEncoder:
    """JAX/Pallas port of the PyTorch module. Parameters are created
    deterministically in __init__ (synthetic, not loaded from checkpoint)."""

    def __init__(self, coord_size: int, freq_num: int, freq_scale: float = 1.0,
                 *, key=None, out_dtype=jnp.float32):
        assert isinstance(freq_num, int)
        self.coord_size = coord_size
        self.freq_num = freq_num
        self.freq_scale = freq_scale
        self.out_dtype = out_dtype
        if key is None:
            key = jax.random.PRNGKey(0)
        # B_gauss ~ N(0, 1) * freq_scale ; B_gauss_pi = 2*pi*B_gauss
        b_gauss = jax.random.normal(
            key, (coord_size, freq_num), dtype=jnp.float32) * freq_scale
        self.B_gauss_pi = 2.0 * np.pi * b_gauss

    @property
    def in_size(self):
        return self.coord_size

    @property
    def out_size(self):
        return 2 * self.freq_num

    def __call__(self, coords):
        return fourier_feat_pos_encode(coords, self.B_gauss_pi,
                                       out_dtype=self.out_dtype)


def _reference(coords, b_gauss_pi):
    prod = np.asarray(coords, np.float64) @ np.asarray(b_gauss_pi, np.float64)
    return np.concatenate([np.sin(prod), np.cos(prod)], axis=-1)


if __name__ == "__main__":
    key = jax.random.PRNGKey(0)
    k_b1, k_x1, k_b2, k_x2 = jax.random.split(key, 4)

    # --- case 1: lane-aligned freq, tile-aligned N ---
    enc1 = FourierFeatPosEncoder(coord_size=4, freq_num=64, freq_scale=1.0, key=k_b1)
    coords1 = jax.random.uniform(k_x1, (256, 4), dtype=jnp.float32)
    out1 = jax.block_until_ready(enc1(coords1))
    assert out1.shape == (256, 128)
    np.testing.assert_allclose(
        np.asarray(out1), _reference(coords1, enc1.B_gauss_pi), atol=2e-4, rtol=2e-4)

    # --- case 2: ragged N and non-multiple-of-64 freq (exercises padding) ---
    enc2 = FourierFeatPosEncoder(coord_size=3, freq_num=40, freq_scale=2.0, key=k_b2)
    coords2 = jax.random.uniform(k_x2, (300, 3), dtype=jnp.float32)
    out2 = jax.block_until_ready(enc2(coords2))
    assert out2.shape == (300, 80)
    np.testing.assert_allclose(
        np.asarray(out2), _reference(coords2, enc2.B_gauss_pi), atol=2e-4, rtol=2e-4)

    print("KERNEL_OK")
</pallas_src>

<mosaic_0001>
module attributes {stable_mosaic.version = 11 : i64} {
  func.func @_fourier_feat_kernel(%arg0: i32, %arg1: memref<256x4xf32, #tpu.memory_space<vmem>>, %arg2: memref<4x128xf32, #tpu.memory_space<vmem>>, %arg3: memref<1x128xf32, #tpu.memory_space<vmem>>, %arg4: memref<256x128xf32, #tpu.memory_space<vmem>>) attributes {dimension_semantics = [#tpu.dimension_semantics<parallel>], iteration_bounds = array<i64: 1>, scalar_prefetch = 0 : i64, scratch_operands = 0 : i64, tpu.core_type = #tpu.core_type<tc>, window_params = [{transform_indices = @transform_0, window_bounds = array<i64: 256, 4>}, {pipeline_mode = #tpu.pipeline_mode<synchronous>, transform_indices = @transform_1, window_bounds = array<i64: 4, 128>}, {pipeline_mode = #tpu.pipeline_mode<synchronous>, transform_indices = @transform_2, window_bounds = array<i64: 1, 128>}, {transform_indices = @transform_3, window_bounds = array<i64: 256, 128>}]} {
    %c0 = arith.constant 0 : index
    %c0_0 = arith.constant 0 : index
    %0 = vector.load %arg1[%c0, %c0_0] : memref<256x4xf32, #tpu.memory_space<vmem>>, vector<256x4xf32>
    %c0_1 = arith.constant 0 : index
    %c0_2 = arith.constant 0 : index
    %1 = vector.load %arg2[%c0_1, %c0_2] : memref<4x128xf32, #tpu.memory_space<vmem>>, vector<4x128xf32>
    %cst = arith.constant dense<0.000000e+00> : vector<256x128xf32>
    %2 = tpu.matmul %0, %1, %cst {dimension_numbers = #tpu.dot_dimension_numbers<[1], [0], [0], [1], [0, 0, 1, 1], [], []>, precision = #tpu.contract_precision<fp32>} : vector<256x4xf32>, vector<4x128xf32>, vector<256x128xf32> -> vector<256x128xf32>
    %c0_3 = arith.constant 0 : index
    %c0_4 = arith.constant 0 : index
    %3 = vector.load %arg3[%c0_3, %c0_4] : memref<1x128xf32, #tpu.memory_space<vmem>>, vector<1x128xf32>
    %4 = vector.broadcast %3 : vector<1x128xf32> to vector<256x128xf32>
    %5 = arith.addf %2, %4 : vector<256x128xf32>
    %6 = math.sin %5 : vector<256x128xf32>
    %c0_5 = arith.constant 0 : index
    %c0_6 = arith.constant 0 : index
    %7 = vector.load %arg4[%c0_5, %c0_6] : memref<256x128xf32, #tpu.memory_space<vmem>>, vector<256x128xf32>
    tpu.vector_store %arg4[%c0_5, %c0_6], %6 {strides = array<i32>} : memref<256x128xf32, #tpu.memory_space<vmem>>, vector<256x128xf32>,
    return
  }
  func.func @transform_0(%arg0: i32) -> (i32, i32) {
    %c0_i32 = arith.constant 0 : i32
    %c0_i32_0 = arith.constant 0 : i32
    return %arg0, %c0_i32 : i32, i32
  }
  func.func @transform_1(%arg0: i32) -> (i32, i32) {
    %c0_i32 = arith.constant 0 : i32
    %c0_i32_0 = arith.constant 0 : i32
    %c0_i32_1 = arith.constant 0 : i32
    return %c0_i32, %c0_i32_0 : i32, i32
  }
  func.func @transform_2(%arg0: i32) -> (i32, i32) {
    %c0_i32 = arith.constant 0 : i32
    %c0_i32_0 = arith.constant 0 : i32
    %c0_i32_1 = arith.constant 0 : i32
    return %c0_i32, %c0_i32_0 : i32, i32
  }
  func.func @transform_3(%arg0: i32) -> (i32, i32) {
    %c0_i32 = arith.constant 0 : i32
    %c0_i32_0 = arith.constant 0 : i32
    return %arg0, %c0_i32 : i32, i32
  }
}

</mosaic_0001>

<llo_original>
// kernel: tpu_custom_call.1
$region0: #{tpu_custom_call.1}
  #allocation0 [shape = 'u32[]', space=smem, size = 0x4, offset = 0x4, fixed_abs, tag = 'smem constant byte address 0x4 - core index']
  #allocation1 [shape = 'u32[144,128]{1,0:T(1,128)}', space=vmem, size = 0x12000, scoped, tag = 'internal scratch']
  %s0 = inlined_call_operand.vmem [shape: f32[256,4], index: 0, kind: input, shape index: {}]
  %s1 = inlined_call_operand.vmem [shape: f32[4,128], index: 1, kind: input, shape index: {}]
  %s2 = inlined_call_operand.vmem [shape: f32[1,128], index: 2, kind: input, shape index: {}]
  %s3 = inlined_call_operand.hbm [shape: f32[256,128], index: 3, kind: output, shape index: {}]
  %s4 = sld [smem:[#allocation0]]
  $region22: #{tpu_custom_call.1} parent=0
    _
  %s6 = ssub.s32 1, %s4
  %s7 = scalar_select 0, %s6, %s4
  $region1: #{tpu_custom_call.1} parent=0
    #allocation2 [shape = 'u8[131072]{0}', space=vmem, size = 0x20000, scoped, tag = 'output window, operand 0, single buffered']
    #allocation3 [shape = 's32[1]{0}', space=sflag, size = 0x4, scoped, tag = 'scoped memory for tpu_custom_call.1']
    %8 = vsyncpa [#allocation3], 0
    // Predicated region
    $region2: #{tpu_custom_call.1} parent=1 // pred_check
      _
    $region3: #{tpu_custom_call.1} parent=1 // pred_check_branch
      %10 = sbr.rel (0) target = $region5
    $region4: #{tpu_custom_call.1} parent=1 // pred_region
      _
    $region5: #{tpu_custom_call.1} parent=1 // pred_fallthru
      _
    // Predicated region
    $region6: #{tpu_custom_call.1} parent=1 // pred_check
      _
    $region7: #{tpu_custom_call.1} parent=1 // pred_check_branch
      %12 = sbr.rel (0) target = $region9
    $region8: #{tpu_custom_call.1} parent=1 // pred_region
      _
    $region9: #{tpu_custom_call.1} parent=1 // pred_fallthru
      _
    // Predicated region
    $region10: #{tpu_custom_call.1} parent=1 // pred_check
      _
    $region11: #{tpu_custom_call.1} parent=1 // pred_check_branch
      %14 = sbr.rel (0) target = $region13
    $region12: #{tpu_custom_call.1} parent=1 // pred_region
      _
    $region13: #{tpu_custom_call.1} parent=1 // pred_fallthru
      _
    %v15 = vld [vmem:[%s0] sm:$0xff]
    %v16 = vld [vmem:[%s0 + $0x8] sm:$0xff]
    %v17 = vld [vmem:[%s0 + $0x10] sm:$0xff]
    %v18 = vld [vmem:[%s0 + $0x18] sm:$0xff]
    %v19 = vld [vmem:[%s0 + $0x20] sm:$0xff]
    %v20 = vld [vmem:[%s0 + $0x28] sm:$0xff]
    %v21 = vld [vmem:[%s0 + $0x30] sm:$0xff]
    %v22 = vld [vmem:[%s0 + $0x38] sm:$0xff]
    %v23 = vld [vmem:[%s0 + $0x40] sm:$0xff]
    %v24 = vld [vmem:[%s0 + $0x48] sm:$0xff]
    %v25 = vld [vmem:[%s0 + $0x50] sm:$0xff]
    %v26 = vld [vmem:[%s0 + $0x58] sm:$0xff]
    %v27 = vld [vmem:[%s0 + $0x60] sm:$0xff]
    %v28 = vld [vmem:[%s0 + $0x68] sm:$0xff]
    %v29 = vld [vmem:[%s0 + $0x70] sm:$0xff]
    %v30 = vld [vmem:[%s0 + $0x78] sm:$0xff]
    %v31 = vld [vmem:[%s0 + $0x80] sm:$0xff]
    %v32 = vld [vmem:[%s0 + $0x88] sm:$0xff]
    %v33 = vld [vmem:[%s0 + $0x90] sm:$0xff]
    %v34 = vld [vmem:[%s0 + $0x98] sm:$0xff]
    %v35 = vld [vmem:[%s0 + $0xa0] sm:$0xff]
    %v36 = vld [vmem:[%s0 + $0xa8] sm:$0xff]
    %v37 = vld [vmem:[%s0 + $0xb0] sm:$0xff]
    %v38 = vld [vmem:[%s0 + $0xb8] sm:$0xff]
    %v39 = vld [vmem:[%s0 + $0xc0] sm:$0xff]
    %v40 = vld [vmem:[%s0 + $0xc8] sm:$0xff]
    %v41 = vld [vmem:[%s0 + $0xd0] sm:$0xff]
    %v42 = vld [vmem:[%s0 + $0xd8] sm:$0xff]
    %v43 = vld [vmem:[%s0 + $0xe0] sm:$0xff]
    %v44 = vld [vmem:[%s0 + $0xe8] sm:$0xff]
    %v45 = vld [vmem:[%s0 + $0xf0] sm:$0xff]
    %v46 = vld [vmem:[%s0 + $0xf8] sm:$0xff]
    %v47 = vld [vmem:[%s1] sm:$0xf]
    %v48 = vld [vmem:[%s2] sm:$0x1]
    %v50 = vlaneseq
    %v51 = vshrl.u32 %v50, 7
    %v52 = vsub.s32 0, %v51
    %v53 = vrot.slane %v48, %v52
    %vm55 = vcmask 31744
    %v57 = vsel %vm55, %v15, 0
    %v60 = vsel %vm55, %v16, 0
    %v63 = vsel %vm55, %v17, 0
    %v66 = vsel %vm55, %v18, 0
    %v69 = vsel %vm55, %v19, 0
    %v72 = vsel %vm55, %v20, 0
    %v75 = vsel %vm55, %v21, 0
    %v78 = vsel %vm55, %v22, 0
    %v81 = vsel %vm55, %v23, 0
    %v84 = vsel %vm55, %v24, 0
    %v87 = vsel %vm55, %v25, 0
    %v90 = vsel %vm55, %v26, 0
    %v93 = vsel %vm55, %v27, 0
    %v96 = vsel %vm55, %v28, 0
    %v99 = vsel %vm55, %v29, 0
    %v102 = vsel %vm55, %v30, 0
    %v105 = vsel %vm55, %v31, 0
    %v108 = vsel %vm55, %v32, 0
    %v111 = vsel %vm55, %v33, 0
    %v114 = vsel %vm55, %v34, 0
    %v117 = vsel %vm55, %v35, 0
    %v120 = vsel %vm55, %v36, 0
    %v123 = vsel %vm55, %v37, 0
    %v126 = vsel %vm55, %v38, 0
    %v129 = vsel %vm55, %v39, 0
    %v132 = vsel %vm55, %v40, 0
    %v135 = vsel %vm55, %v41, 0
    %v138 = vsel %vm55, %v42, 0
    %v141 = vsel %vm55, %v43, 0
    %v144 = vsel %vm55, %v44, 0
    %v147 = vsel %vm55, %v45, 0
    %v150 = vsel %vm55, %v46, 0
    %vm152 = vcmask 1043456
    %v154 = vsel %vm152, %v47, 0
    %156 = vmatprep.subr.mxu0 0.0
    %157 = vmatpush1.msra.mxu0 0.0
    %158 = vmatprep.subr.mxu0 0.0
    %159 = vmatpush1.msra.mxu0 0.0
    %160 = vmatprep.subr.mxu0 0.0
    %161 = vmatpush1.msra.mxu0 0.0
    %162 = vmatprep.subr.mxu0 0.0
    %163 = vmatpush1.msra.mxu0 0.0
    %164 = vmatprep.subr.mxu0 0.0
    %165 = vmatpush1.msra.mxu0 0.0
    %166 = vmatprep.subr.mxu0 0.0
    %167 = vmatpush1.msra.mxu0 0.0
    %168 = vmatprep.subr.mxu0 0.0
    %169 = vmatpush1.msra.mxu0 0.0
    %170 = vmatprep.subr.mxu0 0.0
    %171 = vmatpush1.msra.mxu0 0.0
    %172 = vmatprep.subr.mxu0 0.0
    %173 = vmatpush1.msra.mxu0 0.0
    %174 = vmatprep.subr.mxu0 0.0
    %175 = vmatpush1.msra.mxu0 0.0
    %176 = vmatprep.subr.mxu0 0.0
    %177 = vmatpush1.msra.mxu0 0.0
    %178 = vmatprep.subr.mxu0 0.0
    %179 = vmatpush1.msra.mxu0 0.0
    %180 = vmatprep.subr.mxu0 0.0
    %181 = vmatpush1.msra.mxu0 0.0
    %182 = vmatprep.subr.mxu0 0.0
    %183 = vmatpush1.msra.mxu0 0.0
    %184 = vmatprep.subr.mxu0 0.0
    %185 = vmatpush1.msra.mxu0 0.0
    %186 = vmatprep.subr.mxu0 0.0
    %v187 = vand.u32 %v154, 4294901760
    %188 = vmatpush1.msra.mxu0 %v187
    %189 = vmatprep.subr.mxu0 0.0
    %190 = vmatpush2.msra.mxu0 0.0
    %191 = vmatprep.subr.mxu0 0.0
    %192 = vmatpush2.msra.mxu0 0.0
    %193 = vmatprep.subr.mxu0 0.0
    %194 = vmatpush2.msra.mxu0 0.0
    %195 = vmatprep.subr.mxu0 0.0
    %196 = vmatpush2.msra.mxu0 0.0
    %197 = vmatprep.subr.mxu0 0.0
    %198 = vmatpush2.msra.mxu0 0.0
    %199 = vmatprep.subr.mxu0 0.0
    %200 = vmatpush2.msra.mxu0 0.0
    %201 = vmatprep.subr.mxu0 0.0
    %202 = vmatpush2.msra.mxu0 0.0
    %203 = vmatprep.subr.mxu0 0.0
    %204 = vmatpush2.msra.mxu0 0.0
    %205 = vmatprep.subr.mxu0 0.0
    %206 = vmatpush2.msra.mxu0 0.0
    %207 = vmatprep.subr.mxu0 0.0
    %208 = vmatpush2.msra.mxu0 0.0
    %209 = vmatprep.subr.mxu0 0.0
    %210 = vmatpush2.msra.mxu0 0.0
    %211 = vmatprep.subr.mxu0 0.0
    %212 = vmatpush2.msra.mxu0 0.0
    %213 = vmatprep.subr.mxu0 0.0
    %214 = vmatpush2.msra.mxu0 0.0
    %215 = vmatprep.subr.mxu0 0.0
    %216 = vmatpush2.msra.mxu0 0.0
    %217 = vmatprep.subr.mxu0 0.0
    %218 = vmatpush2.msra.mxu0 0.0
    %219 = vmatprep.subr.mxu0 0.0
    %220 = vmatpush2.msra.mxu0 0.0
    %221 = vmatprep.mubr.f32.mxu0 0.0
    %v222 = vand.u32 %v57, 4294901760
    %v223 = vsub.f32 %v57, %v222
    %v224 = vand.u32 %v223, 4294901760
    %v225 = vsub.f32 %v223, %v224
    %v226 = vand.u32 %v225, 4294901760
    %227 = vmatmul.mubr.f32.gmra.mxu0 %v226
    %v228 = vpop.f32.mrf.mxu0
    %v229 = vadd.f32 %v53, %v228
    %v230 = vpop.f32.mrf.mxu0
    %231 = vmatprep.mubr.f32.mxu0 0.0
    %v232 = vand.u32 %v60, 4294901760
    %v233 = vsub.f32 %v60, %v232
    %v234 = vand.u32 %v233, 4294901760
    %v235 = vsub.f32 %v233, %v234
    %v236 = vand.u32 %v235, 4294901760
    %237 = vmatmul.mubr.f32.gmra.mxu0 %v236
    %v238 = vpop.f32.mrf.mxu0
    %v239 = vadd.f32 %v53, %v238
    %v240 = vpop.f32.mrf.mxu0
    %241 = vmatprep.mubr.f32.mxu0 0.0
    %v242 = vand.u32 %v63, 4294901760
    %v243 = vsub.f32 %v63, %v242
    %v244 = vand.u32 %v243, 4294901760
    %v245 = vsub.f32 %v243, %v244
    %v246 = vand.u32 %v245, 4294901760
    %247 = vmatmul.mubr.f32.gmra.mxu0 %v246
    %v248 = vpop.f32.mrf.mxu0
    %v249 = vadd.f32 %v53, %v248
    %v250 = vpop.f32.mrf.mxu0
    %251 = vmatprep.mubr.f32.mxu0 0.0
    %v252 = vand.u32 %v66, 4294901760
    %v253 = vsub.f32 %v66, %v252
    %v254 = vand.u32 %v253, 4294901760
    %v255 = vsub.f32 %v253, %v254
    %v256 = vand.u32 %v255, 4294901760
    %257 = vmatmul.mubr.f32.gmra.mxu0 %v256
    %v258 = vpop.f32.mrf.mxu0
    %v259 = vadd.f32 %v53, %v258
    %v260 = vpop.f32.mrf.mxu0
    %261 = vmatprep.mubr.f32.mxu0 0.0
    %v262 = vand.u32 %v69, 4294901760
    %v263 = vsub.f32 %v69, %v262
    %v264 = vand.u32 %v263, 4294901760
    %v265 = vsub.f32 %v263, %v264
    %v266 = vand.u32 %v265, 4294901760
    %267 = vmatmul.mubr.f32.gmra.mxu0 %v266
    %v268 = vpop.f32.mrf.mxu0
    %v269 = vadd.f32 %v53, %v268
    %v270 = vpop.f32.mrf.mxu0
    %271 = vmatprep.mubr.f32.mxu0 0.0
    %v272 = vand.u32 %v72, 4294901760
    %v273 = vsub.f32 %v72, %v272
    %v274 = vand.u32 %v273, 4294901760
    %v275 = vsub.f32 %v273, %v274
    %v276 = vand.u32 %v275, 4294901760
    %277 = vmatmul.mubr.f32.gmra.mxu0 %v276
    %v278 = vpop.f32.mrf.mxu0
    %v279 = vadd.f32 %v53, %v278
    %v280 = vpop.f32.mrf.mxu0
    %281 = vmatprep.mubr.f32.mxu0 0.0
    %v282 = vand.u32 %v75, 4294901760
    %v283 = vsub.f32 %v75, %v282
    %v284 = vand.u32 %v283, 4294901760
    %v285 = vsub.f32 %v283, %v284
    %v286 = vand.u32 %v285, 4294901760
    %287 = vmatmul.mubr.f32.gmra.mxu0 %v286
    %v288 = vpop.f32.mrf.mxu0
    %v289 = vadd.f32 %v53, %v288
    %v290 = vpop.f32.mrf.mxu0
    %291 = vmatprep.mubr.f32.mxu0 0.0
    %v292 = vand.u32 %v78, 4294901760
    %v293 = vsub.f32 %v78, %v292
    %v294 = vand.u32 %v293, 4294901760
    %v295 = vsub.f32 %v293, %v294
    %v296 = vand.u32 %v295, 4294901760
    %297 = vmatmul.mubr.f32.gmra.mxu0 %v296
    %v298 = vpop.f32.mrf.mxu0
    %v299 = vadd.f32 %v53, %v298
    %v300 = vpop.f32.mrf.mxu0
    %301 = vmatprep.mubr.f32.mxu0 0.0
    %v302 = vand.u32 %v81, 4294901760
    %v303 = vsub.f32 %v81, %v302
    %v304 = vand.u32 %v303, 4294901760
    %v305 = vsub.f32 %v303, %v304
    %v306 = vand.u32 %v305, 4294901760
    %307 = vmatmul.mubr.f32.gmra.mxu0 %v306
    %v308 = vpop.f32.mrf.mxu0
    %v309 = vadd.f32 %v53, %v308
    %v310 = vpop.f32.mrf.mxu0
    %311 = vmatprep.mubr.f32.mxu0 0.0
    %v312 = vand.u32 %v84, 4294901760
    %v313 = vsub.f32 %v84, %v312
    %v314 = vand.u32 %v313, 4294901760
    %v315 = vsub.f32 %v313, %v314
    %v316 = vand.u32 %v315, 4294901760
    %317 = vmatmul.mubr.f32.gmra.mxu0 %v316
    %v318 = vpop.f32.mrf.mxu0
    %v319 = vadd.f32 %v53, %v318
    %v320 = vpop.f32.mrf.mxu0
    %321 = vmatprep.mubr.f32.mxu0 0.0
    %v322 = vand.u32 %v87, 4294901760
    %v323 = vsub.f32 %v87, %v322
    %v324 = vand.u32 %v323, 4294901760
    %v325 = vsub.f32 %v323, %v324
    %v326 = vand.u32 %v325, 4294901760
    %327 = vmatmul.mubr.f32.gmra.mxu0 %v326
    %v328 = vpop.f32.mrf.mxu0
    %v329 = vadd.f32 %v53, %v328
    %v330 = vpop.f32.mrf.mxu0
    %331 = vmatprep.mubr.f32.mxu0 0.0
    %v332 = vand.u32 %v90, 4294901760
    %v333 = vsub.f32 %v90, %v332
    %v334 = vand.u32 %v333, 4294901760
    %v335 = vsub.f32 %v333, %v334
    %v336 = vand.u32 %v335, 4294901760
    %337 = vmatmul.mubr.f32.gmra.mxu0 %v336
    %v338 = vpop.f32.mrf.mxu0
    %v339 = vadd.f32 %v53, %v338
    %v340 = vpop.f32.mrf.mxu0
    %341 = vmatprep.mubr.f32.mxu0 0.0
    %v342 = vand.u32 %v93, 4294901760
    %v343 = vsub.f32 %v93, %v342
    %v344 = vand.u32 %v343, 4294901760
    %v345 = vsub.f32 %v343, %v344
    %v346 = vand.u32 %v345, 4294901760
    %347 = vmatmul.mubr.f32.gmra.mxu0 %v346
    %v348 = vpop.f32.mrf.mxu0
    %v349 = vadd.f32 %v53, %v348
    %v350 = vpop.f32.mrf.mxu0
    %351 = vmatprep.mubr.f32.mxu0 0.0
    %v352 = vand.u32 %v96, 4294901760
    %v353 = vsub.f32 %v96, %v352
    %v354 = vand.u32 %v353, 4294901760
    %v355 = vsub.f32 %v353, %v354
    %v356 = vand.u32 %v355, 4294901760
    %357 = vmatmul.mubr.f32.gmra.mxu0 %v356
    %v358 = vpop.f32.mrf.mxu0
    %v359 = vadd.f32 %v53, %v358
    %v360 = vpop.f32.mrf.mxu0
    %361 = vmatprep.mubr.f32.mxu0 0.0
    %v362 = vand.u32 %v99, 4294901760
    %v363 = vsub.f32 %v99, %v362
    %v364 = vand.u32 %v363, 4294901760
    %v365 = vsub.f32 %v363, %v364
    %v366 = vand.u32 %v365, 4294901760
    %367 = vmatmul.mubr.f32.gmra.mxu0 %v366
    %v368 = vpop.f32.mrf.mxu0
    %v369 = vadd.f32 %v53, %v368
    %v370 = vpop.f32.mrf.mxu0
    %371 = vmatprep.mubr.f32.mxu0 0.0
    %v372 = vand.u32 %v102, 4294901760
    %v373 = vsub.f32 %v102, %v372
    %v374 = vand.u32 %v373, 4294901760
    %v375 = vsub.f32 %v373, %v374
    %v376 = vand.u32 %v375, 4294901760
    %377 = vmatmul.mubr.f32.gmra.mxu0 %v376
    %v378 = vpop.f32.mrf.mxu0
    %v379 = vadd.f32 %v53, %v378
    %v380 = vpop.f32.mrf.mxu0
    %381 = vmatprep.mubr.f32.mxu0 0.0
    %v382 = vand.u32 %v105, 4294901760
    %v383 = vsub.f32 %v105, %v382
    %v384 = vand.u32 %v383, 4294901760
    %v385 = vsub.f32 %v383, %v384
    %v386 = vand.u32 %v385, 4294901760
    %387 = vmatmul.mubr.f32.gmra.mxu0 %v386
    %v388 = vpop.f32.mrf.mxu0
    %v389 = vadd.f32 %v53, %v388
    %v390 = vpop.f32.mrf.mxu0
    %391 = vmatprep.mubr.f32.mxu0 0.0
    %v392 = vand.u32 %v108, 4294901760
    %v393 = vsub.f32 %v108, %v392
    %v394 = vand.u32 %v393, 4294901760
    %v395 = vsub.f32 %v393, %v394
    %v396 = vand.u32 %v395, 4294901760
    %397 = vmatmul.mubr.f32.gmra.mxu0 %v396
    %v398 = vpop.f32.mrf.mxu0
    %v399 = vadd.f32 %v53, %v398
    %v400 = vpop.f32.mrf.mxu0
    %401 = vmatprep.mubr.f32.mxu0 0.0
    %v402 = vand.u32 %v111, 4294901760
    %v403 = vsub.f32 %v111, %v402
    %v404 = vand.u32 %v403, 4294901760
    %v405 = vsub.f32 %v403, %v404
    %v406 = vand.u32 %v405, 4294901760
    %407 = vmatmul.mubr.f32.gmra.mxu0 %v406
    %v408 = vpop.f32.mrf.mxu0
    %v409 = vadd.f32 %v53, %v408
    %v410 = vpop.f32.mrf.mxu0
    %411 = vmatprep.mubr.f32.mxu0 0.0
    %v412 = vand.u32 %v114, 4294901760
    %v413 = vsub.f32 %v114, %v412
    %v414 = vand.u32 %v413, 4294901760
    %v415 = vsub.f32 %v413, %v414
    %v416 = vand.u32 %v415, 4294901760
    %417 = vmatmul.mubr.f32.gmra.mxu0 %v416
    %v418 = vpop.f32.mrf.mxu0
    %v419 = vadd.f32 %v53, %v418
    %v420 = vpop.f32.mrf.mxu0
    %421 = vmatprep.mubr.f32.mxu0 0.0
    %v422 = vand.u32 %v117, 4294901760
    %v423 = vsub.f32 %v117, %v422
    %v424 = vand.u32 %v423, 4294901760
    %v425 = vsub.f32 %v423, %v424
    %v426 = vand.u32 %v425, 4294901760
    %427 = vmatmul.mubr.f32.gmra.mxu0 %v426
    %v428 = vpop.f32.mrf.mxu0
    %v429 = vadd.f32 %v53, %v428
    %v430 = vpop.f32.mrf.mxu0
    %431 = vmatprep.mubr.f32.mxu0 0.0
    %v432 = vand.u32 %v120, 4294901760
    %v433 = vsub.f32 %v120, %v432
    %v434 = vand.u32 %v433, 4294901760
    %v435 = vsub.f32 %v433, %v434
    %v436 = vand.u32 %v435, 4294901760
    %437 = vmatmul.mubr.f32.gmra.mxu0 %v436
    %v438 = vpop.f32.mrf.mxu0
    %v439 = vadd.f32 %v53, %v438
    %v440 = vpop.f32.mrf.mxu0
    %441 = vmatprep.mubr.f32.mxu0 0.0
    %v442 = vand.u32 %v123, 4294901760
    %v443 = vsub.f32 %v123, %v442
    %v444 = vand.u32 %v443, 4294901760
    %v445 = vsub.f32 %v443, %v444
    %v446 = vand.u32 %v445, 4294901760
    %447 = vmatmul.mubr.f32.gmra.mxu0 %v446
    %v448 = vpop.f32.mrf.mxu0
    %v449 = vadd.f32 %v53, %v448
    %v450 = vpop.f32.mrf.mxu0
    %451 = vmatprep.mubr.f32.mxu0 0.0
    %v452 = vand.u32 %v126, 4294901760
    %v453 = vsub.f32 %v126, %v452
    %v454 = vand.u32 %v453, 4294901760
    %v455 = vsub.f32 %v453, %v454
    %v456 = vand.u32 %v455, 4294901760
    %457 = vmatmul.mubr.f32.gmra.mxu0 %v456
    %v458 = vpop.f32.mrf.mxu0
    %v459 = vadd.f32 %v53, %v458
    %v460 = vpop.f32.mrf.mxu0
    %461 = vmatprep.mubr.f32.mxu0 0.0
    %v462 = vand.u32 %v129, 4294901760
    %v463 = vsub.f32 %v129, %v462
    %v464 = vand.u32 %v463, 4294901760
    %v465 = vsub.f32 %v463, %v464
    %v466 = vand.u32 %v465, 4294901760
    %467 = vmatmul.mubr.f32.gmra.mxu0 %v466
    %v468 = vpop.f32.mrf.mxu0
    %v469 = vadd.f32 %v53, %v468
    %v470 = vpop.f32.mrf.mxu0
    %471 = vmatprep.mubr.f32.mxu0 0.0
    %v472 = vand.u32 %v132, 4294901760
    %v473 = vsub.f32 %v132, %v472
    %v474 = vand.u32 %v473, 4294901760
    %v475 = vsub.f32 %v473, %v474
    %v476 = vand.u32 %v475, 4294901760
    %477 = vmatmul.mubr.f32.gmra.mxu0 %v476
    %v478 = vpop.f32.mrf.mxu0
    %v479 = vadd.f32 %v53, %v478
    %v480 = vpop.f32.mrf.mxu0
    %481 = vmatprep.mubr.f32.mxu0 0.0
    %v482 = vand.u32 %v135, 4294901760
    %v483 = vsub.f32 %v135, %v482
    %v484 = vand.u32 %v483, 4294901760
    %v485 = vsub.f32 %v483, %v484
    %v486 = vand.u32 %v485, 4294901760
    %487 = vmatmul.mubr.f32.gmra.mxu0 %v486
    %v488 = vpop.f32.mrf.mxu0
    %v489 = vadd.f32 %v53, %v488
    %v490 = vpop.f32.mrf.mxu0
    %491 = vmatprep.mubr.f32.mxu0 0.0
    %v492 = vand.u32 %v138, 4294901760
    %v493 = vsub.f32 %v138, %v492
    %v494 = vand.u32 %v493, 4294901760
    %v495 = vsub.f32 %v493, %v494
    %v496 = vand.u32 %v495, 4294901760
    %497 = vmatmul.mubr.f32.gmra.mxu0 %v496
    %v498 = vpop.f32.mrf.mxu0
    %v499 = vadd.f32 %v53, %v498
    %v500 = vpop.f32.mrf.mxu0
    %501 = vmatprep.mubr.f32.mxu0 0.0
    %v502 = vand.u32 %v141, 4294901760
    %v503 = vsub.f32 %v141, %v502
    %v504 = vand.u32 %v503, 4294901760
    %v505 = vsub.f32 %v503, %v504
    %v506 = vand.u32 %v505, 4294901760
    %507 = vmatmul.mubr.f32.gmra.mxu0 %v506
    %v508 = vpop.f32.mrf.mxu0
    %v509 = vadd.f32 %v53, %v508
    %v510 = vpop.f32.mrf.mxu0
    %511 = vmatprep.mubr.f32.mxu0 0.0
    %v512 = vand.u32 %v144, 4294901760
    %v513 = vsub.f32 %v144, %v512
    %v514 = vand.u32 %v513, 4294901760
    %v515 = vsub.f32 %v513, %v514
    %v516 = vand.u32 %v515, 4294901760
    %517 = vmatmul.mubr.f32.gmra.mxu0 %v516
    %v518 = vpop.f32.mrf.mxu0
    %v519 = vadd.f32 %v53, %v518
    %v520 = vpop.f32.mrf.mxu0
    %521 = vmatprep.mubr.f32.mxu0 0.0
    %v522 = vand.u32 %v147, 4294901760
    %v523 = vsub.f32 %v147, %v522
    %v524 = vand.u32 %v523, 4294901760
    %v525 = vsub.f32 %v523, %v524
    %v526 = vand.u32 %v525, 4294901760
    %527 = vmatmul.mubr.f32.gmra.mxu0 %v526
    %v528 = vpop.f32.mrf.mxu0
    %v529 = vadd.f32 %v53, %v528
    %v530 = vpop.f32.mrf.mxu0
    %531 = vmatprep.mubr.f32.mxu0 0.0
    %v532 = vand.u32 %v150, 4294901760
    %v533 = vsub.f32 %v150, %v532
    %v534 = vand.u32 %v533, 4294901760
    %v535 = vsub.f32 %v533, %v534
    %v536 = vand.u32 %v535, 4294901760
    %537 = vmatmul.mubr.f32.gmra.mxu0 %v536
    %v538 = vpop.f32.mrf.mxu0
    %v539 = vadd.f32 %v53, %v538
    %v540 = vpop.f32.mrf.mxu0
    %541 = vdwg.mxu0
    %542 = vmatprep.subr.mxu0 0.0
    %543 = vmatpush1.msra.mxu0 0.0
    %544 = vmatprep.subr.mxu0 0.0
    %545 = vmatpush1.msra.mxu0 0.0
    %546 = vmatprep.subr.mxu0 0.0
    %547 = vmatpush1.msra.mxu0 0.0
    %548 = vmatprep.subr.mxu0 0.0
    %549 = vmatpush1.msra.mxu0 0.0
    %550 = vmatprep.subr.mxu0 0.0
    %551 = vmatpush1.msra.mxu0 0.0
    %552 = vmatprep.subr.mxu0 0.0
    %553 = vmatpush1.msra.mxu0 0.0
    %554 = vmatprep.subr.mxu0 0.0
    %555 = vmatpush1.msra.mxu0 0.0
    %556 = vmatprep.subr.mxu0 0.0
    %557 = vmatpush1.msra.mxu0 0.0
    %558 = vmatprep.subr.mxu0 0.0
    %559 = vmatpush1.msra.mxu0 0.0
    %560 = vmatprep.subr.mxu0 0.0
    %561 = vmatpush1.msra.mxu0 0.0
    %562 = vmatprep.subr.mxu0 0.0
    %563 = vmatpush1.msra.mxu0 0.0
    %564 = vmatprep.subr.mxu0 0.0
    %565 = vmatpush1.msra.mxu0 0.0
    %566 = vmatprep.subr.mxu0 0.0
    %567 = vmatpush1.msra.mxu0 0.0
    %568 = vmatprep.subr.mxu0 0.0
    %569 = vmatpush1.msra.mxu0 0.0
    %570 = vmatprep.subr.mxu0 0.0
    %571 = vmatpush1.msra.mxu0 0.0
    %572 = vmatprep.subr.mxu0 0.0
    %v573 = vand.u32 %v154, 4294901760
    %v574 = vsub.f32 %v154, %v573
    %v575 = vand.u32 %v574, 4294901760
    %v576 = vsub.f32 %v574, %v575
    %v577 = vand.u32 %v576, 4294901760
    %578 = vmatpush1.msra.mxu0 %v577
    %579 = vmatprep.subr.mxu0 0.0
    %580 = vmatpush2.msra.mxu0 0.0
    %581 = vmatprep.subr.mxu0 0.0
    %582 = vmatpush2.msra.mxu0 0.0
    %583 = vmatprep.subr.mxu0 0.0
    %584 = vmatpush2.msra.mxu0 0.0
    %585 = vmatprep.subr.mxu0 0.0
    %586 = vmatpush2.msra.mxu0 0.0
    %587 = vmatprep.subr.mxu0 0.0
    %588 = vmatpush2.msra.mxu0 0.0
    %589 = vmatprep.subr.mxu0 0.0
    %590 = vmatpush2.msra.mxu0 0.0
    %591 = vmatprep.subr.mxu0 0.0
    %592 = vmatpush2.msra.mxu0 0.0
    %593 = vmatprep.subr.mxu0 0.0
    %594 = vmatpush2.msra.mxu0 0.0
    %595 = vmatprep.subr.mxu0 0.0
    %596 = vmatpush2.msra.mxu0 0.0
    %597 = vmatprep.subr.mxu0 0.0
    %598 = vmatpush2.msra.mxu0 0.0
    %599 = vmatprep.subr.mxu0 0.0
    %600 = vmatpush2.msra.mxu0 0.0
    %601 = vmatprep.subr.mxu0 0.0
    %602 = vmatpush2.msra.mxu0 0.0
    %603 = vmatprep.subr.mxu0 0.0
    %604 = vmatpush2.msra.mxu0 0.0
    %605 = vmatprep.subr.mxu0 0.0
    %606 = vmatpush2.msra.mxu0 0.0
    %607 = vmatprep.subr.mxu0 0.0
    %608 = vmatpush2.msra.mxu0 0.0
    %609 = vmatprep.subr.mxu0 0.0
    %610 = vmatpush2.msra.mxu0 0.0
    %611 = vmatprep.mubr.f32.mxu0 0.0
    %v612 = vand.u32 %v57, 4294901760
    %613 = vmatmul.mubr.f32.gmra.mxu0 %v612
    %v614 = vpop.f32.mrf.mxu0
    %v615 = vadd.f32 %v229, %v614
    %v616 = vpop.f32.mrf.mxu0
    %617 = vmatprep.mubr.f32.mxu0 0.0
    %v618 = vand.u32 %v60, 4294901760
    %619 = vmatmul.mubr.f32.gmra.mxu0 %v618
    %v620 = vpop.f32.mrf.mxu0
    %v621 = vadd.f32 %v239, %v620
    %v622 = vpop.f32.mrf.mxu0
    %623 = vmatprep.mubr.f32.mxu0 0.0
    %v624 = vand.u32 %v63, 4294901760
    %625 = vmatmul.mubr.f32.gmra.mxu0 %v624
    %v626 = vpop.f32.mrf.mxu0
    %v627 = vadd.f32 %v249, %v626
    %v628 = vpop.f32.mrf.mxu0
    %629 = vmatprep.mubr.f32.mxu0 0.0
    %v630 = vand.u32 %v66, 4294901760
    %631 = vmatmul.mubr.f32.gmra.mxu0 %v630
    %v632 = vpop.f32.mrf.mxu0
    %v633 = vadd.f32 %v259, %v632
    %v634 = vpop.f32.mrf.mxu0
    %635 = vmatprep.mubr.f32.mxu0 0.0
    %v636 = vand.u32 %v69, 4294901760
    %637 = vmatmul.mubr.f32.gmra.mxu0 %v636
    %v638 = vpop.f32.mrf.mxu0
    %v639 = vadd.f32 %v269, %v638
    %v640 = vpop.f32.mrf.mxu0
    %641 = vmatprep.mubr.f32.mxu0 0.0
    %v642 = vand.u32 %v72, 4294901760
    %643 = vmatmul.mubr.f32.gmra.mxu0 %v642
    %v644 = vpop.f32.mrf.mxu0
    %v645 = vadd.f32 %v279, %v644
    %v646 = vpop.f32.mrf.mxu0
    %647 = vmatprep.mubr.f32.mxu0 0.0
    %v648 = vand.u32 %v75, 4294901760
    %649 = vmatmul.mubr.f32.gmra.mxu0 %v648
    %v650 = vpop.f32.mrf.mxu0
    %v651 = vadd.f32 %v289, %v650
    %v652 = vpop.f32.mrf.mxu0
    %653 = vmatprep.mubr.f32.mxu0 0.0
    %v654 = vand.u32 %v78, 4294901760
    %655 = vmatmul.mubr.f32.gmra.mxu0 %v654
    %v656 = vpop.f32.mrf.mxu0
    %v657 = vadd.f32 %v299, %v656
    %v658 = vpop.f32.mrf.mxu0
    %659 = vmatprep.mubr.f32.mxu0 0.0
    %v660 = vand.u32 %v81, 4294901760
    %661 = vmatmul.mubr.f32.gmra.mxu0 %v660
    %v662 = vpop.f32.mrf.mxu0
    %v663 = vadd.f32 %v309, %v662
    %v664 = vpop.f32.mrf.mxu0
    %665 = vmatprep.mubr.f32.mxu0 0.0
    %v666 = vand.u32 %v84, 4294901760
    %667 = vmatmul.mubr.f32.gmra.mxu0 %v666
    %v668 = vpop.f32.mrf.mxu0
    %v669 = vadd.f32 %v319, %v668
    %v670 = vpop.f32.mrf.mxu0
    %671 = vmatprep.mubr.f32.mxu0 0.0
    %v672 = vand.u32 %v87, 4294901760
    %673 = vmatmul.mubr.f32.gmra.mxu0 %v672
    %v674 = vpop.f32.mrf.mxu0
    %v675 = vadd.f32 %v329, %v674
    %v676 = vpop.f32.mrf.mxu0
    %677 = vmatprep.mubr.f32.mxu0 0.0
    %v678 = vand.u32 %v90, 4294901760
    %679 = vmatmul.mubr.f32.gmra.mxu0 %v678
    %v680 = vpop.f32.mrf.mxu0
    %v681 = vadd.f32 %v339, %v680
    %v682 = vpop.f32.mrf.mxu0
    %683 = vmatprep.mubr.f32.mxu0 0.0
    %v684 = vand.u32 %v93, 4294901760
    %685 = vmatmul.mubr.f32.gmra.mxu0 %v684
    %v686 = vpop.f32.mrf.mxu0
    %v687 = vadd.f32 %v349, %v686
    %v688 = vpop.f32.mrf.mxu0
    %689 = vmatprep.mubr.f32.mxu0 0.0
    %v690 = vand.u32 %v96, 4294901760
    %691 = vmatmul.mubr.f32.gmra.mxu0 %v690
    %v692 = vpop.f32.mrf.mxu0
    %v693 = vadd.f32 %v359, %v692
    %v694 = vpop.f32.mrf.mxu0
    %695 = vmatprep.mubr.f32.mxu0 0.0
    %v696 = vand.u32 %v99, 4294901760
    %697 = vmatmul.mubr.f32.gmra.mxu0 %v696
    %v698 = vpop.f32.mrf.mxu0
    %v699 = vadd.f32 %v369, %v698
    %v700 = vpop.f32.mrf.mxu0
    %701 = vmatprep.mubr.f32.mxu0 0.0
    %v702 = vand.u32 %v102, 4294901760
    %703 = vmatmul.mubr.f32.gmra.mxu0 %v702
    %v704 = vpop.f32.mrf.mxu0
    %v705 = vadd.f32 %v379, %v704
    %v706 = vpop.f32.mrf.mxu0
    %707 = vmatprep.mubr.f32.mxu0 0.0
    %v708 = vand.u32 %v105, 4294901760
    %709 = vmatmul.mubr.f32.gmra.mxu0 %v708
    %v710 = vpop.f32.mrf.mxu0
    %v711 = vadd.f32 %v389, %v710
    %v712 = vpop.f32.mrf.mxu0
    %713 = vmatprep.mubr.f32.mxu0 0.0
    %v714 = vand.u32 %v108, 4294901760
    %715 = vmatmul.mubr.f32.gmra.mxu0 %v714
    %v716 = vpop.f32.mrf.mxu0
    %v717 = vadd.f32 %v399, %v716
    %v718 = vpop.f32.mrf.mxu0
    %719 = vmatprep.mubr.f32.mxu0 0.0
    %v720 = vand.u32 %v111, 4294901760
    %721 = vmatmul.mubr.f32.gmra.mxu0 %v720
    %v722 = vpop.f32.mrf.mxu0
    %v723 = vadd.f32 %v409, %v722
    %v724 = vpop.f32.mrf.mxu0
    %725 = vmatprep.mubr.f32.mxu0 0.0
    %v726 = vand.u32 %v114, 4294901760
    %727 = vmatmul.mubr.f32.gmra.mxu0 %v726
    %v728 = vpop.f32.mrf.mxu0
    %v729 = vadd.f32 %v419, %v728
    %v730 = vpop.f32.mrf.mxu0
    %731 = vmatprep.mubr.f32.mxu0 0.0
    %v732 = vand.u32 %v117, 4294901760
    %733 = vmatmul.mubr.f32.gmra.mxu0 %v732
    %v734 = vpop.f32.mrf.mxu0
    %v735 = vadd.f32 %v429, %v734
    %v736 = vpop.f32.mrf.mxu0
    %737 = vmatprep.mubr.f32.mxu0 0.0
    %v738 = vand.u32 %v120, 4294901760
    %739 = vmatmul.mubr.f32.gmra.mxu0 %v738
    %v740 = vpop.f32.mrf.mxu0
    %v741 = vadd.f32 %v439, %v740
    %v742 = vpop.f32.mrf.mxu0
    %743 = vmatprep.mubr.f32.mxu0 0.0
    %v744 = vand.u32 %v123, 4294901760
    %745 = vmatmul.mubr.f32.gmra.mxu0 %v744
    %v746 = vpop.f32.mrf.mxu0
    %v747 = vadd.f32 %v449, %v746
    %v748 = vpop.f32.mrf.mxu0
    %749 = vmatprep.mubr.f32.mxu0 0.0
    %v750 = vand.u32 %v126, 4294901760
    %751 = vmatmul.mubr.f32.gmra.mxu0 %v750
    %v752 = vpop.f32.mrf.mxu0
    %v753 = vadd.f32 %v459, %v752
    %v754 = vpop.f32.mrf.mxu0
    %755 = vmatprep.mubr.f32.mxu0 0.0
    %v756 = vand.u32 %v129, 4294901760
    %757 = vmatmul.mubr.f32.gmra.mxu0 %v756
    %v758 = vpop.f32.mrf.mxu0
    %v759 = vadd.f32 %v469, %v758
    %v760 = vpop.f32.mrf.mxu0
    %761 = vmatprep.mubr.f32.mxu0 0.0
    %v762 = vand.u32 %v132, 4294901760
    %763 = vmatmul.mubr.f32.gmra.mxu0 %v762
    %v764 = vpop.f32.mrf.mxu0
    %v765 = vadd.f32 %v479, %v764
    %v766 = vpop.f32.mrf.mxu0
    %767 = vmatprep.mubr.f32.mxu0 0.0
    %v768 = vand.u32 %v135, 4294901760
    %769 = vmatmul.mubr.f32.gmra.mxu0 %v768
    %v770 = vpop.f32.mrf.mxu0
    %v771 = vadd.f32 %v489, %v770
    %v772 = vpop.f32.mrf.mxu0
    %773 = vmatprep.mubr.f32.mxu0 0.0
    %v774 = vand.u32 %v138, 4294901760
    %775 = vmatmul.mubr.f32.gmra.mxu0 %v774
    %v776 = vpop.f32.mrf.mxu0
    %v777 = vadd.f32 %v499, %v776
    %v778 = vpop.f32.mrf.mxu0
    %779 = vmatprep.mubr.f32.mxu0 0.0
    %v780 = vand.u32 %v141, 4294901760
    %781 = vmatmul.mubr.f32.gmra.mxu0 %v780
    %v782 = vpop.f32.mrf.mxu0
    %v783 = vadd.f32 %v509, %v782
    %v784 = vpop.f32.mrf.mxu0
    %785 = vmatprep.mubr.f32.mxu0 0.0
    %v786 = vand.u32 %v144, 4294901760
    %787 = vmatmul.mubr.f32.gmra.mxu0 %v786
    %v788 = vpop.f32.mrf.mxu0
    %v789 = vadd.f32 %v519, %v788
    %v790 = vpop.f32.mrf.mxu0
    %791 = vmatprep.mubr.f32.mxu0 0.0
    %v792 = vand.u32 %v147, 4294901760
    %793 = vmatmul.mubr.f32.gmra.mxu0 %v792
    %v794 = vpop.f32.mrf.mxu0
    %v795 = vadd.f32 %v529, %v794
    %v796 = vpop.f32.mrf.mxu0
    %797 = vmatprep.mubr.f32.mxu0 0.0
    %v798 = vand.u32 %v150, 4294901760
    %799 = vmatmul.mubr.f32.gmra.mxu0 %v798
    %v800 = vpop.f32.mrf.mxu0
    %v801 = vadd.f32 %v539, %v800
    %v802 = vpop.f32.mrf.mxu0
    %803 = vdwg.mxu0
    %804 = vmatprep.subr.mxu0 0.0
    %805 = vmatpush1.msra.mxu0 0.0
    %806 = vmatprep.subr.mxu0 0.0
    %807 = vmatpush1.msra.mxu0 0.0
    %808 = vmatprep.subr.mxu0 0.0
    %809 = vmatpush1.msra.mxu0 0.0
    %810 = vmatprep.subr.mxu0 0.0
    %811 = vmatpush1.msra.mxu0 0.0
    %812 = vmatprep.subr.mxu0 0.0
    %813 = vmatpush1.msra.mxu0 0.0
    %814 = vmatprep.subr.mxu0 0.0
    %815 = vmatpush1.msra.mxu0 0.0
    %816 = vmatprep.subr.mxu0 0.0
    %817 = vmatpush1.msra.mxu0 0.0
    %818 = vmatprep.subr.mxu0 0.0
    %819 = vmatpush1.msra.mxu0 0.0
    %820 = vmatprep.subr.mxu0 0.0
    %821 = vmatpush1.msra.mxu0 0.0
    %822 = vmatprep.subr.mxu0 0.0
    %823 = vmatpush1.msra.mxu0 0.0
    %824 = vmatprep.subr.mxu0 0.0
    %825 = vmatpush1.msra.mxu0 0.0
    %826 = vmatprep.subr.mxu0 0.0
    %827 = vmatpush1.msra.mxu0 0.0
    %828 = vmatprep.subr.mxu0 0.0
    %829 = vmatpush1.msra.mxu0 0.0
    %830 = vmatprep.subr.mxu0 0.0
    %831 = vmatpush1.msra.mxu0 0.0
    %832 = vmatprep.subr.mxu0 0.0
    %833 = vmatpush1.msra.mxu0 0.0
    %834 = vmatprep.subr.mxu0 0.0
    %v835 = vand.u32 %v154, 4294901760
    %v836 = vsub.f32 %v154, %v835
    %837 = vmatpush1.msra.mxu0 %v836
    %838 = vmatprep.subr.mxu0 0.0
    %839 = vmatpush2.msra.mxu0 0.0
    %840 = vmatprep.subr.mxu0 0.0
    %841 = vmatpush2.msra.mxu0 0.0
    %842 = vmatprep.subr.mxu0 0.0
    %843 = vmatpush2.msra.mxu0 0.0
    %844 = vmatprep.subr.mxu0 0.0
    %845 = vmatpush2.msra.mxu0 0.0
    %846 = vmatprep.subr.mxu0 0.0
    %847 = vmatpush2.msra.mxu0 0.0
    %848 = vmatprep.subr.mxu0 0.0
    %849 = vmatpush2.msra.mxu0 0.0
    %850 = vmatprep.subr.mxu0 0.0
    %851 = vmatpush2.msra.mxu0 0.0
    %852 = vmatprep.subr.mxu0 0.0
    %853 = vmatpush2.msra.mxu0 0.0
    %854 = vmatprep.subr.mxu0 0.0
    %855 = vmatpush2.msra.mxu0 0.0
    %856 = vmatprep.subr.mxu0 0.0
    %857 = vmatpush2.msra.mxu0 0.0
    %858 = vmatprep.subr.mxu0 0.0
    %859 = vmatpush2.msra.mxu0 0.0
    %860 = vmatprep.subr.mxu0 0.0
    %861 = vmatpush2.msra.mxu0 0.0
    %862 = vmatprep.subr.mxu0 0.0
    %863 = vmatpush2.msra.mxu0 0.0
    %864 = vmatprep.subr.mxu0 0.0
    %865 = vmatpush2.msra.mxu0 0.0
    %866 = vmatprep.subr.mxu0 0.0
    %867 = vmatpush2.msra.mxu0 0.0
    %868 = vmatprep.subr.mxu0 0.0
    %869 = vmatpush2.msra.mxu0 0.0
    %870 = vmatprep.mubr.f32.mxu0 0.0
    %v871 = vand.u32 %v57, 4294901760
    %v872 = vsub.f32 %v57, %v871
    %873 = vmatmul.mubr.f32.gmra.mxu0 %v872
    %v874 = vpop.f32.mrf.mxu0
    %v875 = vadd.f32 %v615, %v874
    %v876 = vpop.f32.mrf.mxu0
    %877 = vmatprep.mubr.f32.mxu0 0.0
    %v878 = vand.u32 %v60, 4294901760
    %v879 = vsub.f32 %v60, %v878
    %880 = vmatmul.mubr.f32.gmra.mxu0 %v879
    %v881 = vpop.f32.mrf.mxu0
    %v882 = vadd.f32 %v621, %v881
    %v883 = vpop.f32.mrf.mxu0
    %884 = vmatprep.mubr.f32.mxu0 0.0
    %v885 = vand.u32 %v63, 4294901760
    %v886 = vsub.f32 %v63, %v885
    %887 = vmatmul.mubr.f32.gmra.mxu0 %v886
    %v888 = vpop.f32.mrf.mxu0
    %v889 = vadd.f32 %v627, %v888
    %v890 = vpop.f32.mrf.mxu0
    %891 = vmatprep.mubr.f32.mxu0 0.0
    %v892 = vand.u32 %v66, 4294901760
    %v893 = vsub.f32 %v66, %v892
    %894 = vmatmul.mubr.f32.gmra.mxu0 %v893
    %v895 = vpop.f32.mrf.mxu0
    %v896 = vadd.f32 %v633, %v895
    %v897 = vpop.f32.mrf.mxu0
    %898 = vmatprep.mubr.f32.mxu0 0.0
    %v899 = vand.u32 %v69, 4294901760
    %v900 = vsub.f32 %v69, %v899
    %901 = vmatmul.mubr.f32.gmra.mxu0 %v900
    %v902 = vpop.f32.mrf.mxu0
    %v903 = vadd.f32 %v639, %v902
    %v904 = vpop.f32.mrf.mxu0
    %905 = vmatprep.mubr.f32.mxu0 0.0
    %v906 = vand.u32 %v72, 4294901760
    %v907 = vsub.f32 %v72, %v906
    %908 = vmatmul.mubr.f32.gmra.mxu0 %v907
    %v909 = vpop.f32.mrf.mxu0
    %v910 = vadd.f32 %v645, %v909
    %v911 = vpop.f32.mrf.mxu0
    %912 = vmatprep.mubr.f32.mxu0 0.0
    %v913 = vand.u32 %v75, 4294901760
    %v914 = vsub.f32 %v75, %v913
    %915 = vmatmul.mubr.f32.gmra.mxu0 %v914
    %v916 = vpop.f32.mrf.mxu0
    %v917 = vadd.f32 %v651, %v916
    %v918 = vpop.f32.mrf.mxu0
    %919 = vmatprep.mubr.f32.mxu0 0.0
    %v920 = vand.u32 %v78, 4294901760
    %v921 = vsub.f32 %v78, %v920
    %922 = vmatmul.mubr.f32.gmra.mxu0 %v921
    %v923 = vpop.f32.mrf.mxu0
    %v924 = vadd.f32 %v657, %v923
    %v925 = vpop.f32.mrf.mxu0
    %926 = vmatprep.mubr.f32.mxu0 0.0
    %v927 = vand.u32 %v81, 4294901760
    %v928 = vsub.f32 %v81, %v927
    %929 = vmatmul.mubr.f32.gmra.mxu0 %v928
    %v930 = vpop.f32.mrf.mxu0
    %v931 = vadd.f32 %v663, %v930
    %v932 = vpop.f32.mrf.mxu0
    %933 = vmatprep.mubr.f32.mxu0 0.0
    %v934 = vand.u32 %v84, 4294901760
    %v935 = vsub.f32 %v84, %v934
    %936 = vmatmul.mubr.f32.gmra.mxu0 %v935
    %v937 = vpop.f32.mrf.mxu0
    %v938 = vadd.f32 %v669, %v937
    %v939 = vpop.f32.mrf.mxu0
    %940 = vmatprep.mubr.f32.mxu0 0.0
    %v941 = vand.u32 %v87, 4294901760
    %v942 = vsub.f32 %v87, %v941
    %943 = vmatmul.mubr.f32.gmra.mxu0 %v942
    %v944 = vpop.f32.mrf.mxu0
    %v945 = vadd.f32 %v675, %v944
    %v946 = vpop.f32.mrf.mxu0
    %947 = vmatprep.mubr.f32.mxu0 0.0
    %v948 = vand.u32 %v90, 4294901760
    %v949 = vsub.f32 %v90, %v948
    %950 = vmatmul.mubr.f32.gmra.mxu0 %v949
    %v951 = vpop.f32.mrf.mxu0
    %v952 = vadd.f32 %v681, %v951
    %v953 = vpop.f32.mrf.mxu0
    %954 = vmatprep.mubr.f32.mxu0 0.0
    %v955 = vand.u32 %v93, 4294901760
    %v956 = vsub.f32 %v93, %v955
    %957 = vmatmul.mubr.f32.gmra.mxu0 %v956
    %v958 = vpop.f32.mrf.mxu0
    %v959 = vadd.f32 %v687, %v958
    %v960 = vpop.f32.mrf.mxu0
    %961 = vmatprep.mubr.f32.mxu0 0.0
    %v962 = vand.u32 %v96, 4294901760
    %v963 = vsub.f32 %v96, %v962
    %964 = vmatmul.mubr.f32.gmra.mxu0 %v963
    %v965 = vpop.f32.mrf.mxu0
    %v966 = vadd.f32 %v693, %v965
    %v967 = vpop.f32.mrf.mxu0
    %968 = vmatprep.mubr.f32.mxu0 0.0
    %v969 = vand.u32 %v99, 4294901760
    %v970 = vsub.f32 %v99, %v969
    %971 = vmatmul.mubr.f32.gmra.mxu0 %v970
    %v972 = vpop.f32.mrf.mxu0
    %v973 = vadd.f32 %v699, %v972
    %v974 = vpop.f32.mrf.mxu0
    %975 = vmatprep.mubr.f32.mxu0 0.0
    %v976 = vand.u32 %v102, 4294901760
    %v977 = vsub.f32 %v102, %v976
    %978 = vmatmul.mubr.f32.gmra.mxu0 %v977
    %v979 = vpop.f32.mrf.mxu0
    %v980 = vadd.f32 %v705, %v979
    %v981 = vpop.f32.mrf.mxu0
    %982 = vmatprep.mubr.f32.mxu0 0.0
    %v983 = vand.u32 %v105, 4294901760
    %v984 = vsub.f32 %v105, %v983
    %985 = vmatmul.mubr.f32.gmra.mxu0 %v984
    %v986 = vpop.f32.mrf.mxu0
    %v987 = vadd.f32 %v711, %v986
    %v988 = vpop.f32.mrf.mxu0
    %989 = vmatprep.mubr.f32.mxu0 0.0
    %v990 = vand.u32 %v108, 4294901760
    %v991 = vsub.f32 %v108, %v990
    %992 = vmatmul.mubr.f32.gmra.mxu0 %v991
    %v993 = vpop.f32.mrf.mxu0
    %v994 = vadd.f32 %v717, %v993
    %v995 = vpop.f32.mrf.mxu0
    %996 = vmatprep.mubr.f32.mxu0 0.0
    %v997 = vand.u32 %v111, 4294901760
    %v998 = vsub.f32 %v111, %v997
    %999 = vmatmul.mubr.f32.gmra.mxu0 %v998
    %v1000 = vpop.f32.mrf.mxu0
    %v1001 = vadd.f32 %v723, %v1000
    %v1002 = vpop.f32.mrf.mxu0
    %1003 = vmatprep.mubr.f32.mxu0 0.0
    %v1004 = vand.u32 %v114, 4294901760
    %v1005 = vsub.f32 %v114, %v1004
    %1006 = vmatmul.mubr.f32.gmra.mxu0 %v1005
    %v1007 = vpop.f32.mrf.mxu0
    %v1008 = vadd.f32 %v729, %v1007
    %v1009 = vpop.f32.mrf.mxu0
    %1010 = vmatprep.mubr.f32.mxu0 0.0
    %v1011 = vand.u32 %v117, 4294901760
    %v1012 = vsub.f32 %v117, %v1011
    %1013 = vmatmul.mubr.f32.gmra.mxu0 %v1012
    %v1014 = vpop.f32.mrf.mxu0
    %v1015 = vadd.f32 %v735, %v1014
    %v1016 = vpop.f32.mrf.mxu0
    %1017 = vmatprep.mubr.f32.mxu0 0.0
    %v1018 = vand.u32 %v120, 4294901760
    %v1019 = vsub.f32 %v120, %v1018
    %1020 = vmatmul.mubr.f32.gmra.mxu0 %v1019
    %v1021 = vpop.f32.mrf.mxu0
    %v1022 = vadd.f32 %v741, %v1021
    %v1023 = vpop.f32.mrf.mxu0
    %1024 = vmatprep.mubr.f32.mxu0 0.0
    %v1025 = vand.u32 %v123, 4294901760
    %v1026 = vsub.f32 %v123, %v1025
    %1027 = vmatmul.mubr.f32.gmra.mxu0 %v1026
    %v1028 = vpop.f32.mrf.mxu0
    %v1029 = vadd.f32 %v747, %v1028
    %v1030 = vpop.f32.mrf.mxu0
    %1031 = vmatprep.mubr.f32.mxu0 0.0
    %v1032 = vand.u32 %v126, 4294901760
    %v1033 = vsub.f32 %v126, %v1032
    %1034 = vmatmul.mubr.f32.gmra.mxu0 %v1033
    %v1035 = vpop.f32.mrf.mxu0
    %v1036 = vadd.f32 %v753, %v1035
    %v1037 = vpop.f32.mrf.mxu0
    %1038 = vmatprep.mubr.f32.mxu0 0.0
    %v1039 = vand.u32 %v129, 4294901760
    %v1040 = vsub.f32 %v129, %v1039
    %1041 = vmatmul.mubr.f32.gmra.mxu0 %v1040
    %v1042 = vpop.f32.mrf.mxu0
    %v1043 = vadd.f32 %v759, %v1042
    %v1044 = vpop.f32.mrf.mxu0
    %1045 = vmatprep.mubr.f32.mxu0 0.0
    %v1046 = vand.u32 %v132, 4294901760
    %v1047 = vsub.f32 %v132, %v1046
    %1048 = vmatmul.mubr.f32.gmra.mxu0 %v1047
    %v1049 = vpop.f32.mrf.mxu0
    %v1050 = vadd.f32 %v765, %v1049
    %v1051 = vpop.f32.mrf.mxu0
    %1052 = vmatprep.mubr.f32.mxu0 0.0
    %v1053 = vand.u32 %v135, 4294901760
    %v1054 = vsub.f32 %v135, %v1053
    %1055 = vmatmul.mubr.f32.gmra.mxu0 %v1054
    %v1056 = vpop.f32.mrf.mxu0
    %v1057 = vadd.f32 %v771, %v1056
    %v1058 = vpop.f32.mrf.mxu0
    %1059 = vmatprep.mubr.f32.mxu0 0.0
    %v1060 = vand.u32 %v138, 4294901760
    %v1061 = vsub.f32 %v138, %v1060
    %1062 = vmatmul.mubr.f32.gmra.mxu0 %v1061
    %v1063 = vpop.f32.mrf.mxu0
    %v1064 = vadd.f32 %v777, %v1063
    %v1065 = vpop.f32.mrf.mxu0
    %1066 = vmatprep.mubr.f32.mxu0 0.0
    %v1067 = vand.u32 %v141, 4294901760
    %v1068 = vsub.f32 %v141, %v1067
    %1069 = vmatmul.mubr.f32.gmra.mxu0 %v1068
    %v1070 = vpop.f32.mrf.mxu0
    %v1071 = vadd.f32 %v783, %v1070
    %v1072 = vpop.f32.mrf.mxu0
    %1073 = vmatprep.mubr.f32.mxu0 0.0
    %v1074 = vand.u32 %v144, 4294901760
    %v1075 = vsub.f32 %v144, %v1074
    %1076 = vmatmul.mubr.f32.gmra.mxu0 %v1075
    %v1077 = vpop.f32.mrf.mxu0
    %v1078 = vadd.f32 %v789, %v1077
    %v1079 = vpop.f32.mrf.mxu0
    %1080 = vmatprep.mubr.f32.mxu0 0.0
    %v1081 = vand.u32 %v147, 4294901760
    %v1082 = vsub.f32 %v147, %v1081
    %1083 = vmatmul.mubr.f32.gmra.mxu0 %v1082
    %v1084 = vpop.f32.mrf.mxu0
    %v1085 = vadd.f32 %v795, %v1084
    %v1086 = vpop.f32.mrf.mxu0
    %1087 = vmatprep.mubr.f32.mxu0 0.0
    %v1088 = vand.u32 %v150, 4294901760
    %v1089 = vsub.f32 %v150, %v1088
    %1090 = vmatmul.mubr.f32.gmra.mxu0 %v1089
    %v1091 = vpop.f32.mrf.mxu0
    %v1092 = vadd.f32 %v801, %v1091
    %v1093 = vpop.f32.mrf.mxu0
    %1094 = vdwg.mxu0
    %1095 = vmatprep.subr.mxu0 0.0
    %1096 = vmatpush1.msra.mxu0 0.0
    %1097 = vmatprep.subr.mxu0 0.0
    %1098 = vmatpush1.msra.mxu0 0.0
    %1099 = vmatprep.subr.mxu0 0.0
    %1100 = vmatpush1.msra.mxu0 0.0
    %1101 = vmatprep.subr.mxu0 0.0
    %1102 = vmatpush1.msra.mxu0 0.0
    %1103 = vmatprep.subr.mxu0 0.0
    %1104 = vmatpush1.msra.mxu0 0.0
    %1105 = vmatprep.subr.mxu0 0.0
    %1106 = vmatpush1.msra.mxu0 0.0
    %1107 = vmatprep.subr.mxu0 0.0
    %1108 = vmatpush1.msra.mxu0 0.0
    %1109 = vmatprep.subr.mxu0 0.0
    %1110 = vmatpush1.msra.mxu0 0.0
    %1111 = vmatprep.subr.mxu0 0.0
    %1112 = vmatpush1.msra.mxu0 0.0
    %1113 = vmatprep.subr.mxu0 0.0
    %1114 = vmatpush1.msra.mxu0 0.0
    %1115 = vmatprep.subr.mxu0 0.0
    %1116 = vmatpush1.msra.mxu0 0.0
    %1117 = vmatprep.subr.mxu0 0.0
    %1118 = vmatpush1.msra.mxu0 0.0
    %1119 = vmatprep.subr.mxu0 0.0
    %1120 = vmatpush1.msra.mxu0 0.0
    %1121 = vmatprep.subr.mxu0 0.0
    %1122 = vmatpush1.msra.mxu0 0.0
    %1123 = vmatprep.subr.mxu0 0.0
    %1124 = vmatpush1.msra.mxu0 0.0
    %1125 = vmatprep.subr.mxu0 0.0
    %v1126 = vand.u32 %v154, 4294901760
    %1127 = vmatpush1.msra.mxu0 %v1126
    %1128 = vmatprep.subr.mxu0 0.0
    %1129 = vmatpush2.msra.mxu0 0.0
    %1130 = vmatprep.subr.mxu0 0.0
    %1131 = vmatpush2.msra.mxu0 0.0
    %1132 = vmatprep.subr.mxu0 0.0
    %1133 = vmatpush2.msra.mxu0 0.0
    %1134 = vmatprep.subr.mxu0 0.0
    %1135 = vmatpush2.msra.mxu0 0.0
    %1136 = vmatprep.subr.mxu0 0.0
    %1137 = vmatpush2.msra.mxu0 0.0
    %1138 = vmatprep.subr.mxu0 0.0
    %1139 = vmatpush2.msra.mxu0 0.0
    %1140 = vmatprep.subr.mxu0 0.0
    %1141 = vmatpush2.msra.mxu0 0.0
    %1142 = vmatprep.subr.mxu0 0.0
    %1143 = vmatpush2.msra.mxu0 0.0
    %1144 = vmatprep.subr.mxu0 0.0
    %1145 = vmatpush2.msra.mxu0 0.0
    %1146 = vmatprep.subr.mxu0 0.0
    %1147 = vmatpush2.msra.mxu0 0.0
    %1148 = vmatprep.subr.mxu0 0.0
    %1149 = vmatpush2.msra.mxu0 0.0
    %1150 = vmatprep.subr.mxu0 0.0
    %1151 = vmatpush2.msra.mxu0 0.0
    %1152 = vmatprep.subr.mxu0 0.0
    %1153 = vmatpush2.msra.mxu0 0.0
    %1154 = vmatprep.subr.mxu0 0.0
    %1155 = vmatpush2.msra.mxu0 0.0
    %1156 = vmatprep.subr.mxu0 0.0
    %1157 = vmatpush2.msra.mxu0 0.0
    %1158 = vmatprep.subr.mxu0 0.0
    %1159 = vmatpush2.msra.mxu0 0.0
    %1160 = vmatprep.mubr.f32.mxu0 0.0
    %v1161 = vand.u32 %v57, 4294901760
    %v1162 = vsub.f32 %v57, %v1161
    %v1163 = vand.u32 %v1162, 4294901760
    %1164 = vmatmul.mubr.f32.gmra.mxu0 %v1163
    %v1165 = vpop.f32.mrf.mxu0
    %v1166 = vadd.f32 %v875, %v1165
    %v1167 = vpop.f32.mrf.mxu0
    %1168 = vmatprep.mubr.f32.mxu0 0.0
    %v1169 = vand.u32 %v60, 4294901760
    %v1170 = vsub.f32 %v60, %v1169
    %v1171 = vand.u32 %v1170, 4294901760
    %1172 = vmatmul.mubr.f32.gmra.mxu0 %v1171
    %v1173 = vpop.f32.mrf.mxu0
    %v1174 = vadd.f32 %v882, %v1173
    %v1175 = vpop.f32.mrf.mxu0
    %1176 = vmatprep.mubr.f32.mxu0 0.0
    %v1177 = vand.u32 %v63, 4294901760
    %v1178 = vsub.f32 %v63, %v1177
    %v1179 = vand.u32 %v1178, 4294901760
    %1180 = vmatmul.mubr.f32.gmra.mxu0 %v1179
    %v1181 = vpop.f32.mrf.mxu0
    %v1182 = vadd.f32 %v889, %v1181
    %v1183 = vpop.f32.mrf.mxu0
    %1184 = vmatprep.mubr.f32.mxu0 0.0
    %v1185 = vand.u32 %v66, 4294901760
    %v1186 = vsub.f32 %v66, %v1185
    %v1187 = vand.u32 %v1186, 4294901760
    %1188 = vmatmul.mubr.f32.gmra.mxu0 %v1187
    %v1189 = vpop.f32.mrf.mxu0
    %v1190 = vadd.f32 %v896, %v1189
    %v1191 = vpop.f32.mrf.mxu0
    %1192 = vmatprep.mubr.f32.mxu0 0.0
    %v1193 = vand.u32 %v69, 4294901760
    %v1194 = vsub.f32 %v69, %v1193
    %v1195 = vand.u32 %v1194, 4294901760
    %1196 = vmatmul.mubr.f32.gmra.mxu0 %v1195
    %v1197 = vpop.f32.mrf.mxu0
    %v1198 = vadd.f32 %v903, %v1197
    %v1199 = vpop.f32.mrf.mxu0
    %1200 = vmatprep.mubr.f32.mxu0 0.0
    %v1201 = vand.u32 %v72, 4294901760
    %v1202 = vsub.f32 %v72, %v1201
    %v1203 = vand.u32 %v1202, 4294901760
    %1204 = vmatmul.mubr.f32.gmra.mxu0 %v1203
    %v1205 = vpop.f32.mrf.mxu0
    %v1206 = vadd.f32 %v910, %v1205
    %v1207 = vpop.f32.mrf.mxu0
    %1208 = vmatprep.mubr.f32.mxu0 0.0
    %v1209 = vand.u32 %v75, 4294901760
    %v1210 = vsub.f32 %v75, %v1209
    %v1211 = vand.u32 %v1210, 4294901760
    %1212 = vmatmul.mubr.f32.gmra.mxu0 %v1211
    %v1213 = vpop.f32.mrf.mxu0
    %v1214 = vadd.f32 %v917, %v1213
    %v1215 = vpop.f32.mrf.mxu0
    %1216 = vmatprep.mubr.f32.mxu0 0.0
    %v1217 = vand.u32 %v78, 4294901760
    %v1218 = vsub.f32 %v78, %v1217
    %v1219 = vand.u32 %v1218, 4294901760
    %1220 = vmatmul.mubr.f32.gmra.mxu0 %v1219
    %v1221 = vpop.f32.mrf.mxu0
    %v1222 = vadd.f32 %v924, %v1221
    %v1223 = vpop.f32.mrf.mxu0
    %1224 = vmatprep.mubr.f32.mxu0 0.0
    %v1225 = vand.u32 %v81, 4294901760
    %v1226 = vsub.f32 %v81, %v1225
    %v1227 = vand.u32 %v1226, 4294901760
    %1228 = vmatmul.mubr.f32.gmra.mxu0 %v1227
    %v1229 = vpop.f32.mrf.mxu0
    %v1230 = vadd.f32 %v931, %v1229
    %v1231 = vpop.f32.mrf.mxu0
    %1232 = vmatprep.mubr.f32.mxu0 0.0
    %v1233 = vand.u32 %v84, 4294901760
    %v1234 = vsub.f32 %v84, %v1233
    %v1235 = vand.u32 %v1234, 4294901760
    %1236 = vmatmul.mubr.f32.gmra.mxu0 %v1235
    %v1237 = vpop.f32.mrf.mxu0
    %v1238 = vadd.f32 %v938, %v1237
    %v1239 = vpop.f32.mrf.mxu0
    %1240 = vmatprep.mubr.f32.mxu0 0.0
    %v1241 = vand.u32 %v87, 4294901760
    %v1242 = vsub.f32 %v87, %v1241
    %v1243 = vand.u32 %v1242, 4294901760
    %1244 = vmatmul.mubr.f32.gmra.mxu0 %v1243
    %v1245 = vpop.f32.mrf.mxu0
    %v1246 = vadd.f32 %v945, %v1245
    %v1247 = vpop.f32.mrf.mxu0
    %1248 = vmatprep.mubr.f32.mxu0 0.0
    %v1249 = vand.u32 %v90, 4294901760
    %v1250 = vsub.f32 %v90, %v1249
    %v1251 = vand.u32 %v1250, 4294901760
    %1252 = vmatmul.mubr.f32.gmra.mxu0 %v1251
    %v1253 = vpop.f32.mrf.mxu0
    %v1254 = vadd.f32 %v952, %v1253
    %v1255 = vpop.f32.mrf.mxu0
    %1256 = vmatprep.mubr.f32.mxu0 0.0
    %v1257 = vand.u32 %v93, 4294901760
    %v1258 = vsub.f32 %v93, %v1257
    %v1259 = vand.u32 %v1258, 4294901760
    %1260 = vmatmul.mubr.f32.gmra.mxu0 %v1259
    %v1261 = vpop.f32.mrf.mxu0
    %v1262 = vadd.f32 %v959, %v1261
    %v1263 = vpop.f32.mrf.mxu0
    %1264 = vmatprep.mubr.f32.mxu0 0.0
    %v1265 = vand.u32 %v96, 4294901760
    %v1266 = vsub.f32 %v96, %v1265
    %v1267 = vand.u32 %v1266, 4294901760
    %1268 = vmatmul.mubr.f32.gmra.mxu0 %v1267
    %v1269 = vpop.f32.mrf.mxu0
    %v1270 = vadd.f32 %v966, %v1269
    %v1271 = vpop.f32.mrf.mxu0
    %1272 = vmatprep.mubr.f32.mxu0 0.0
    %v1273 = vand.u32 %v99, 4294901760
    %v1274 = vsub.f32 %v99, %v1273
    %v1275 = vand.u32 %v1274, 4294901760
    %1276 = vmatmul.mubr.f32.gmra.mxu0 %v1275
    %v1277 = vpop.f32.mrf.mxu0
    %v1278 = vadd.f32 %v973, %v1277
    %v1279 = vpop.f32.mrf.mxu0
    %1280 = vmatprep.mubr.f32.mxu0 0.0
    %v1281 = vand.u32 %v102, 4294901760
    %v1282 = vsub.f32 %v102, %v1281
    %v1283 = vand.u32 %v1282, 4294901760
    %1284 = vmatmul.mubr.f32.gmra.mxu0 %v1283
    %v1285 = vpop.f32.mrf.mxu0
    %v1286 = vadd.f32 %v980, %v1285
    %v1287 = vpop.f32.mrf.mxu0
    %1288 = vmatprep.mubr.f32.mxu0 0.0
    %v1289 = vand.u32 %v105, 4294901760
    %v1290 = vsub.f32 %v105, %v1289
    %v1291 = vand.u32 %v1290, 4294901760
    %1292 = vmatmul.mubr.f32.gmra.mxu0 %v1291
    %v1293 = vpop.f32.mrf.mxu0
    %v1294 = vadd.f32 %v987, %v1293
    %v1295 = vpop.f32.mrf.mxu0
    %1296 = vmatprep.mubr.f32.mxu0 0.0
    %v1297 = vand.u32 %v108, 4294901760
    %v1298 = vsub.f32 %v108, %v1297
    %v1299 = vand.u32 %v1298, 4294901760
    %1300 = vmatmul.mubr.f32.gmra.mxu0 %v1299
    %v1301 = vpop.f32.mrf.mxu0
    %v1302 = vadd.f32 %v994, %v1301
    %v1303 = vpop.f32.mrf.mxu0
    %1304 = vmatprep.mubr.f32.mxu0 0.0
    %v1305 = vand.u32 %v111, 4294901760
    %v1306 = vsub.f32 %v111, %v1305
    %v1307 = vand.u32 %v1306, 4294901760
    %1308 = vmatmul.mubr.f32.gmra.mxu0 %v1307
    %v1309 = vpop.f32.mrf.mxu0
    %v1310 = vadd.f32 %v1001, %v1309
    %v1311 = vpop.f32.mrf.mxu0
    %1312 = vmatprep.mubr.f32.mxu0 0.0
    %v1313 = vand.u32 %v114, 4294901760
    %v1314 = vsub.f32 %v114, %v1313
    %v1315 = vand.u32 %v1314, 4294901760
    %1316 = vmatmul.mubr.f32.gmra.mxu0 %v1315
    %v1317 = vpop.f32.mrf.mxu0
    %v1318 = vadd.f32 %v1008, %v1317
    %v1319 = vpop.f32.mrf.mxu0
    %1320 = vmatprep.mubr.f32.mxu0 0.0
    %v1321 = vand.u32 %v117, 4294901760
    %v1322 = vsub.f32 %v117, %v1321
    %v1323 = vand.u32 %v1322, 4294901760
    %1324 = vmatmul.mubr.f32.gmra.mxu0 %v1323
    %v1325 = vpop.f32.mrf.mxu0
    %v1326 = vadd.f32 %v1015, %v1325
    %v1327 = vpop.f32.mrf.mxu0
    %1328 = vmatprep.mubr.f32.mxu0 0.0
    %v1329 = vand.u32 %v120, 4294901760
    %v1330 = vsub.f32 %v120, %v1329
    %v1331 = vand.u32 %v1330, 4294901760
    %1332 = vmatmul.mubr.f32.gmra.mxu0 %v1331
    %v1333 = vpop.f32.mrf.mxu0
    %v1334 = vadd.f32 %v1022, %v1333
    %v1335 = vpop.f32.mrf.mxu0
    %1336 = vmatprep.mubr.f32.mxu0 0.0
    %v1337 = vand.u32 %v123, 4294901760
    %v1338 = vsub.f32 %v123, %v1337
    %v1339 = vand.u32 %v1338, 4294901760
    %1340 = vmatmul.mubr.f32.gmra.mxu0 %v1339
    %v1341 = vpop.f32.mrf.mxu0
    %v1342 = vadd.f32 %v1029, %v1341
    %v1343 = vpop.f32.mrf.mxu0
    %1344 = vmatprep.mubr.f32.mxu0 0.0
    %v1345 = vand.u32 %v126, 4294901760
    %v1346 = vsub.f32 %v126, %v1345
    %v1347 = vand.u32 %v1346, 4294901760
    %1348 = vmatmul.mubr.f32.gmra.mxu0 %v1347
    %v1349 = vpop.f32.mrf.mxu0
    %v1350 = vadd.f32 %v1036, %v1349
    %v1351 = vpop.f32.mrf.mxu0
    %1352 = vmatprep.mubr.f32.mxu0 0.0
    %v1353 = vand.u32 %v129, 4294901760
    %v1354 = vsub.f32 %v129, %v1353
    %v1355 = vand.u32 %v1354, 4294901760
    %1356 = vmatmul.mubr.f32.gmra.mxu0 %v1355
    %v1357 = vpop.f32.mrf.mxu0
    %v1358 = vadd.f32 %v1043, %v1357
    %v1359 = vpop.f32.mrf.mxu0
    %1360 = vmatprep.mubr.f32.mxu0 0.0
    %v1361 = vand.u32 %v132, 4294901760
    %v1362 = vsub.f32 %v132, %v1361
    %v1363 = vand.u32 %v1362, 4294901760
    %1364 = vmatmul.mubr.f32.gmra.mxu0 %v1363
    %v1365 = vpop.f32.mrf.mxu0
    %v1366 = vadd.f32 %v1050, %v1365
    %v1367 = vpop.f32.mrf.mxu0
    %1368 = vmatprep.mubr.f32.mxu0 0.0
    %v1369 = vand.u32 %v135, 4294901760
    %v1370 = vsub.f32 %v135, %v1369
    %v1371 = vand.u32 %v1370, 4294901760
    %1372 = vmatmul.mubr.f32.gmra.mxu0 %v1371
    %v1373 = vpop.f32.mrf.mxu0
    %v1374 = vadd.f32 %v1057, %v1373
    %v1375 = vpop.f32.mrf.mxu0
    %1376 = vmatprep.mubr.f32.mxu0 0.0
    %v1377 = vand.u32 %v138, 4294901760
    %v1378 = vsub.f32 %v138, %v1377
    %v1379 = vand.u32 %v1378, 4294901760
    %1380 = vmatmul.mubr.f32.gmra.mxu0 %v1379
    %v1381 = vpop.f32.mrf.mxu0
    %v1382 = vadd.f32 %v1064, %v1381
    %v1383 = vpop.f32.mrf.mxu0
    %1384 = vmatprep.mubr.f32.mxu0 0.0
    %v1385 = vand.u32 %v141, 4294901760
    %v1386 = vsub.f32 %v141, %v1385
    %v1387 = vand.u32 %v1386, 4294901760
    %1388 = vmatmul.mubr.f32.gmra.mxu0 %v1387
    %v1389 = vpop.f32.mrf.mxu0
    %v1390 = vadd.f32 %v1071, %v1389
    %v1391 = vpop.f32.mrf.mxu0
    %1392 = vmatprep.mubr.f32.mxu0 0.0
    %v1393 = vand.u32 %v144, 4294901760
    %v1394 = vsub.f32 %v144, %v1393
    %v1395 = vand.u32 %v1394, 4294901760
    %1396 = vmatmul.mubr.f32.gmra.mxu0 %v1395
    %v1397 = vpop.f32.mrf.mxu0
    %v1398 = vadd.f32 %v1078, %v1397
    %v1399 = vpop.f32.mrf.mxu0
    %1400 = vmatprep.mubr.f32.mxu0 0.0
    %v1401 = vand.u32 %v147, 4294901760
    %v1402 = vsub.f32 %v147, %v1401
    %v1403 = vand.u32 %v1402, 4294901760
    %1404 = vmatmul.mubr.f32.gmra.mxu0 %v1403
    %v1405 = vpop.f32.mrf.mxu0
    %v1406 = vadd.f32 %v1085, %v1405
    %v1407 = vpop.f32.mrf.mxu0
    %1408 = vmatprep.mubr.f32.mxu0 0.0
    %v1409 = vand.u32 %v150, 4294901760
    %v1410 = vsub.f32 %v150, %v1409
    %v1411 = vand.u32 %v1410, 4294901760
    %1412 = vmatmul.mubr.f32.gmra.mxu0 %v1411
    %v1413 = vpop.f32.mrf.mxu0
    %v1414 = vadd.f32 %v1092, %v1413
    %v1415 = vpop.f32.mrf.mxu0
    %1416 = vdwg.mxu0
    %1417 = vmatprep.subr.mxu0 0.0
    %1418 = vmatpush1.msra.mxu0 0.0
    %1419 = vmatprep.subr.mxu0 0.0
    %1420 = vmatpush1.msra.mxu0 0.0
    %1421 = vmatprep.subr.mxu0 0.0
    %1422 = vmatpush1.msra.mxu0 0.0
    %1423 = vmatprep.subr.mxu0 0.0
    %1424 = vmatpush1.msra.mxu0 0.0
    %1425 = vmatprep.subr.mxu0 0.0
    %1426 = vmatpush1.msra.mxu0 0.0
    %1427 = vmatprep.subr.mxu0 0.0
    %1428 = vmatpush1.msra.mxu0 0.0
    %1429 = vmatprep.subr.mxu0 0.0
    %1430 = vmatpush1.msra.mxu0 0.0
    %1431 = vmatprep.subr.mxu0 0.0
    %1432 = vmatpush1.msra.mxu0 0.0
    %1433 = vmatprep.subr.mxu0 0.0
    %1434 = vmatpush1.msra.mxu0 0.0
    %1435 = vmatprep.subr.mxu0 0.0
    %1436 = vmatpush1.msra.mxu0 0.0
    %1437 = vmatprep.subr.mxu0 0.0
    %1438 = vmatpush1.msra.mxu0 0.0
    %1439 = vmatprep.subr.mxu0 0.0
    %1440 = vmatpush1.msra.mxu0 0.0
    %1441 = vmatprep.subr.mxu0 0.0
    %1442 = vmatpush1.msra.mxu0 0.0
    %1443 = vmatprep.subr.mxu0 0.0
    %1444 = vmatpush1.msra.mxu0 0.0
    %1445 = vmatprep.subr.mxu0 0.0
    %1446 = vmatpush1.msra.mxu0 0.0
    %1447 = vmatprep.subr.mxu0 0.0
    %v1448 = vand.u32 %v154, 4294901760
    %v1449 = vsub.f32 %v154, %v1448
    %v1450 = vand.u32 %v1449, 4294901760
    %1451 = vmatpush1.msra.mxu0 %v1450
    %1452 = vmatprep.subr.mxu0 0.0
    %1453 = vmatpush2.msra.mxu0 0.0
    %1454 = vmatprep.subr.mxu0 0.0
    %1455 = vmatpush2.msra.mxu0 0.0
    %1456 = vmatprep.subr.mxu0 0.0
    %1457 = vmatpush2.msra.mxu0 0.0
    %1458 = vmatprep.subr.mxu0 0.0
    %1459 = vmatpush2.msra.mxu0 0.0
    %1460 = vmatprep.subr.mxu0 0.0
    %1461 = vmatpush2.msra.mxu0 0.0
    %1462 = vmatprep.subr.mxu0 0.0
    %1463 = vmatpush2.msra.mxu0 0.0
    %1464 = vmatprep.subr.mxu0 0.0
    %1465 = vmatpush2.msra.mxu0 0.0
    %1466 = vmatprep.subr.mxu0 0.0
    %1467 = vmatpush2.msra.mxu0 0.0
    %1468 = vmatprep.subr.mxu0 0.0
    %1469 = vmatpush2.msra.mxu0 0.0
    %1470 = vmatprep.subr.mxu0 0.0
    %1471 = vmatpush2.msra.mxu0 0.0
    %1472 = vmatprep.subr.mxu0 0.0
    %1473 = vmatpush2.msra.mxu0 0.0
    %1474 = vmatprep.subr.mxu0 0.0
    %1475 = vmatpush2.msra.mxu0 0.0
    %1476 = vmatprep.subr.mxu0 0.0
    %1477 = vmatpush2.msra.mxu0 0.0
    %1478 = vmatprep.subr.mxu0 0.0
    %1479 = vmatpush2.msra.mxu0 0.0
    %1480 = vmatprep.subr.mxu0 0.0
    %1481 = vmatpush2.msra.mxu0 0.0
    %1482 = vmatprep.subr.mxu0 0.0
    %1483 = vmatpush2.msra.mxu0 0.0
    %1484 = vmatprep.mubr.f32.mxu0 0.0
    %v1485 = vand.u32 %v57, 4294901760
    %1486 = vmatmul.mubr.f32.gmra.mxu0 %v1485
    %v1487 = vpop.f32.mrf.mxu0
    %v1488 = vadd.f32 %v1166, %v1487
    %v1489 = vpop.f32.mrf.mxu0
    %1490 = vmatprep.mubr.f32.mxu0 0.0
    %v1491 = vand.u32 %v60, 4294901760
    %1492 = vmatmul.mubr.f32.gmra.mxu0 %v1491
    %v1493 = vpop.f32.mrf.mxu0
    %v1494 = vadd.f32 %v1174, %v1493
    %v1495 = vpop.f32.mrf.mxu0
    %1496 = vmatprep.mubr.f32.mxu0 0.0
    %v1497 = vand.u32 %v63, 4294901760
    %1498 = vmatmul.mubr.f32.gmra.mxu0 %v1497
    %v1499 = vpop.f32.mrf.mxu0
    %v1500 = vadd.f32 %v1182, %v1499
    %v1501 = vpop.f32.mrf.mxu0
    %1502 = vmatprep.mubr.f32.mxu0 0.0
    %v1503 = vand.u32 %v66, 4294901760
    %1504 = vmatmul.mubr.f32.gmra.mxu0 %v1503
    %v1505 = vpop.f32.mrf.mxu0
    %v1506 = vadd.f32 %v1190, %v1505
    %v1507 = vpop.f32.mrf.mxu0
    %1508 = vmatprep.mubr.f32.mxu0 0.0
    %v1509 = vand.u32 %v69, 4294901760
    %1510 = vmatmul.mubr.f32.gmra.mxu0 %v1509
    %v1511 = vpop.f32.mrf.mxu0
    %v1512 = vadd.f32 %v1198, %v1511
    %v1513 = vpop.f32.mrf.mxu0
    %1514 = vmatprep.mubr.f32.mxu0 0.0
    %v1515 = vand.u32 %v72, 4294901760
    %1516 = vmatmul.mubr.f32.gmra.mxu0 %v1515
    %v1517 = vpop.f32.mrf.mxu0
    %v1518 = vadd.f32 %v1206, %v1517
    %v1519 = vpop.f32.mrf.mxu0
    %1520 = vmatprep.mubr.f32.mxu0 0.0
    %v1521 = vand.u32 %v75, 4294901760
    %1522 = vmatmul.mubr.f32.gmra.mxu0 %v1521
    %v1523 = vpop.f32.mrf.mxu0
    %v1524 = vadd.f32 %v1214, %v1523
    %v1525 = vpop.f32.mrf.mxu0
    %1526 = vmatprep.mubr.f32.mxu0 0.0
    %v1527 = vand.u32 %v78, 4294901760
    %1528 = vmatmul.mubr.f32.gmra.mxu0 %v1527
    %v1529 = vpop.f32.mrf.mxu0
    %v1530 = vadd.f32 %v1222, %v1529
    %v1531 = vpop.f32.mrf.mxu0
    %1532 = vmatprep.mubr.f32.mxu0 0.0
    %v1533 = vand.u32 %v81, 4294901760
    %1534 = vmatmul.mubr.f32.gmra.mxu0 %v1533
    %v1535 = vpop.f32.mrf.mxu0
    %v1536 = vadd.f32 %v1230, %v1535
    %v1537 = vpop.f32.mrf.mxu0
    %1538 = vmatprep.mubr.f32.mxu0 0.0
    %v1539 = vand.u32 %v84, 4294901760
    %1540 = vmatmul.mubr.f32.gmra.mxu0 %v1539
    %v1541 = vpop.f32.mrf.mxu0
    %v1542 = vadd.f32 %v1238, %v1541
    %v1543 = vpop.f32.mrf.mxu0
    %1544 = vmatprep.mubr.f32.mxu0 0.0
    %v1545 = vand.u32 %v87, 4294901760
    %1546 = vmatmul.mubr.f32.gmra.mxu0 %v1545
    %v1547 = vpop.f32.mrf.mxu0
    %v1548 = vadd.f32 %v1246, %v1547
    %v1549 = vpop.f32.mrf.mxu0
    %1550 = vmatprep.mubr.f32.mxu0 0.0
    %v1551 = vand.u32 %v90, 4294901760
    %1552 = vmatmul.mubr.f32.gmra.mxu0 %v1551
    %v1553 = vpop.f32.mrf.mxu0
    %v1554 = vadd.f32 %v1254, %v1553
    %v1555 = vpop.f32.mrf.mxu0
    %1556 = vmatprep.mubr.f32.mxu0 0.0
    %v1557 = vand.u32 %v93, 4294901760
    %1558 = vmatmul.mubr.f32.gmra.mxu0 %v1557
    %v1559 = vpop.f32.mrf.mxu0
    %v1560 = vadd.f32 %v1262, %v1559
    %v1561 = vpop.f32.mrf.mxu0
    %1562 = vmatprep.mubr.f32.mxu0 0.0
    %v1563 = vand.u32 %v96, 4294901760
    %1564 = vmatmul.mubr.f32.gmra.mxu0 %v1563
    %v1565 = vpop.f32.mrf.mxu0
    %v1566 = vadd.f32 %v1270, %v1565
    %v1567 = vpop.f32.mrf.mxu0
    %1568 = vmatprep.mubr.f32.mxu0 0.0
    %v1569 = vand.u32 %v99, 4294901760
    %1570 = vmatmul.mubr.f32.gmra.mxu0 %v1569
    %v1571 = vpop.f32.mrf.mxu0
    %v1572 = vadd.f32 %v1278, %v1571
    %v1573 = vpop.f32.mrf.mxu0
    %1574 = vmatprep.mubr.f32.mxu0 0.0
    %v1575 = vand.u32 %v102, 4294901760
    %1576 = vmatmul.mubr.f32.gmra.mxu0 %v1575
    %v1577 = vpop.f32.mrf.mxu0
    %v1578 = vadd.f32 %v1286, %v1577
    %v1579 = vpop.f32.mrf.mxu0
    %1580 = vmatprep.mubr.f32.mxu0 0.0
    %v1581 = vand.u32 %v105, 4294901760
    %1582 = vmatmul.mubr.f32.gmra.mxu0 %v1581
    %v1583 = vpop.f32.mrf.mxu0
    %v1584 = vadd.f32 %v1294, %v1583
    %v1585 = vpop.f32.mrf.mxu0
    %1586 = vmatprep.mubr.f32.mxu0 0.0
    %v1587 = vand.u32 %v108, 4294901760
    %1588 = vmatmul.mubr.f32.gmra.mxu0 %v1587
    %v1589 = vpop.f32.mrf.mxu0
    %v1590 = vadd.f32 %v1302, %v1589
    %v1591 = vpop.f32.mrf.mxu0
    %1592 = vmatprep.mubr.f32.mxu0 0.0
    %v1593 = vand.u32 %v111, 4294901760
    %1594 = vmatmul.mubr.f32.gmra.mxu0 %v1593
    %v1595 = vpop.f32.mrf.mxu0
    %v1596 = vadd.f32 %v1310, %v1595
    %v1597 = vpop.f32.mrf.mxu0
    %1598 = vmatprep.mubr.f32.mxu0 0.0
    %v1599 = vand.u32 %v114, 4294901760
    %1600 = vmatmul.mubr.f32.gmra.mxu0 %v1599
    %v1601 = vpop.f32.mrf.mxu0
    %v1602 = vadd.f32 %v1318, %v1601
    %v1603 = vpop.f32.mrf.mxu0
    %1604 = vmatprep.mubr.f32.mxu0 0.0
    %v1605 = vand.u32 %v117, 4294901760
    %1606 = vmatmul.mubr.f32.gmra.mxu0 %v1605
    %v1607 = vpop.f32.mrf.mxu0
    %v1608 = vadd.f32 %v1326, %v1607
    %v1609 = vpop.f32.mrf.mxu0
    %1610 = vmatprep.mubr.f32.mxu0 0.0
    %v1611 = vand.u32 %v120, 4294901760
    %1612 = vmatmul.mubr.f32.gmra.mxu0 %v1611
    %v1613 = vpop.f32.mrf.mxu0
    %v1614 = vadd.f32 %v1334, %v1613
    %v1615 = vpop.f32.mrf.mxu0
    %1616 = vmatprep.mubr.f32.mxu0 0.0
    %v1617 = vand.u32 %v123, 4294901760
    %1618 = vmatmul.mubr.f32.gmra.mxu0 %v1617
    %v1619 = vpop.f32.mrf.mxu0
    %v1620 = vadd.f32 %v1342, %v1619
    %v1621 = vpop.f32.mrf.mxu0
    %1622 = vmatprep.mubr.f32.mxu0 0.0
    %v1623 = vand.u32 %v126, 4294901760
    %1624 = vmatmul.mubr.f32.gmra.mxu0 %v1623
    %v1625 = vpop.f32.mrf.mxu0
    %v1626 = vadd.f32 %v1350, %v1625
    %v1627 = vpop.f32.mrf.mxu0
    %1628 = vmatprep.mubr.f32.mxu0 0.0
    %v1629 = vand.u32 %v129, 4294901760
    %1630 = vmatmul.mubr.f32.gmra.mxu0 %v1629
    %v1631 = vpop.f32.mrf.mxu0
    %v1632 = vadd.f32 %v1358, %v1631
    %v1633 = vpop.f32.mrf.mxu0
    %1634 = vmatprep.mubr.f32.mxu0 0.0
    %v1635 = vand.u32 %v132, 4294901760
    %1636 = vmatmul.mubr.f32.gmra.mxu0 %v1635
    %v1637 = vpop.f32.mrf.mxu0
    %v1638 = vadd.f32 %v1366, %v1637
    %v1639 = vpop.f32.mrf.mxu0
    %1640 = vmatprep.mubr.f32.mxu0 0.0
    %v1641 = vand.u32 %v135, 4294901760
    %1642 = vmatmul.mubr.f32.gmra.mxu0 %v1641
    %v1643 = vpop.f32.mrf.mxu0
    %v1644 = vadd.f32 %v1374, %v1643
    %v1645 = vpop.f32.mrf.mxu0
    %1646 = vmatprep.mubr.f32.mxu0 0.0
    %v1647 = vand.u32 %v138, 4294901760
    %1648 = vmatmul.mubr.f32.gmra.mxu0 %v1647
    %v1649 = vpop.f32.mrf.mxu0
    %v1650 = vadd.f32 %v1382, %v1649
    %v1651 = vpop.f32.mrf.mxu0
    %1652 = vmatprep.mubr.f32.mxu0 0.0
    %v1653 = vand.u32 %v141, 4294901760
    %1654 = vmatmul.mubr.f32.gmra.mxu0 %v1653
    %v1655 = vpop.f32.mrf.mxu0
    %v1656 = vadd.f32 %v1390, %v1655
    %v1657 = vpop.f32.mrf.mxu0
    %1658 = vmatprep.mubr.f32.mxu0 0.0
    %v1659 = vand.u32 %v144, 4294901760
    %1660 = vmatmul.mubr.f32.gmra.mxu0 %v1659
    %v1661 = vpop.f32.mrf.mxu0
    %v1662 = vadd.f32 %v1398, %v1661
    %v1663 = vpop.f32.mrf.mxu0
    %1664 = vmatprep.mubr.f32.mxu0 0.0
    %v1665 = vand.u32 %v147, 4294901760
    %1666 = vmatmul.mubr.f32.gmra.mxu0 %v1665
    %v1667 = vpop.f32.mrf.mxu0
    %v1668 = vadd.f32 %v1406, %v1667
    %v1669 = vpop.f32.mrf.mxu0
    %1670 = vmatprep.mubr.f32.mxu0 0.0
    %v1671 = vand.u32 %v150, 4294901760
    %1672 = vmatmul.mubr.f32.gmra.mxu0 %v1671
    %v1673 = vpop.f32.mrf.mxu0
    %v1674 = vadd.f32 %v1414, %v1673
    %v1675 = vpop.f32.mrf.mxu0
    %1676 = vdwg.mxu0
    %1677 = vmatprep.subr.mxu0 0.0
    %1678 = vmatpush1.msra.mxu0 0.0
    %1679 = vmatprep.subr.mxu0 0.0
    %1680 = vmatpush1.msra.mxu0 0.0
    %1681 = vmatprep.subr.mxu0 0.0
    %1682 = vmatpush1.msra.mxu0 0.0
    %1683 = vmatprep.subr.mxu0 0.0
    %1684 = vmatpush1.msra.mxu0 0.0
    %1685 = vmatprep.subr.mxu0 0.0
    %1686 = vmatpush1.msra.mxu0 0.0
    %1687 = vmatprep.subr.mxu0 0.0
    %1688 = vmatpush1.msra.mxu0 0.0
    %1689 = vmatprep.subr.mxu0 0.0
    %1690 = vmatpush1.msra.mxu0 0.0
    %1691 = vmatprep.subr.mxu0 0.0
    %1692 = vmatpush1.msra.mxu0 0.0
    %1693 = vmatprep.subr.mxu0 0.0
    %1694 = vmatpush1.msra.mxu0 0.0
    %1695 = vmatprep.subr.mxu0 0.0
    %1696 = vmatpush1.msra.mxu0 0.0
    %1697 = vmatprep.subr.mxu0 0.0
    %1698 = vmatpush1.msra.mxu0 0.0
    %1699 = vmatprep.subr.mxu0 0.0
    %1700 = vmatpush1.msra.mxu0 0.0
    %1701 = vmatprep.subr.mxu0 0.0
    %1702 = vmatpush1.msra.mxu0 0.0
    %1703 = vmatprep.subr.mxu0 0.0
    %1704 = vmatpush1.msra.mxu0 0.0
    %1705 = vmatprep.subr.mxu0 0.0
    %1706 = vmatpush1.msra.mxu0 0.0
    %1707 = vmatprep.subr.mxu0 0.0
    %v1708 = vand.u32 %v154, 4294901760
    %1709 = vmatpush1.msra.mxu0 %v1708
    %1710 = vmatprep.subr.mxu0 0.0
    %1711 = vmatpush2.msra.mxu0 0.0
    %1712 = vmatprep.subr.mxu0 0.0
    %1713 = vmatpush2.msra.mxu0 0.0
    %1714 = vmatprep.subr.mxu0 0.0
    %1715 = vmatpush2.msra.mxu0 0.0
    %1716 = vmatprep.subr.mxu0 0.0
    %1717 = vmatpush2.msra.mxu0 0.0
    %1718 = vmatprep.subr.mxu0 0.0
    %1719 = vmatpush2.msra.mxu0 0.0
    %1720 = vmatprep.subr.mxu0 0.0
    %1721 = vmatpush2.msra.mxu0 0.0
    %1722 = vmatprep.subr.mxu0 0.0
    %1723 = vmatpush2.msra.mxu0 0.0
    %1724 = vmatprep.subr.mxu0 0.0
    %1725 = vmatpush2.msra.mxu0 0.0
    %1726 = vmatprep.subr.mxu0 0.0
    %1727 = vmatpush2.msra.mxu0 0.0
    %1728 = vmatprep.subr.mxu0 0.0
    %1729 = vmatpush2.msra.mxu0 0.0
    %1730 = vmatprep.subr.mxu0 0.0
    %1731 = vmatpush2.msra.mxu0 0.0
    %1732 = vmatprep.subr.mxu0 0.0
    %1733 = vmatpush2.msra.mxu0 0.0
    %1734 = vmatprep.subr.mxu0 0.0
    %1735 = vmatpush2.msra.mxu0 0.0
    %1736 = vmatprep.subr.mxu0 0.0
    %1737 = vmatpush2.msra.mxu0 0.0
    %1738 = vmatprep.subr.mxu0 0.0
    %1739 = vmatpush2.msra.mxu0 0.0
    %1740 = vmatprep.subr.mxu0 0.0
    %1741 = vmatpush2.msra.mxu0 0.0
    %1742 = vmatprep.mubr.f32.mxu0 0.0
    %v1743 = vand.u32 %v57, 4294901760
    %1744 = vmatmul.mubr.f32.gmra.mxu0 %v1743
    %v1745 = vpop.f32.mrf.mxu0
    %v1746 = vadd.f32 %v1488, %v1745
    %v1747 = vpop.f32.mrf.mxu0
    %1748 = vmatprep.mubr.f32.mxu0 0.0
    %v1749 = vand.u32 %v60, 4294901760
    %1750 = vmatmul.mubr.f32.gmra.mxu0 %v1749
    %v1751 = vpop.f32.mrf.mxu0
    %v1752 = vadd.f32 %v1494, %v1751
    %v1753 = vpop.f32.mrf.mxu0
    %1754 = vmatprep.mubr.f32.mxu0 0.0
    %v1755 = vand.u32 %v63, 4294901760
    %1756 = vmatmul.mubr.f32.gmra.mxu0 %v1755
    %v1757 = vpop.f32.mrf.mxu0
    %v1758 = vadd.f32 %v1500, %v1757
    %v1759 = vpop.f32.mrf.mxu0
    %1760 = vmatprep.mubr.f32.mxu0 0.0
    %v1761 = vand.u32 %v66, 4294901760
    %1762 = vmatmul.mubr.f32.gmra.mxu0 %v1761
    %v1763 = vpop.f32.mrf.mxu0
    %v1764 = vadd.f32 %v1506, %v1763
    %v1765 = vpop.f32.mrf.mxu0
    %1766 = vmatprep.mubr.f32.mxu0 0.0
    %v1767 = vand.u32 %v69, 4294901760
    %1768 = vmatmul.mubr.f32.gmra.mxu0 %v1767
    %v1769 = vpop.f32.mrf.mxu0
    %v1770 = vadd.f32 %v1512, %v1769
    %v1771 = vpop.f32.mrf.mxu0
    %1772 = vmatprep.mubr.f32.mxu0 0.0
    %v1773 = vand.u32 %v72, 4294901760
    %1774 = vmatmul.mubr.f32.gmra.mxu0 %v1773
    %v1775 = vpop.f32.mrf.mxu0
    %v1776 = vadd.f32 %v1518, %v1775
    %v1777 = vpop.f32.mrf.mxu0
    %1778 = vmatprep.mubr.f32.mxu0 0.0
    %v1779 = vand.u32 %v75, 4294901760
    %1780 = vmatmul.mubr.f32.gmra.mxu0 %v1779
    %v1781 = vpop.f32.mrf.mxu0
    %v1782 = vadd.f32 %v1524, %v1781
    %v1783 = vpop.f32.mrf.mxu0
    %1784 = vmatprep.mubr.f32.mxu0 0.0
    %v1785 = vand.u32 %v78, 4294901760
    %1786 = vmatmul.mubr.f32.gmra.mxu0 %v1785
    %v1787 = vpop.f32.mrf.mxu0
    %v1788 = vadd.f32 %v1530, %v1787
    %v1789 = vpop.f32.mrf.mxu0
    %1790 = vmatprep.mubr.f32.mxu0 0.0
    %v1791 = vand.u32 %v81, 4294901760
    %1792 = vmatmul.mubr.f32.gmra.mxu0 %v1791
    %v1793 = vpop.f32.mrf.mxu0
    %v1794 = vadd.f32 %v1536, %v1793
    %v1795 = vpop.f32.mrf.mxu0
    %1796 = vmatprep.mubr.f32.mxu0 0.0
    %v1797 = vand.u32 %v84, 4294901760
    %1798 = vmatmul.mubr.f32.gmra.mxu0 %v1797
    %v1799 = vpop.f32.mrf.mxu0
    %v1800 = vadd.f32 %v1542, %v1799
    %v1801 = vpop.f32.mrf.mxu0
    %1802 = vmatprep.mubr.f32.mxu0 0.0
    %v1803 = vand.u32 %v87, 4294901760
    %1804 = vmatmul.mubr.f32.gmra.mxu0 %v1803
    %v1805 = vpop.f32.mrf.mxu0
    %v1806 = vadd.f32 %v1548, %v1805
    %v1807 = vpop.f32.mrf.mxu0
    %1808 = vmatprep.mubr.f32.mxu0 0.0
    %v1809 = vand.u32 %v90, 4294901760
    %1810 = vmatmul.mubr.f32.gmra.mxu0 %v1809
    %v1811 = vpop.f32.mrf.mxu0
    %v1812 = vadd.f32 %v1554, %v1811
    %v1813 = vpop.f32.mrf.mxu0
    %1814 = vmatprep.mubr.f32.mxu0 0.0
    %v1815 = vand.u32 %v93, 4294901760
    %1816 = vmatmul.mubr.f32.gmra.mxu0 %v1815
    %v1817 = vpop.f32.mrf.mxu0
    %v1818 = vadd.f32 %v1560, %v1817
    %v1819 = vpop.f32.mrf.mxu0
    %1820 = vmatprep.mubr.f32.mxu0 0.0
    %v1821 = vand.u32 %v96, 4294901760
    %1822 = vmatmul.mubr.f32.gmra.mxu0 %v1821
    %v1823 = vpop.f32.mrf.mxu0
    %v1824 = vadd.f32 %v1566, %v1823
    %v1825 = vpop.f32.mrf.mxu0
    %1826 = vmatprep.mubr.f32.mxu0 0.0
    %v1827 = vand.u32 %v99, 4294901760
    %1828 = vmatmul.mubr.f32.gmra.mxu0 %v1827
    %v1829 = vpop.f32.mrf.mxu0
    %v1830 = vadd.f32 %v1572, %v1829
    %v1831 = vpop.f32.mrf.mxu0
    %1832 = vmatprep.mubr.f32.mxu0 0.0
    %v1833 = vand.u32 %v102, 4294901760
    %1834 = vmatmul.mubr.f32.gmra.mxu0 %v1833
    %v1835 = vpop.f32.mrf.mxu0
    %v1836 = vadd.f32 %v1578, %v1835
    %v1837 = vpop.f32.mrf.mxu0
    %1838 = vmatprep.mubr.f32.mxu0 0.0
    %v1839 = vand.u32 %v105, 4294901760
    %1840 = vmatmul.mubr.f32.gmra.mxu0 %v1839
    %v1841 = vpop.f32.mrf.mxu0
    %v1842 = vadd.f32 %v1584, %v1841
    %v1843 = vpop.f32.mrf.mxu0
    %1844 = vmatprep.mubr.f32.mxu0 0.0
    %v1845 = vand.u32 %v108, 4294901760
    %1846 = vmatmul.mubr.f32.gmra.mxu0 %v1845
    %v1847 = vpop.f32.mrf.mxu0
    %v1848 = vadd.f32 %v1590, %v1847
    %v1849 = vpop.f32.mrf.mxu0
    %1850 = vmatprep.mubr.f32.mxu0 0.0
    %v1851 = vand.u32 %v111, 4294901760
    %1852 = vmatmul.mubr.f32.gmra.mxu0 %v1851
    %v1853 = vpop.f32.mrf.mxu0
    %v1854 = vadd.f32 %v1596, %v1853
    %v1855 = vpop.f32.mrf.mxu0
    %1856 = vmatprep.mubr.f32.mxu0 0.0
    %v1857 = vand.u32 %v114, 4294901760
    %1858 = vmatmul.mubr.f32.gmra.mxu0 %v1857
    %v1859 = vpop.f32.mrf.mxu0
    %v1860 = vadd.f32 %v1602, %v1859
    %v1861 = vpop.f32.mrf.mxu0
    %1862 = vmatprep.mubr.f32.mxu0 0.0
    %v1863 = vand.u32 %v117, 4294901760
    %1864 = vmatmul.mubr.f32.gmra.mxu0 %v1863
    %v1865 = vpop.f32.mrf.mxu0
    %v1866 = vadd.f32 %v1608, %v1865
    %v1867 = vpop.f32.mrf.mxu0
    %1868 = vmatprep.mubr.f32.mxu0 0.0
    %v1869 = vand.u32 %v120, 4294901760
    %1870 = vmatmul.mubr.f32.gmra.mxu0 %v1869
    %v1871 = vpop.f32.mrf.mxu0
    %v1872 = vadd.f32 %v1614, %v1871
    %v1873 = vpop.f32.mrf.mxu0
    %1874 = vmatprep.mubr.f32.mxu0 0.0
    %v1875 = vand.u32 %v123, 4294901760
    %1876 = vmatmul.mubr.f32.gmra.mxu0 %v1875
    %v1877 = vpop.f32.mrf.mxu0
    %v1878 = vadd.f32 %v1620, %v1877
    %v1879 = vpop.f32.mrf.mxu0
    %1880 = vmatprep.mubr.f32.mxu0 0.0
    %v1881 = vand.u32 %v126, 4294901760
    %1882 = vmatmul.mubr.f32.gmra.mxu0 %v1881
    %v1883 = vpop.f32.mrf.mxu0
    %v1884 = vadd.f32 %v1626, %v1883
    %v1885 = vpop.f32.mrf.mxu0
    %1886 = vmatprep.mubr.f32.mxu0 0.0
    %v1887 = vand.u32 %v129, 4294901760
    %1888 = vmatmul.mubr.f32.gmra.mxu0 %v1887
    %v1889 = vpop.f32.mrf.mxu0
    %v1890 = vadd.f32 %v1632, %v1889
    %v1891 = vpop.f32.mrf.mxu0
    %1892 = vmatprep.mubr.f32.mxu0 0.0
    %v1893 = vand.u32 %v132, 4294901760
    %1894 = vmatmul.mubr.f32.gmra.mxu0 %v1893
    %v1895 = vpop.f32.mrf.mxu0
    %v1896 = vadd.f32 %v1638, %v1895
    %v1897 = vpop.f32.mrf.mxu0
    %1898 = vmatprep.mubr.f32.mxu0 0.0
    %v1899 = vand.u32 %v135, 4294901760
    %1900 = vmatmul.mubr.f32.gmra.mxu0 %v1899
    %v1901 = vpop.f32.mrf.mxu0
    %v1902 = vadd.f32 %v1644, %v1901
    %v1903 = vpop.f32.mrf.mxu0
    %1904 = vmatprep.mubr.f32.mxu0 0.0
    %v1905 = vand.u32 %v138, 4294901760
    %1906 = vmatmul.mubr.f32.gmra.mxu0 %v1905
    %v1907 = vpop.f32.mrf.mxu0
    %v1908 = vadd.f32 %v1650, %v1907
    %v1909 = vpop.f32.mrf.mxu0
    %1910 = vmatprep.mubr.f32.mxu0 0.0
    %v1911 = vand.u32 %v141, 4294901760
    %1912 = vmatmul.mubr.f32.gmra.mxu0 %v1911
    %v1913 = vpop.f32.mrf.mxu0
    %v1914 = vadd.f32 %v1656, %v1913
    %v1915 = vpop.f32.mrf.mxu0
    %1916 = vmatprep.mubr.f32.mxu0 0.0
    %v1917 = vand.u32 %v144, 4294901760
    %1918 = vmatmul.mubr.f32.gmra.mxu0 %v1917
    %v1919 = vpop.f32.mrf.mxu0
    %v1920 = vadd.f32 %v1662, %v1919
    %v1921 = vpop.f32.mrf.mxu0
    %1922 = vmatprep.mubr.f32.mxu0 0.0
    %v1923 = vand.u32 %v147, 4294901760
    %1924 = vmatmul.mubr.f32.gmra.mxu0 %v1923
    %v1925 = vpop.f32.mrf.mxu0
    %v1926 = vadd.f32 %v1668, %v1925
    %v1927 = vpop.f32.mrf.mxu0
    %1928 = vmatprep.mubr.f32.mxu0 0.0
    %v1929 = vand.u32 %v150, 4294901760
    %1930 = vmatmul.mubr.f32.gmra.mxu0 %v1929
    %v1931 = vpop.f32.mrf.mxu0
    %v1932 = vadd.f32 %v1674, %v1931
    %v1933 = vpop.f32.mrf.mxu0
    %1934 = vdwg.mxu0
    %v1935 = vand.u32 2147483647, %v1746
    %vm1936 = vcmp.le.f32.partialorder %v1935, 0.7853982
    %vm1937 = vcmp.lt.s32.totalorder %v1746, 0
    %v1938 = vand.u32 %v1746, 2139095040
    %v1939 = vshrl.u32 %v1938, 23
    %v1940 = vsub.s32 %v1939, 127
    %v1941 = vand.u32 2147483647, %v1746
    %v1942 = vand.u32 %v1941, 8388607
    %v1943 = vor.u32 %v1942, 8388608
    %v1944 = vsub.s32 0, %v1943
    %v1945 = vadd.s32 %v1940, 1
    %vm1946 = vcmp.gt.s32.totalorder %v1945, 0
    %v1947 = vsel %vm1946, %v1945, 0
    %v1948 = vshrl.u32 %v1947, 5
    %v1949 = vand.u32 %v1947, 31
    %v1950 = vsub.s32 32, %v1949
    %v1951 = vshrl.u32 683565275, %v1950
    %v1952 = vshll.u32 683565275, %v1949
    %v1953 = vshrl.u32 2475754826, %v1950
    %v1954 = vor.u32 %v1952, %v1953
    %v1955 = vshll.u32 2475754826, %v1949
    %v1956 = vshrl.u32 2131351028, %v1950
    %v1957 = vor.u32 %v1955, %v1956
    %v1958 = vshll.u32 2131351028, %v1949
    %v1959 = vshrl.u32 2102212464, %v1950
    %v1960 = vor.u32 %v1958, %v1959
    %v1961 = vshll.u32 2102212464, %v1949
    %v1962 = vshrl.u32 920167782, %v1950
    %v1963 = vor.u32 %v1961, %v1962
    %v1964 = vshll.u32 920167782, %v1949
    %v1965 = vshrl.u32 1326507024, %v1950
    %v1966 = vor.u32 %v1964, %v1965
    %vm1967 = vcmp.lt.s32.totalorder %v1948, 1
    %vm1968 = vcmp.lt.s32.totalorder %v1948, 2
    %vm1969 = vcmp.lt.s32.totalorder %v1948, 3
    %vm1970 = vcmp.lt.s32.totalorder %v1948, 4
    %v1971 = vsel %vm1967, %v1951, %v1954
    %v1972 = vsel %vm1970, %v1960, 2102212464
    %v1973 = vsel %vm1969, %v1957, %v1972
    %v1974 = vsel %vm1968, %v1971, %v1973
    %v1975 = vsel %vm1967, %v1954, %v1957
    %v1976 = vsel %vm1970, %v1963, 920167782
    %v1977 = vsel %vm1969, %v1960, %v1976
    %v1978 = vsel %vm1968, %v1975, %v1977
    %v1979 = vsel %vm1967, %v1957, %v1960
    %v1980 = vsel %vm1970, %v1966, 1326507024
    %v1981 = vsel %vm1969, %v1963, %v1980
    %v1982 = vsel %vm1968, %v1979, %v1981
    %v1983 = vshll.u32 %v1943, 8
    %v1984 = vmul.u32.u64.compose %v1983, %v1982
    %v1985 = vextract.low.u32 %v1984
    %v1986 = vextract.high.u32 %v1984
    %v1987 = vmul.u32.u64.compose %v1983, %v1978
    %v1988 = vextract.low.u32 %v1987
    %v1989 = vextract.high.u32 %v1987
    %v1990 = vmul.u32 %v1983, %v1974
    %v1991 = vadd.s32 %v1986, %v1988
    %vm1992 = vc.u32 %v1986, %v1988
    %v1993 = vadd.s32 %v1989, 1
    %v1994 = vsel %vm1992, %v1993, %v1989
    %v1995 = vadd.s32 %v1990, %v1994
    %v1996 = vadd.s32 %v1995, 536870912
    %v1997 = vshrl.u32 %v1996, 30
    %v1998 = vshll.u32 %v1997, 30
    %v1999 = vsub.s32 %v1995, %v1998
    %vm2000 = vcmp.lt.s32.totalorder %v1999, 0
    %v2001 = vsub.s32 0, %v1999
    %v2002 = vsel %vm2000, %v2001, %v1999
    %v2003 = vclz %v2002
    %v2004 = vsub.s32 %v2003, 2
    %vm2005 = vcmp.gt.s32.totalorder 0, %v2004
    %v2006 = vsel %vm2005, 0, %v2004
    %v2007 = vsub.s32 32, %v2006
    %v2008 = vshll.u32 %v1999, %v2006
    %v2009 = vshrl.u32 %v1991, %v2007
    %v2010 = vor.u32 %v2008, %v2009
    %v2011 = vsub.s32 4294967266, %v2006
    %v2012 = vadd.s32 %v2011, 127
    %v2013 = vshll.u32 %v2012, 23
    %v2014 = vor.u32 4788187, %v2013
    %v2015 = vand.u32 2147483647, %v2014
    %v2017 = vcvt.s32.f32 %v2010
    %v2018 = vmul.f32 %v2017, %v2015
    %v2019 = vxor.u32 %v2018, 2147483648
    %v2020 = vsel %vm1937, %v2019, %v2018
    %v2021 = vsub.s32 4, %v1997
    %v2022 = vsel %vm1937, %v2021, %v1997
    %v2023 = vsel %vm1936, %v1746, %v2020
    %v2024 = vsel %vm1936, 0, %v2022
    %v2025 = vcosq.f32.pop %v2023
    %v2026 = vsinq.f32.pop %v2023
    %vm2027 = vweird.f32 %v1746
    %v2028 = vadd.s32 %v2024, 3
    %v2029 = vand.u32 %v2028, 3
    %vm2030 = vcmp.lt.s32.totalorder %v2029, 2
    %vm2031 = vcmp.eq.s32.totalorder %v2029, 0
    %v2032 = vxor.u32 %v2026, 2147483648
    %v2033 = vsel %vm2031, %v2025, %v2032
    %vm2034 = vcmp.eq.s32.totalorder %v2029, 2
    %v2035 = vxor.u32 %v2025, 2147483648
    %v2036 = vsel %vm2034, %v2035, %v2026
    %v2037 = vsel %vm2030, %v2033, %v2036
    %v2038 = vsel %vm2027, nan, %v2037
    %v2039 = vand.u32 2147483647, %v1752
    %vm2040 = vcmp.le.f32.partialorder %v2039, 0.7853982
    %vm2041 = vcmp.lt.s32.totalorder %v1752, 0
    %v2042 = vand.u32 %v1752, 2139095040
    %v2043 = vshrl.u32 %v2042, 23
    %v2044 = vsub.s32 %v2043, 127
    %v2045 = vand.u32 2147483647, %v1752
    %v2046 = vand.u32 %v2045, 8388607
    %v2047 = vor.u32 %v2046, 8388608
    %v2048 = vsub.s32 0, %v2047
    %v2049 = vadd.s32 %v2044, 1
    %vm2050 = vcmp.gt.s32.totalorder %v2049, 0
    %v2051 = vsel %vm2050, %v2049, 0
    %v2052 = vshrl.u32 %v2051, 5
    %v2053 = vand.u32 %v2051, 31
    %v2054 = vsub.s32 32, %v2053
    %v2055 = vshrl.u32 683565275, %v2054
    %v2056 = vshll.u32 683565275, %v2053
    %v2057 = vshrl.u32 2475754826, %v2054
    %v2058 = vor.u32 %v2056, %v2057
    %v2059 = vshll.u32 2475754826, %v2053
    %v2060 = vshrl.u32 2131351028, %v2054
    %v2061 = vor.u32 %v2059, %v2060
    %v2062 = vshll.u32 2131351028, %v2053
    %v2063 = vshrl.u32 2102212464, %v2054
    %v2064 = vor.u32 %v2062, %v2063
    %v2065 = vshll.u32 2102212464, %v2053
    %v2066 = vshrl.u32 920167782, %v2054
    %v2067 = vor.u32 %v2065, %v2066
    %v2068 = vshll.u32 920167782, %v2053
    %v2069 = vshrl.u32 1326507024, %v2054
    %v2070 = vor.u32 %v2068, %v2069
    %vm2071 = vcmp.lt.s32.totalorder %v2052, 1
    %vm2072 = vcmp.lt.s32.totalorder %v2052, 2
    %vm2073 = vcmp.lt.s32.totalorder %v2052, 3
    %vm2074 = vcmp.lt.s32.totalorder %v2052, 4
    %v2075 = vsel %vm2071, %v2055, %v2058
    %v2076 = vsel %vm2074, %v2064, 2102212464
    %v2077 = vsel %vm2073, %v2061, %v2076
    %v2078 = vsel %vm2072, %v2075, %v2077
    %v2079 = vsel %vm2071, %v2058, %v2061
    %v2080 = vsel %vm2074, %v2067, 920167782
    %v2081 = vsel %vm2073, %v2064, %v2080
    %v2082 = vsel %vm2072, %v2079, %v2081
    %v2083 = vsel %vm2071, %v2061, %v2064
    %v2084 = vsel %vm2074, %v2070, 1326507024
    %v2085 = vsel %vm2073, %v2067, %v2084
    %v2086 = vsel %vm2072, %v2083, %v2085
    %v2087 = vshll.u32 %v2047, 8
    %v2088 = vmul.u32.u64.compose %v2087, %v2086
    %v2089 = vextract.low.u32 %v2088
    %v2090 = vextract.high.u32 %v2088
    %v2091 = vmul.u32.u64.compose %v2087, %v2082
    %v2092 = vextract.low.u32 %v2091
    %v2093 = vextract.high.u32 %v2091
    %v2094 = vmul.u32 %v2087, %v2078
    %v2095 = vadd.s32 %v2090, %v2092
    %vm2096 = vc.u32 %v2090, %v2092
    %v2097 = vadd.s32 %v2093, 1
    %v2098 = vsel %vm2096, %v2097, %v2093
    %v2099 = vadd.s32 %v2094, %v2098
    %v2100 = vadd.s32 %v2099, 536870912
    %v2101 = vshrl.u32 %v2100, 30
    %v2102 = vshll.u32 %v2101, 30
    %v2103 = vsub.s32 %v2099, %v2102
    %vm2104 = vcmp.lt.s32.totalorder %v2103, 0
    %v2105 = vsub.s32 0, %v2103
    %v2106 = vsel %vm2104, %v2105, %v2103
    %v2107 = vclz %v2106
    %v2108 = vsub.s32 %v2107, 2
    %vm2109 = vcmp.gt.s32.totalorder 0, %v2108
    %v2110 = vsel %vm2109, 0, %v2108
    %v2111 = vsub.s32 32, %v2110
    %v2112 = vshll.u32 %v2103, %v2110
    %v2113 = vshrl.u32 %v2095, %v2111
    %v2114 = vor.u32 %v2112, %v2113
    %v2115 = vsub.s32 4294967266, %v2110
    %v2116 = vadd.s32 %v2115, 127
    %v2117 = vshll.u32 %v2116, 23
    %v2118 = vor.u32 4788187, %v2117
    %v2119 = vand.u32 2147483647, %v2118
    %v2121 = vcvt.s32.f32 %v2114
    %v2122 = vmul.f32 %v2121, %v2119
    %v2123 = vxor.u32 %v2122, 2147483648
    %v2124 = vsel %vm2041, %v2123, %v2122
    %v2125 = vsub.s32 4, %v2101
    %v2126 = vsel %vm2041, %v2125, %v2101
    %v2127 = vsel %vm2040, %v1752, %v2124
    %v2128 = vsel %vm2040, 0, %v2126
    %v2129 = vcosq.f32.pop %v2127
    %v2130 = vsinq.f32.pop %v2127
    %vm2131 = vweird.f32 %v1752
    %v2132 = vadd.s32 %v2128, 3
    %v2133 = vand.u32 %v2132, 3
    %vm2134 = vcmp.lt.s32.totalorder %v2133, 2
    %vm2135 = vcmp.eq.s32.totalorder %v2133, 0
    %v2136 = vxor.u32 %v2130, 2147483648
    %v2137 = vsel %vm2135, %v2129, %v2136
    %vm2138 = vcmp.eq.s32.totalorder %v2133, 2
    %v2139 = vxor.u32 %v2129, 2147483648
    %v2140 = vsel %vm2138, %v2139, %v2130
    %v2141 = vsel %vm2134, %v2137, %v2140
    %v2142 = vsel %vm2131, nan, %v2141
    %v2143 = vand.u32 2147483647, %v1758
    %vm2144 = vcmp.le.f32.partialorder %v2143, 0.7853982
    %vm2145 = vcmp.lt.s32.totalorder %v1758, 0
    %v2146 = vand.u32 %v1758, 2139095040
    %v2147 = vshrl.u32 %v2146, 23
    %v2148 = vsub.s32 %v2147, 127
    %v2149 = vand.u32 2147483647, %v1758
    %v2150 = vand.u32 %v2149, 8388607
    %v2151 = vor.u32 %v2150, 8388608
    %v2152 = vsub.s32 0, %v2151
    %v2153 = vadd.s32 %v2148, 1
    %vm2154 = vcmp.gt.s32.totalorder %v2153, 0
    %v2155 = vsel %vm2154, %v2153, 0
    %v2156 = vshrl.u32 %v2155, 5
    %v2157 = vand.u32 %v2155, 31
    %v2158 = vsub.s32 32, %v2157
    %v2159 = vshrl.u32 683565275, %v2158
    %v2160 = vshll.u32 683565275, %v2157
    %v2161 = vshrl.u32 2475754826, %v2158
    %v2162 = vor.u32 %v2160, %v2161
    %v2163 = vshll.u32 2475754826, %v2157
    %v2164 = vshrl.u32 2131351028, %v2158
    %v2165 = vor.u32 %v2163, %v2164
    %v2166 = vshll.u32 2131351028, %v2157
    %v2167 = vshrl.u32 2102212464, %v2158
    %v2168 = vor.u32 %v2166, %v2167
    %v2169 = vshll.u32 2102212464, %v2157
    %v2170 = vshrl.u32 920167782, %v2158
    %v2171 = vor.u32 %v2169, %v2170
    %v2172 = vshll.u32 920167782, %v2157
    %v2173 = vshrl.u32 1326507024, %v2158
    %v2174 = vor.u32 %v2172, %v2173
    %vm2175 = vcmp.lt.s32.totalorder %v2156, 1
    %vm2176 = vcmp.lt.s32.totalorder %v2156, 2
    %vm2177 = vcmp.lt.s32.totalorder %v2156, 3
    %vm2178 = vcmp.lt.s32.totalorder %v2156, 4
    %v2179 = vsel %vm2175, %v2159, %v2162
    %v2180 = vsel %vm2178, %v2168, 2102212464
    %v2181 = vsel %vm2177, %v2165, %v2180
    %v2182 = vsel %vm2176, %v2179, %v2181
    %v2183 = vsel %vm2175, %v2162, %v2165
    %v2184 = vsel %vm2178, %v2171, 920167782
    %v2185 = vsel %vm2177, %v2168, %v2184
    %v2186 = vsel %vm2176, %v2183, %v2185
    %v2187 = vsel %vm2175, %v2165, %v2168
    %v2188 = vsel %vm2178, %v2174, 1326507024
    %v2189 = vsel %vm2177, %v2171, %v2188
    %v2190 = vsel %vm2176, %v2187, %v2189
    %v2191 = vshll.u32 %v2151, 8
    %v2192 = vmul.u32.u64.compose %v2191, %v2190
    %v2193 = vextract.low.u32 %v2192
    %v2194 = vextract.high.u32 %v2192
    %v2195 = vmul.u32.u64.compose %v2191, %v2186
    %v2196 = vextract.low.u32 %v2195
    %v2197 = vextract.high.u32 %v2195
    %v2198 = vmul.u32 %v2191, %v2182
    %v2199 = vadd.s32 %v2194, %v2196
    %vm2200 = vc.u32 %v2194, %v2196
    %v2201 = vadd.s32 %v2197, 1
    %v2202 = vsel %vm2200, %v2201, %v2197
    %v2203 = vadd.s32 %v2198, %v2202
    %v2204 = vadd.s32 %v2203, 536870912
    %v2205 = vshrl.u32 %v2204, 30
    %v2206 = vshll.u32 %v2205, 30
    %v2207 = vsub.s32 %v2203, %v2206
    %vm2208 = vcmp.lt.s32.totalorder %v2207, 0
    %v2209 = vsub.s32 0, %v2207
    %v2210 = vsel %vm2208, %v2209, %v2207
    %v2211 = vclz %v2210
    %v2212 = vsub.s32 %v2211, 2
    %vm2213 = vcmp.gt.s32.totalorder 0, %v2212
    %v2214 = vsel %vm2213, 0, %v2212
    %v2215 = vsub.s32 32, %v2214
    %v2216 = vshll.u32 %v2207, %v2214
    %v2217 = vshrl.u32 %v2199, %v2215
    %v2218 = vor.u32 %v2216, %v2217
    %v2219 = vsub.s32 4294967266, %v2214
    %v2220 = vadd.s32 %v2219, 127
    %v2221 = vshll.u32 %v2220, 23
    %v2222 = vor.u32 4788187, %v2221
    %v2223 = vand.u32 2147483647, %v2222
    %v2225 = vcvt.s32.f32 %v2218
    %v2226 = vmul.f32 %v2225, %v2223
    %v2227 = vxor.u32 %v2226, 2147483648
    %v2228 = vsel %vm2145, %v2227, %v2226
    %v2229 = vsub.s32 4, %v2205
    %v2230 = vsel %vm2145, %v2229, %v2205
    %v2231 = vsel %vm2144, %v1758, %v2228
    %v2232 = vsel %vm2144, 0, %v2230
    %v2233 = vcosq.f32.pop %v2231
    %v2234 = vsinq.f32.pop %v2231
    %vm2235 = vweird.f32 %v1758
    %v2236 = vadd.s32 %v2232, 3
    %v2237 = vand.u32 %v2236, 3
    %vm2238 = vcmp.lt.s32.totalorder %v2237, 2
    %vm2239 = vcmp.eq.s32.totalorder %v2237, 0
    %v2240 = vxor.u32 %v2234, 2147483648
    %v2241 = vsel %vm2239, %v2233, %v2240
    %vm2242 = vcmp.eq.s32.totalorder %v2237, 2
    %v2243 = vxor.u32 %v2233, 2147483648
    %v2244 = vsel %vm2242, %v2243, %v2234
    %v2245 = vsel %vm2238, %v2241, %v2244
    %v2246 = vsel %vm2235, nan, %v2245
    %v2247 = vand.u32 2147483647, %v1764
    %vm2248 = vcmp.le.f32.partialorder %v2247, 0.7853982
    %vm2249 = vcmp.lt.s32.totalorder %v1764, 0
    %v2250 = vand.u32 %v1764, 2139095040
    %v2251 = vshrl.u32 %v2250, 23
    %v2252 = vsub.s32 %v2251, 127
    %v2253 = vand.u32 2147483647, %v1764
    %v2254 = vand.u32 %v2253, 8388607
    %v2255 = vor.u32 %v2254, 8388608
    %v2256 = vsub.s32 0, %v2255
    %v2257 = vadd.s32 %v2252, 1
    %vm2258 = vcmp.gt.s32.totalorder %v2257, 0
    %v2259 = vsel %vm2258, %v2257, 0
    %v2260 = vshrl.u32 %v2259, 5
    %v2261 = vand.u32 %v2259, 31
    %v2262 = vsub.s32 32, %v2261
    %v2263 = vshrl.u32 683565275, %v2262
    %v2264 = vshll.u32 683565275, %v2261
    %v2265 = vshrl.u32 2475754826, %v2262
    %v2266 = vor.u32 %v2264, %v2265
    %v2267 = vshll.u32 2475754826, %v2261
    %v2268 = vshrl.u32 2131351028, %v2262
    %v2269 = vor.u32 %v2267, %v2268
    %v2270 = vshll.u32 2131351028, %v2261
    %v2271 = vshrl.u32 2102212464, %v2262
    %v2272 = vor.u32 %v2270, %v2271
    %v2273 = vshll.u32 2102212464, %v2261
    %v2274 = vshrl.u32 920167782, %v2262
    %v2275 = vor.u32 %v2273, %v2274
    %v2276 = vshll.u32 920167782, %v2261
    %v2277 = vshrl.u32 1326507024, %v2262
    %v2278 = vor.u32 %v2276, %v2277
    %vm2279 = vcmp.lt.s32.totalorder %v2260, 1
    %vm2280 = vcmp.lt.s32.totalorder %v2260, 2
    %vm2281 = vcmp.lt.s32.totalorder %v2260, 3
    %vm2282 = vcmp.lt.s32.totalorder %v2260, 4
    %v2283 = vsel %vm2279, %v2263, %v2266
    %v2284 = vsel %vm2282, %v2272, 2102212464
    %v2285 = vsel %vm2281, %v2269, %v2284
    %v2286 = vsel %vm2280, %v2283, %v2285
    %v2287 = vsel %vm2279, %v2266, %v2269
    %v2288 = vsel %vm2282, %v2275, 920167782
    %v2289 = vsel %vm2281, %v2272, %v2288
    %v2290 = vsel %vm2280, %v2287, %v2289
    %v2291 = vsel %vm2279, %v2269, %v2272
    %v2292 = vsel %vm2282, %v2278, 1326507024
    %v2293 = vsel %vm2281, %v2275, %v2292
    %v2294 = vsel %vm2280, %v2291, %v2293
    %v2295 = vshll.u32 %v2255, 8
    %v2296 = vmul.u32.u64.compose %v2295, %v2294
    %v2297 = vextract.low.u32 %v2296
    %v2298 = vextract.high.u32 %v2296
    %v2299 = vmul.u32.u64.compose %v2295, %v2290
    %v2300 = vextract.low.u32 %v2299
    %v2301 = vextract.high.u32 %v2299
    %v2302 = vmul.u32 %v2295, %v2286
    %v2303 = vadd.s32 %v2298, %v2300
    %vm2304 = vc.u32 %v2298, %v2300
    %v2305 = vadd.s32 %v2301, 1
    %v2306 = vsel %vm2304, %v2305, %v2301
    %v2307 = vadd.s32 %v2302, %v2306
    %v2308 = vadd.s32 %v2307, 536870912
    %v2309 = vshrl.u32 %v2308, 30
    %v2310 = vshll.u32 %v2309, 30
    %v2311 = vsub.s32 %v2307, %v2310
    %vm2312 = vcmp.lt.s32.totalorder %v2311, 0
    %v2313 = vsub.s32 0, %v2311
    %v2314 = vsel %vm2312, %v2313, %v2311
    %v2315 = vclz %v2314
    %v2316 = vsub.s32 %v2315, 2
    %vm2317 = vcmp.gt.s32.totalorder 0, %v2316
    %v2318 = vsel %vm2317, 0, %v2316
    %v2319 = vsub.s32 32, %v2318
    %v2320 = vshll.u32 %v2311, %v2318
    %v2321 = vshrl.u32 %v2303, %v2319
    %v2322 = vor.u32 %v2320, %v2321
    %v2323 = vsub.s32 4294967266, %v2318
    %v2324 = vadd.s32 %v2323, 127
    %v2325 = vshll.u32 %v2324, 23
    %v2326 = vor.u32 4788187, %v2325
    %v2327 = vand.u32 2147483647, %v2326
    %v2329 = vcvt.s32.f32 %v2322
    %v2330 = vmul.f32 %v2329, %v2327
    %v2331 = vxor.u32 %v2330, 2147483648
    %v2332 = vsel %vm2249, %v2331, %v2330
    %v2333 = vsub.s32 4, %v2309
    %v2334 = vsel %vm2249, %v2333, %v2309
    %v2335 = vsel %vm2248, %v1764, %v2332
    %v2336 = vsel %vm2248, 0, %v2334
    %v2337 = vcosq.f32.pop %v2335
    %v2338 = vsinq.f32.pop %v2335
    %vm2339 = vweird.f32 %v1764
    %v2340 = vadd.s32 %v2336, 3
    %v2341 = vand.u32 %v2340, 3
    %vm2342 = vcmp.lt.s32.totalorder %v2341, 2
    %vm2343 = vcmp.eq.s32.totalorder %v2341, 0
    %v2344 = vxor.u32 %v2338, 2147483648
    %v2345 = vsel %vm2343, %v2337, %v2344
    %vm2346 = vcmp.eq.s32.totalorder %v2341, 2
    %v2347 = vxor.u32 %v2337, 2147483648
    %v2348 = vsel %vm2346, %v2347, %v2338
    %v2349 = vsel %vm2342, %v2345, %v2348
    %v2350 = vsel %vm2339, nan, %v2349
    %v2351 = vand.u32 2147483647, %v1770
    %vm2352 = vcmp.le.f32.partialorder %v2351, 0.7853982
    %vm2353 = vcmp.lt.s32.totalorder %v1770, 0
    %v2354 = vand.u32 %v1770, 2139095040
    %v2355 = vshrl.u32 %v2354, 23
    %v2356 = vsub.s32 %v2355, 127
    %v2357 = vand.u32 2147483647, %v1770
    %v2358 = vand.u32 %v2357, 8388607
    %v2359 = vor.u32 %v2358, 8388608
    %v2360 = vsub.s32 0, %v2359
    %v2361 = vadd.s32 %v2356, 1
    %vm2362 = vcmp.gt.s32.totalorder %v2361, 0
    %v2363 = vsel %vm2362, %v2361, 0
    %v2364 = vshrl.u32 %v2363, 5
    %v2365 = vand.u32 %v2363, 31
    %v2366 = vsub.s32 32, %v2365
    %v2367 = vshrl.u32 683565275, %v2366
    %v2368 = vshll.u32 683565275, %v2365
    %v2369 = vshrl.u32 2475754826, %v2366
    %v2370 = vor.u32 %v2368, %v2369
    %v2371 = vshll.u32 2475754826, %v2365
    %v2372 = vshrl.u32 2131351028, %v2366
    %v2373 = vor.u32 %v2371, %v2372
    %v2374 = vshll.u32 2131351028, %v2365
    %v2375 = vshrl.u32 2102212464, %v2366
    %v2376 = vor.u32 %v2374, %v2375
    %v2377 = vshll.u32 2102212464, %v2365
    %v2378 = vshrl.u32 920167782, %v2366
    %v2379 = vor.u32 %v2377, %v2378
    %v2380 = vshll.u32 920167782, %v2365
    %v2381 = vshrl.u32 1326507024, %v2366
    %v2382 = vor.u32 %v2380, %v2381
    %vm2383 = vcmp.lt.s32.totalorder %v2364, 1
    %vm2384 = vcmp.lt.s32.totalorder %v2364, 2
    %vm2385 = vcmp.lt.s32.totalorder %v2364, 3
    %vm2386 = vcmp.lt.s32.totalorder %v2364, 4
    %v2387 = vsel %vm2383, %v2367, %v2370
    %v2388 = vsel %vm2386, %v2376, 2102212464
    %v2389 = vsel %vm2385, %v2373, %v2388
    %v2390 = vsel %vm2384, %v2387, %v2389
    %v2391 = vsel %vm2383, %v2370, %v2373
    %v2392 = vsel %vm2386, %v2379, 920167782
    %v2393 = vsel %vm2385, %v2376, %v2392
    %v2394 = vsel %vm2384, %v2391, %v2393
    %v2395 = vsel %vm2383, %v2373, %v2376
    %v2396 = vsel %vm2386, %v2382, 1326507024
    %v2397 = vsel %vm2385, %v2379, %v2396
    %v2398 = vsel %vm2384, %v2395, %v2397
    %v2399 = vshll.u32 %v2359, 8
    %v2400 = vmul.u32.u64.compose %v2399, %v2398
    %v2401 = vextract.low.u32 %v2400
    %v2402 = vextract.high.u32 %v2400
    %v2403 = vmul.u32.u64.compose %v2399, %v2394
    %v2404 = vextract.low.u32 %v2403
    %v2405 = vextract.high.u32 %v2403
    %v2406 = vmul.u32 %v2399, %v2390
    %v2407 = vadd.s32 %v2402, %v2404
    %vm2408 = vc.u32 %v2402, %v2404
    %v2409 = vadd.s32 %v2405, 1
    %v2410 = vsel %vm2408, %v2409, %v2405
    %v2411 = vadd.s32 %v2406, %v2410
    %v2412 = vadd.s32 %v2411, 536870912
    %v2413 = vshrl.u32 %v2412, 30
    %v2414 = vshll.u32 %v2413, 30
    %v2415 = vsub.s32 %v2411, %v2414
    %vm2416 = vcmp.lt.s32.totalorder %v2415, 0
    %v2417 = vsub.s32 0, %v2415
    %v2418 = vsel %vm2416, %v2417, %v2415
    %v2419 = vclz %v2418
    %v2420 = vsub.s32 %v2419, 2
    %vm2421 = vcmp.gt.s32.totalorder 0, %v2420
    %v2422 = vsel %vm2421, 0, %v2420
    %v2423 = vsub.s32 32, %v2422
    %v2424 = vshll.u32 %v2415, %v2422
    %v2425 = vshrl.u32 %v2407, %v2423
    %v2426 = vor.u32 %v2424, %v2425
    %v2427 = vsub.s32 4294967266, %v2422
    %v2428 = vadd.s32 %v2427, 127
    %v2429 = vshll.u32 %v2428, 23
    %v2430 = vor.u32 4788187, %v2429
    %v2431 = vand.u32 2147483647, %v2430
    %v2433 = vcvt.s32.f32 %v2426
    %v2434 = vmul.f32 %v2433, %v2431
    %v2435 = vxor.u32 %v2434, 2147483648
    %v2436 = vsel %vm2353, %v2435, %v2434
    %v2437 = vsub.s32 4, %v2413
    %v2438 = vsel %vm2353, %v2437, %v2413
    %v2439 = vsel %vm2352, %v1770, %v2436
    %v2440 = vsel %vm2352, 0, %v2438
    %v2441 = vcosq.f32.pop %v2439
    %v2442 = vsinq.f32.pop %v2439
    %vm2443 = vweird.f32 %v1770
    %v2444 = vadd.s32 %v2440, 3
    %v2445 = vand.u32 %v2444, 3
    %vm2446 = vcmp.lt.s32.totalorder %v2445, 2
    %vm2447 = vcmp.eq.s32.totalorder %v2445, 0
    %v2448 = vxor.u32 %v2442, 2147483648
    %v2449 = vsel %vm2447, %v2441, %v2448
    %vm2450 = vcmp.eq.s32.totalorder %v2445, 2
    %v2451 = vxor.u32 %v2441, 2147483648
    %v2452 = vsel %vm2450, %v2451, %v2442
    %v2453 = vsel %vm2446, %v2449, %v2452
    %v2454 = vsel %vm2443, nan, %v2453
    %v2455 = vand.u32 2147483647, %v1776
    %vm2456 = vcmp.le.f32.partialorder %v2455, 0.7853982
    %vm2457 = vcmp.lt.s32.totalorder %v1776, 0
    %v2458 = vand.u32 %v1776, 2139095040
    %v2459 = vshrl.u32 %v2458, 23
    %v2460 = vsub.s32 %v2459, 127
    %v2461 = vand.u32 2147483647, %v1776
    %v2462 = vand.u32 %v2461, 8388607
    %v2463 = vor.u32 %v2462, 8388608
    %v2464 = vsub.s32 0, %v2463
    %v2465 = vadd.s32 %v2460, 1
    %vm2466 = vcmp.gt.s32.totalorder %v2465, 0
    %v2467 = vsel %vm2466, %v2465, 0
    %v2468 = vshrl.u32 %v2467, 5
    %v2469 = vand.u32 %v2467, 31
    %v2470 = vsub.s32 32, %v2469
    %v2471 = vshrl.u32 683565275, %v2470
    %v2472 = vshll.u32 683565275, %v2469
    %v2473 = vshrl.u32 2475754826, %v2470
    %v2474 = vor.u32 %v2472, %v2473
    %v2475 = vshll.u32 2475754826, %v2469
    %v2476 = vshrl.u32 2131351028, %v2470
    %v2477 = vor.u32 %v2475, %v2476
    %v2478 = vshll.u32 2131351028, %v2469
    %v2479 = vshrl.u32 2102212464, %v2470
    %v2480 = vor.u32 %v2478, %v2479
    %v2481 = vshll.u32 2102212464, %v2469
    %v2482 = vshrl.u32 920167782, %v2470
    %v2483 = vor.u32 %v2481, %v2482
    %v2484 = vshll.u32 920167782, %v2469
    %v2485 = vshrl.u32 1326507024, %v2470
    %v2486 = vor.u32 %v2484, %v2485
    %vm2487 = vcmp.lt.s32.totalorder %v2468, 1
    %vm2488 = vcmp.lt.s32.totalorder %v2468, 2
    %vm2489 = vcmp.lt.s32.totalorder %v2468, 3
    %vm2490 = vcmp.lt.s32.totalorder %v2468, 4
    %v2491 = vsel %vm2487, %v2471, %v2474
    %v2492 = vsel %vm2490, %v2480, 2102212464
    %v2493 = vsel %vm2489, %v2477, %v2492
    %v2494 = vsel %vm2488, %v2491, %v2493
    %v2495 = vsel %vm2487, %v2474, %v2477
    %v2496 = vsel %vm2490, %v2483, 920167782
    %v2497 = vsel %vm2489, %v2480, %v2496
    %v2498 = vsel %vm2488, %v2495, %v2497
    %v2499 = vsel %vm2487, %v2477, %v2480
    %v2500 = vsel %vm2490, %v2486, 1326507024
    %v2501 = vsel %vm2489, %v2483, %v2500
    %v2502 = vsel %vm2488, %v2499, %v2501
    %v2503 = vshll.u32 %v2463, 8
    %v2504 = vmul.u32.u64.compose %v2503, %v2502
    %v2505 = vextract.low.u32 %v2504
    %v2506 = vextract.high.u32 %v2504
    %v2507 = vmul.u32.u64.compose %v2503, %v2498
    %v2508 = vextract.low.u32 %v2507
    %v2509 = vextract.high.u32 %v2507
    %v2510 = vmul.u32 %v2503, %v2494
    %v2511 = vadd.s32 %v2506, %v2508
    %vm2512 = vc.u32 %v2506, %v2508
    %v2513 = vadd.s32 %v2509, 1
    %v2514 = vsel %vm2512, %v2513, %v2509
    %v2515 = vadd.s32 %v2510, %v2514
    %v2516 = vadd.s32 %v2515, 536870912
    %v2517 = vshrl.u32 %v2516, 30
    %v2518 = vshll.u32 %v2517, 30
    %v2519 = vsub.s32 %v2515, %v2518
    %vm2520 = vcmp.lt.s32.totalorder %v2519, 0
    %v2521 = vsub.s32 0, %v2519
    %v2522 = vsel %vm2520, %v2521, %v2519
    %v2523 = vclz %v2522
    %v2524 = vsub.s32 %v2523, 2
    %vm2525 = vcmp.gt.s32.totalorder 0, %v2524
    %v2526 = vsel %vm2525, 0, %v2524
    %v2527 = vsub.s32 32, %v2526
    %v2528 = vshll.u32 %v2519, %v2526
    %v2529 = vshrl.u32 %v2511, %v2527
    %v2530 = vor.u32 %v2528, %v2529
    %v2531 = vsub.s32 4294967266, %v2526
    %v2532 = vadd.s32 %v2531, 127
    %v2533 = vshll.u32 %v2532, 23
    %v2534 = vor.u32 4788187, %v2533
    %v2535 = vand.u32 2147483647, %v2534
    %v2537 = vcvt.s32.f32 %v2530
    %v2538 = vmul.f32 %v2537, %v2535
    %v2539 = vxor.u32 %v2538, 2147483648
    %v2540 = vsel %vm2457, %v2539, %v2538
    %v2541 = vsub.s32 4, %v2517
    %v2542 = vsel %vm2457, %v2541, %v2517
    %v2543 = vsel %vm2456, %v1776, %v2540
    %v2544 = vsel %vm2456, 0, %v2542
    %v2545 = vcosq.f32.pop %v2543
    %v2546 = vsinq.f32.pop %v2543
    %vm2547 = vweird.f32 %v1776
    %v2548 = vadd.s32 %v2544, 3
    %v2549 = vand.u32 %v2548, 3
    %vm2550 = vcmp.lt.s32.totalorder %v2549, 2
    %vm2551 = vcmp.eq.s32.totalorder %v2549, 0
    %v2552 = vxor.u32 %v2546, 2147483648
    %v2553 = vsel %vm2551, %v2545, %v2552
    %vm2554 = vcmp.eq.s32.totalorder %v2549, 2
    %v2555 = vxor.u32 %v2545, 2147483648
    %v2556 = vsel %vm2554, %v2555, %v2546
    %v2557 = vsel %vm2550, %v2553, %v2556
    %v2558 = vsel %vm2547, nan, %v2557
    %v2559 = vand.u32 2147483647, %v1782
    %vm2560 = vcmp.le.f32.partialorder %v2559, 0.7853982
    %vm2561 = vcmp.lt.s32.totalorder %v1782, 0
    %v2562 = vand.u32 %v1782, 2139095040
    %v2563 = vshrl.u32 %v2562, 23
    %v2564 = vsub.s32 %v2563, 127
    %v2565 = vand.u32 2147483647, %v1782
    %v2566 = vand.u32 %v2565, 8388607
    %v2567 = vor.u32 %v2566, 8388608
    %v2568 = vsub.s32 0, %v2567
    %v2569 = vadd.s32 %v2564, 1
    %vm2570 = vcmp.gt.s32.totalorder %v2569, 0
    %v2571 = vsel %vm2570, %v2569, 0
    %v2572 = vshrl.u32 %v2571, 5
    %v2573 = vand.u32 %v2571, 31
    %v2574 = vsub.s32 32, %v2573
    %v2575 = vshrl.u32 683565275, %v2574
    %v2576 = vshll.u32 683565275, %v2573
    %v2577 = vshrl.u32 2475754826, %v2574
    %v2578 = vor.u32 %v2576, %v2577
    %v2579 = vshll.u32 2475754826, %v2573
    %v2580 = vshrl.u32 2131351028, %v2574
    %v2581 = vor.u32 %v2579, %v2580
    %v2582 = vshll.u32 2131351028, %v2573
    %v2583 = vshrl.u32 2102212464, %v2574
    %v2584 = vor.u32 %v2582, %v2583
    %v2585 = vshll.u32 2102212464, %v2573
    %v2586 = vshrl.u32 920167782, %v2574
    %v2587 = vor.u32 %v2585, %v2586
    %v2588 = vshll.u32 920167782, %v2573
    %v2589 = vshrl.u32 1326507024, %v2574
    %v2590 = vor.u32 %v2588, %v2589
    %vm2591 = vcmp.lt.s32.totalorder %v2572, 1
    %vm2592 = vcmp.lt.s32.totalorder %v2572, 2
    %vm2593 = vcmp.lt.s32.totalorder %v2572, 3
    %vm2594 = vcmp.lt.s32.totalorder %v2572, 4
    %v2595 = vsel %vm2591, %v2575, %v2578
    %v2596 = vsel %vm2594, %v2584, 2102212464
    %v2597 = vsel %vm2593, %v2581, %v2596
    %v2598 = vsel %vm2592, %v2595, %v2597
    %v2599 = vsel %vm2591, %v2578, %v2581
    %v2600 = vsel %vm2594, %v2587, 920167782
    %v2601 = vsel %vm2593, %v2584, %v2600
    %v2602 = vsel %vm2592, %v2599, %v2601
    %v2603 = vsel %vm2591, %v2581, %v2584
    %v2604 = vsel %vm2594, %v2590, 1326507024
    %v2605 = vsel %vm2593, %v2587, %v2604
    %v2606 = vsel %vm2592, %v2603, %v2605
    %v2607 = vshll.u32 %v2567, 8
    %v2608 = vmul.u32.u64.compose %v2607, %v2606
    %v2609 = vextract.low.u32 %v2608
    %v2610 = vextract.high.u32 %v2608
    %v2611 = vmul.u32.u64.compose %v2607, %v2602
    %v2612 = vextract.low.u32 %v2611
    %v2613 = vextract.high.u32 %v2611
    %v2614 = vmul.u32 %v2607, %v2598
    %v2615 = vadd.s32 %v2610, %v2612
    %vm2616 = vc.u32 %v2610, %v2612
    %v2617 = vadd.s32 %v2613, 1
    %v2618 = vsel %vm2616, %v2617, %v2613
    %v2619 = vadd.s32 %v2614, %v2618
    %v2620 = vadd.s32 %v2619, 536870912
    %v2621 = vshrl.u32 %v2620, 30
    %v2622 = vshll.u32 %v2621, 30
    %v2623 = vsub.s32 %v2619, %v2622
    %vm2624 = vcmp.lt.s32.totalorder %v2623, 0
    %v2625 = vsub.s32 0, %v2623
    %v2626 = vsel %vm2624, %v2625, %v2623
    %v2627 = vclz %v2626
    %v2628 = vsub.s32 %v2627, 2
    %vm2629 = vcmp.gt.s32.totalorder 0, %v2628
    %v2630 = vsel %vm2629, 0, %v2628
    %v2631 = vsub.s32 32, %v2630
    %v2632 = vshll.u32 %v2623, %v2630
    %v2633 = vshrl.u32 %v2615, %v2631
    %v2634 = vor.u32 %v2632, %v2633
    %v2635 = vsub.s32 4294967266, %v2630
    %v2636 = vadd.s32 %v2635, 127
    %v2637 = vshll.u32 %v2636, 23
    %v2638 = vor.u32 4788187, %v2637
    %v2639 = vand.u32 2147483647, %v2638
    %v2641 = vcvt.s32.f32 %v2634
    %v2642 = vmul.f32 %v2641, %v2639
    %v2643 = vxor.u32 %v2642, 2147483648
    %v2644 = vsel %vm2561, %v2643, %v2642
    %v2645 = vsub.s32 4, %v2621
    %v2646 = vsel %vm2561, %v2645, %v2621
    %v2647 = vsel %vm2560, %v1782, %v2644
    %v2648 = vsel %vm2560, 0, %v2646
    %v2649 = vcosq.f32.pop %v2647
    %v2650 = vsinq.f32.pop %v2647
    %vm2651 = vweird.f32 %v1782
    %v2652 = vadd.s32 %v2648, 3
    %v2653 = vand.u32 %v2652, 3
    %vm2654 = vcmp.lt.s32.totalorder %v2653, 2
    %vm2655 = vcmp.eq.s32.totalorder %v2653, 0
    %v2656 = vxor.u32 %v2650, 2147483648
    %v2657 = vsel %vm2655, %v2649, %v2656
    %vm2658 = vcmp.eq.s32.totalorder %v2653, 2
    %v2659 = vxor.u32 %v2649, 2147483648
    %v2660 = vsel %vm2658, %v2659, %v2650
    %v2661 = vsel %vm2654, %v2657, %v2660
    %v2662 = vsel %vm2651, nan, %v2661
    %v2663 = vand.u32 2147483647, %v1788
    %vm2664 = vcmp.le.f32.partialorder %v2663, 0.7853982
    %vm2665 = vcmp.lt.s32.totalorder %v1788, 0
    %v2666 = vand.u32 %v1788, 2139095040
    %v2667 = vshrl.u32 %v2666, 23
    %v2668 = vsub.s32 %v2667, 127
    %v2669 = vand.u32 2147483647, %v1788
    %v2670 = vand.u32 %v2669, 8388607
    %v2671 = vor.u32 %v2670, 8388608
    %v2672 = vsub.s32 0, %v2671
    %v2673 = vadd.s32 %v2668, 1
    %vm2674 = vcmp.gt.s32.totalorder %v2673, 0
    %v2675 = vsel %vm2674, %v2673, 0
    %v2676 = vshrl.u32 %v2675, 5
    %v2677 = vand.u32 %v2675, 31
    %v2678 = vsub.s32 32, %v2677
    %v2679 = vshrl.u32 683565275, %v2678
    %v2680 = vshll.u32 683565275, %v2677
    %v2681 = vshrl.u32 2475754826, %v2678
    %v2682 = vor.u32 %v2680, %v2681
    %v2683 = vshll.u32 2475754826, %v2677
    %v2684 = vshrl.u32 2131351028, %v2678
    %v2685 = vor.u32 %v2683, %v2684
    %v2686 = vshll.u32 2131351028, %v2677
    %v2687 = vshrl.u32 2102212464, %v2678
    %v2688 = vor.u32 %v2686, %v2687
    %v2689 = vshll.u32 2102212464, %v2677
    %v2690 = vshrl.u32 920167782, %v2678
    %v2691 = vor.u32 %v2689, %v2690
    %v2692 = vshll.u32 920167782, %v2677
    %v2693 = vshrl.u32 1326507024, %v2678
    %v2694 = vor.u32 %v2692, %v2693
    %vm2695 = vcmp.lt.s32.totalorder %v2676, 1
    %vm2696 = vcmp.lt.s32.totalorder %v2676, 2
    %vm2697 = vcmp.lt.s32.totalorder %v2676, 3
    %vm2698 = vcmp.lt.s32.totalorder %v2676, 4
    %v2699 = vsel %vm2695, %v2679, %v2682
    %v2700 = vsel %vm2698, %v2688, 2102212464
    %v2701 = vsel %vm2697, %v2685, %v2700
    %v2702 = vsel %vm2696, %v2699, %v2701
    %v2703 = vsel %vm2695, %v2682, %v2685
    %v2704 = vsel %vm2698, %v2691, 920167782
    %v2705 = vsel %vm2697, %v2688, %v2704
    %v2706 = vsel %vm2696, %v2703, %v2705
    %v2707 = vsel %vm2695, %v2685, %v2688
    %v2708 = vsel %vm2698, %v2694, 1326507024
    %v2709 = vsel %vm2697, %v2691, %v2708
    %v2710 = vsel %vm2696, %v2707, %v2709
    %v2711 = vshll.u32 %v2671, 8
    %v2712 = vmul.u32.u64.compose %v2711, %v2710
    %v2713 = vextract.low.u32 %v2712
    %v2714 = vextract.high.u32 %v2712
    %v2715 = vmul.u32.u64.compose %v2711, %v2706
    %v2716 = vextract.low.u32 %v2715
    %v2717 = vextract.high.u32 %v2715
    %v2718 = vmul.u32 %v2711, %v2702
    %v2719 = vadd.s32 %v2714, %v2716
    %vm2720 = vc.u32 %v2714, %v2716
    %v2721 = vadd.s32 %v2717, 1
    %v2722 = vsel %vm2720, %v2721, %v2717
    %v2723 = vadd.s32 %v2718, %v2722
    %v2724 = vadd.s32 %v2723, 536870912
    %v2725 = vshrl.u32 %v2724, 30
    %v2726 = vshll.u32 %v2725, 30
    %v2727 = vsub.s32 %v2723, %v2726
    %vm2728 = vcmp.lt.s32.totalorder %v2727, 0
    %v2729 = vsub.s32 0, %v2727
    %v2730 = vsel %vm2728, %v2729, %v2727
    %v2731 = vclz %v2730
    %v2732 = vsub.s32 %v2731, 2
    %vm2733 = vcmp.gt.s32.totalorder 0, %v2732
    %v2734 = vsel %vm2733, 0, %v2732
    %v2735 = vsub.s32 32, %v2734
    %v2736 = vshll.u32 %v2727, %v2734
    %v2737 = vshrl.u32 %v2719, %v2735
    %v2738 = vor.u32 %v2736, %v2737
    %v2739 = vsub.s32 4294967266, %v2734
    %v2740 = vadd.s32 %v2739, 127
    %v2741 = vshll.u32 %v2740, 23
    %v2742 = vor.u32 4788187, %v2741
    %v2743 = vand.u32 2147483647, %v2742
    %v2745 = vcvt.s32.f32 %v2738
    %v2746 = vmul.f32 %v2745, %v2743
    %v2747 = vxor.u32 %v2746, 2147483648
    %v2748 = vsel %vm2665, %v2747, %v2746
    %v2749 = vsub.s32 4, %v2725
    %v2750 = vsel %vm2665, %v2749, %v2725
    %v2751 = vsel %vm2664, %v1788, %v2748
    %v2752 = vsel %vm2664, 0, %v2750
    %v2753 = vcosq.f32.pop %v2751
    %v2754 = vsinq.f32.pop %v2751
    %vm2755 = vweird.f32 %v1788
    %v2756 = vadd.s32 %v2752, 3
    %v2757 = vand.u32 %v2756, 3
    %vm2758 = vcmp.lt.s32.totalorder %v2757, 2
    %vm2759 = vcmp.eq.s32.totalorder %v2757, 0
    %v2760 = vxor.u32 %v2754, 2147483648
    %v2761 = vsel %vm2759, %v2753, %v2760
    %vm2762 = vcmp.eq.s32.totalorder %v2757, 2
    %v2763 = vxor.u32 %v2753, 2147483648
    %v2764 = vsel %vm2762, %v2763, %v2754
    %v2765 = vsel %vm2758, %v2761, %v2764
    %v2766 = vsel %vm2755, nan, %v2765
    %v2767 = vand.u32 2147483647, %v1794
    %vm2768 = vcmp.le.f32.partialorder %v2767, 0.7853982
    %vm2769 = vcmp.lt.s32.totalorder %v1794, 0
    %v2770 = vand.u32 %v1794, 2139095040
    %v2771 = vshrl.u32 %v2770, 23
    %v2772 = vsub.s32 %v2771, 127
    %v2773 = vand.u32 2147483647, %v1794
    %v2774 = vand.u32 %v2773, 8388607
    %v2775 = vor.u32 %v2774, 8388608
    %v2776 = vsub.s32 0, %v2775
    %v2777 = vadd.s32 %v2772, 1
    %vm2778 = vcmp.gt.s32.totalorder %v2777, 0
    %v2779 = vsel %vm2778, %v2777, 0
    %v2780 = vshrl.u32 %v2779, 5
    %v2781 = vand.u32 %v2779, 31
    %v2782 = vsub.s32 32, %v2781
    %v2783 = vshrl.u32 683565275, %v2782
    %v2784 = vshll.u32 683565275, %v2781
    %v2785 = vshrl.u32 2475754826, %v2782
    %v2786 = vor.u32 %v2784, %v2785
    %v2787 = vshll.u32 2475754826, %v2781
    %v2788 = vshrl.u32 2131351028, %v2782
    %v2789 = vor.u32 %v2787, %v2788
    %v2790 = vshll.u32 2131351028, %v2781
    %v2791 = vshrl.u32 2102212464, %v2782
    %v2792 = vor.u32 %v2790, %v2791
    %v2793 = vshll.u32 2102212464, %v2781
    %v2794 = vshrl.u32 920167782, %v2782
    %v2795 = vor.u32 %v2793, %v2794
    %v2796 = vshll.u32 920167782, %v2781
    %v2797 = vshrl.u32 1326507024, %v2782
    %v2798 = vor.u32 %v2796, %v2797
    %vm2799 = vcmp.lt.s32.totalorder %v2780, 1
    %vm2800 = vcmp.lt.s32.totalorder %v2780, 2
    %vm2801 = vcmp.lt.s32.totalorder %v2780, 3
    %vm2802 = vcmp.lt.s32.totalorder %v2780, 4
    %v2803 = vsel %vm2799, %v2783, %v2786
    %v2804 = vsel %vm2802, %v2792, 2102212464
    %v2805 = vsel %vm2801, %v2789, %v2804
    %v2806 = vsel %vm2800, %v2803, %v2805
    %v2807 = vsel %vm2799, %v2786, %v2789
    %v2808 = vsel %vm2802, %v2795, 920167782
    %v2809 = vsel %vm2801, %v2792, %v2808
    %v2810 = vsel %vm2800, %v2807, %v2809
    %v2811 = vsel %vm2799, %v2789, %v2792
    %v2812 = vsel %vm2802, %v2798, 1326507024
    %v2813 = vsel %vm2801, %v2795, %v2812
    %v2814 = vsel %vm2800, %v2811, %v2813
    %v2815 = vshll.u32 %v2775, 8
    %v2816 = vmul.u32.u64.compose %v2815, %v2814
    %v2817 = vextract.low.u32 %v2816
    %v2818 = vextract.high.u32 %v2816
    %v2819 = vmul.u32.u64.compose %v2815, %v2810
    %v2820 = vextract.low.u32 %v2819
    %v2821 = vextract.high.u32 %v2819
    %v2822 = vmul.u32 %v2815, %v2806
    %v2823 = vadd.s32 %v2818, %v2820
    %vm2824 = vc.u32 %v2818, %v2820
    %v2825 = vadd.s32 %v2821, 1
    %v2826 = vsel %vm2824, %v2825, %v2821
    %v2827 = vadd.s32 %v2822, %v2826
    %v2828 = vadd.s32 %v2827, 536870912
    %v2829 = vshrl.u32 %v2828, 30
    %v2830 = vshll.u32 %v2829, 30
    %v2831 = vsub.s32 %v2827, %v2830
    %vm2832 = vcmp.lt.s32.totalorder %v2831, 0
    %v2833 = vsub.s32 0, %v2831
    %v2834 = vsel %vm2832, %v2833, %v2831
    %v2835 = vclz %v2834
    %v2836 = vsub.s32 %v2835, 2
    %vm2837 = vcmp.gt.s32.totalorder 0, %v2836
    %v2838 = vsel %vm2837, 0, %v2836
    %v2839 = vsub.s32 32, %v2838
    %v2840 = vshll.u32 %v2831, %v2838
    %v2841 = vshrl.u32 %v2823, %v2839
    %v2842 = vor.u32 %v2840, %v2841
    %v2843 = vsub.s32 4294967266, %v2838
    %v2844 = vadd.s32 %v2843, 127
    %v2845 = vshll.u32 %v2844, 23
    %v2846 = vor.u32 4788187, %v2845
    %v2847 = vand.u32 2147483647, %v2846
    %v2849 = vcvt.s32.f32 %v2842
    %v2850 = vmul.f32 %v2849, %v2847
    %v2851 = vxor.u32 %v2850, 2147483648
    %v2852 = vsel %vm2769, %v2851, %v2850
    %v2853 = vsub.s32 4, %v2829
    %v2854 = vsel %vm2769, %v2853, %v2829
    %v2855 = vsel %vm2768, %v1794, %v2852
    %v2856 = vsel %vm2768, 0, %v2854
    %v2857 = vcosq.f32.pop %v2855
    %v2858 = vsinq.f32.pop %v2855
    %vm2859 = vweird.f32 %v1794
    %v2860 = vadd.s32 %v2856, 3
    %v2861 = vand.u32 %v2860, 3
    %vm2862 = vcmp.lt.s32.totalorder %v2861, 2
    %vm2863 = vcmp.eq.s32.totalorder %v2861, 0
    %v2864 = vxor.u32 %v2858, 2147483648
    %v2865 = vsel %vm2863, %v2857, %v2864
    %vm2866 = vcmp.eq.s32.totalorder %v2861, 2
    %v2867 = vxor.u32 %v2857, 2147483648
    %v2868 = vsel %vm2866, %v2867, %v2858
    %v2869 = vsel %vm2862, %v2865, %v2868
    %v2870 = vsel %vm2859, nan, %v2869
    %v2871 = vand.u32 2147483647, %v1800
    %vm2872 = vcmp.le.f32.partialorder %v2871, 0.7853982
    %vm2873 = vcmp.lt.s32.totalorder %v1800, 0
    %v2874 = vand.u32 %v1800, 2139095040
    %v2875 = vshrl.u32 %v2874, 23
    %v2876 = vsub.s32 %v2875, 127
    %v2877 = vand.u32 2147483647, %v1800
    %v2878 = vand.u32 %v2877, 8388607
    %v2879 = vor.u32 %v2878, 8388608
    %v2880 = vsub.s32 0, %v2879
    %v2881 = vadd.s32 %v2876, 1
    %vm2882 = vcmp.gt.s32.totalorder %v2881, 0
    %v2883 = vsel %vm2882, %v2881, 0
    %v2884 = vshrl.u32 %v2883, 5
    %v2885 = vand.u32 %v2883, 31
    %v2886 = vsub.s32 32, %v2885
    %v2887 = vshrl.u32 683565275, %v2886
    %v2888 = vshll.u32 683565275, %v2885
    %v2889 = vshrl.u32 2475754826, %v2886
    %v2890 = vor.u32 %v2888, %v2889
    %v2891 = vshll.u32 2475754826, %v2885
    %v2892 = vshrl.u32 2131351028, %v2886
    %v2893 = vor.u32 %v2891, %v2892
    %v2894 = vshll.u32 2131351028, %v2885
    %v2895 = vshrl.u32 2102212464, %v2886
    %v2896 = vor.u32 %v2894, %v2895
    %v2897 = vshll.u32 2102212464, %v2885
    %v2898 = vshrl.u32 920167782, %v2886
    %v2899 = vor.u32 %v2897, %v2898
    %v2900 = vshll.u32 920167782, %v2885
    %v2901 = vshrl.u32 1326507024, %v2886
    %v2902 = vor.u32 %v2900, %v2901
    %vm2903 = vcmp.lt.s32.totalorder %v2884, 1
    %vm2904 = vcmp.lt.s32.totalorder %v2884, 2
    %vm2905 = vcmp.lt.s32.totalorder %v2884, 3
    %vm2906 = vcmp.lt.s32.totalorder %v2884, 4
    %v2907 = vsel %vm2903, %v2887, %v2890
    %v2908 = vsel %vm2906, %v2896, 2102212464
    %v2909 = vsel %vm2905, %v2893, %v2908
    %v2910 = vsel %vm2904, %v2907, %v2909
    %v2911 = vsel %vm2903, %v2890, %v2893
    %v2912 = vsel %vm2906, %v2899, 920167782
    %v2913 = vsel %vm2905, %v2896, %v2912
    %v2914 = vsel %vm2904, %v2911, %v2913
    %v2915 = vsel %vm2903, %v2893, %v2896
    %v2916 = vsel %vm2906, %v2902, 1326507024
    %v2917 = vsel %vm2905, %v2899, %v2916
    %v2918 = vsel %vm2904, %v2915, %v2917
    %v2919 = vshll.u32 %v2879, 8
    %v2920 = vmul.u32.u64.compose %v2919, %v2918
    %v2921 = vextract.low.u32 %v2920
    %v2922 = vextract.high.u32 %v2920
    %v2923 = vmul.u32.u64.compose %v2919, %v2914
    %v2924 = vextract.low.u32 %v2923
    %v2925 = vextract.high.u32 %v2923
    %v2926 = vmul.u32 %v2919, %v2910
    %v2927 = vadd.s32 %v2922, %v2924
    %vm2928 = vc.u32 %v2922, %v2924
    %v2929 = vadd.s32 %v2925, 1
    %v2930 = vsel %vm2928, %v2929, %v2925
    %v2931 = vadd.s32 %v2926, %v2930
    %v2932 = vadd.s32 %v2931, 536870912
    %v2933 = vshrl.u32 %v2932, 30
    %v2934 = vshll.u32 %v2933, 30
    %v2935 = vsub.s32 %v2931, %v2934
    %vm2936 = vcmp.lt.s32.totalorder %v2935, 0
    %v2937 = vsub.s32 0, %v2935
    %v2938 = vsel %vm2936, %v2937, %v2935
    %v2939 = vclz %v2938
    %v2940 = vsub.s32 %v2939, 2
    %vm2941 = vcmp.gt.s32.totalorder 0, %v2940
    %v2942 = vsel %vm2941, 0, %v2940
    %v2943 = vsub.s32 32, %v2942
    %v2944 = vshll.u32 %v2935, %v2942
    %v2945 = vshrl.u32 %v2927, %v2943
    %v2946 = vor.u32 %v2944, %v2945
    %v2947 = vsub.s32 4294967266, %v2942
    %v2948 = vadd.s32 %v2947, 127
    %v2949 = vshll.u32 %v2948, 23
    %v2950 = vor.u32 4788187, %v2949
    %v2951 = vand.u32 2147483647, %v2950
    %v2953 = vcvt.s32.f32 %v2946
    %v2954 = vmul.f32 %v2953, %v2951
    %v2955 = vxor.u32 %v2954, 2147483648
    %v2956 = vsel %vm2873, %v2955, %v2954
    %v2957 = vsub.s32 4, %v2933
    %v2958 = vsel %vm2873, %v2957, %v2933
    %v2959 = vsel %vm2872, %v1800, %v2956
    %v2960 = vsel %vm2872, 0, %v2958
    %v2961 = vcosq.f32.pop %v2959
    %v2962 = vsinq.f32.pop %v2959
    %vm2963 = vweird.f32 %v1800
    %v2964 = vadd.s32 %v2960, 3
    %v2965 = vand.u32 %v2964, 3
    %vm2966 = vcmp.lt.s32.totalorder %v2965, 2
    %vm2967 = vcmp.eq.s32.totalorder %v2965, 0
    %v2968 = vxor.u32 %v2962, 2147483648
    %v2969 = vsel %vm2967, %v2961, %v2968
    %vm2970 = vcmp.eq.s32.totalorder %v2965, 2
    %v2971 = vxor.u32 %v2961, 2147483648
    %v2972 = vsel %vm2970, %v2971, %v2962
    %v2973 = vsel %vm2966, %v2969, %v2972
    %v2974 = vsel %vm2963, nan, %v2973
    %v2975 = vand.u32 2147483647, %v1806
    %vm2976 = vcmp.le.f32.partialorder %v2975, 0.7853982
    %vm2977 = vcmp.lt.s32.totalorder %v1806, 0
    %v2978 = vand.u32 %v1806, 2139095040
    %v2979 = vshrl.u32 %v2978, 23
    %v2980 = vsub.s32 %v2979, 127
    %v2981 = vand.u32 2147483647, %v1806
    %v2982 = vand.u32 %v2981, 8388607
    %v2983 = vor.u32 %v2982, 8388608
    %v2984 = vsub.s32 0, %v2983
    %v2985 = vadd.s32 %v2980, 1
    %vm2986 = vcmp.gt.s32.totalorder %v2985, 0
    %v2987 = vsel %vm2986, %v2985, 0
    %v2988 = vshrl.u32 %v2987, 5
    %v2989 = vand.u32 %v2987, 31
    %v2990 = vsub.s32 32, %v2989
    %v2991 = vshrl.u32 683565275, %v2990
    %v2992 = vshll.u32 683565275, %v2989
    %v2993 = vshrl.u32 2475754826, %v2990
    %v2994 = vor.u32 %v2992, %v2993
    %v2995 = vshll.u32 2475754826, %v2989
    %v2996 = vshrl.u32 2131351028, %v2990
    %v2997 = vor.u32 %v2995, %v2996
    %v2998 = vshll.u32 2131351028, %v2989
    %v2999 = vshrl.u32 2102212464, %v2990
    %v3000 = vor.u32 %v2998, %v2999
    %v3001 = vshll.u32 2102212464, %v2989
    %v3002 = vshrl.u32 920167782, %v2990
    %v3003 = vor.u32 %v3001, %v3002
    %v3004 = vshll.u32 920167782, %v2989
    %v3005 = vshrl.u32 1326507024, %v2990
    %v3006 = vor.u32 %v3004, %v3005
    %vm3007 = vcmp.lt.s32.totalorder %v2988, 1
    %vm3008 = vcmp.lt.s32.totalorder %v2988, 2
    %vm3009 = vcmp.lt.s32.totalorder %v2988, 3
    %vm3010 = vcmp.lt.s32.totalorder %v2988, 4
    %v3011 = vsel %vm3007, %v2991, %v2994
    %v3012 = vsel %vm3010, %v3000, 2102212464
    %v3013 = vsel %vm3009, %v2997, %v3012
    %v3014 = vsel %vm3008, %v3011, %v3013
    %v3015 = vsel %vm3007, %v2994, %v2997
    %v3016 = vsel %vm3010, %v3003, 920167782
    %v3017 = vsel %vm3009, %v3000, %v3016
    %v3018 = vsel %vm3008, %v3015, %v3017
    %v3019 = vsel %vm3007, %v2997, %v3000
    %v3020 = vsel %vm3010, %v3006, 1326507024
    %v3021 = vsel %vm3009, %v3003, %v3020
    %v3022 = vsel %vm3008, %v3019, %v3021
    %v3023 = vshll.u32 %v2983, 8
    %v3024 = vmul.u32.u64.compose %v3023, %v3022
    %v3025 = vextract.low.u32 %v3024
    %v3026 = vextract.high.u32 %v3024
    %v3027 = vmul.u32.u64.compose %v3023, %v3018
    %v3028 = vextract.low.u32 %v3027
    %v3029 = vextract.high.u32 %v3027
    %v3030 = vmul.u32 %v3023, %v3014
    %v3031 = vadd.s32 %v3026, %v3028
    %vm3032 = vc.u32 %v3026, %v3028
    %v3033 = vadd.s32 %v3029, 1
    %v3034 = vsel %vm3032, %v3033, %v3029
    %v3035 = vadd.s32 %v3030, %v3034
    %v3036 = vadd.s32 %v3035, 536870912
    %v3037 = vshrl.u32 %v3036, 30
    %v3038 = vshll.u32 %v3037, 30
    %v3039 = vsub.s32 %v3035, %v3038
    %vm3040 = vcmp.lt.s32.totalorder %v3039, 0
    %v3041 = vsub.s32 0, %v3039
    %v3042 = vsel %vm3040, %v3041, %v3039
    %v3043 = vclz %v3042
    %v3044 = vsub.s32 %v3043, 2
    %vm3045 = vcmp.gt.s32.totalorder 0, %v3044
    %v3046 = vsel %vm3045, 0, %v3044
    %v3047 = vsub.s32 32, %v3046
    %v3048 = vshll.u32 %v3039, %v3046
    %v3049 = vshrl.u32 %v3031, %v3047
    %v3050 = vor.u32 %v3048, %v3049
    %v3051 = vsub.s32 4294967266, %v3046
    %v3052 = vadd.s32 %v3051, 127
    %v3053 = vshll.u32 %v3052, 23
    %v3054 = vor.u32 4788187, %v3053
    %v3055 = vand.u32 2147483647, %v3054
    %v3057 = vcvt.s32.f32 %v3050
    %v3058 = vmul.f32 %v3057, %v3055
    %v3059 = vxor.u32 %v3058, 2147483648
    %v3060 = vsel %vm2977, %v3059, %v3058
    %v3061 = vsub.s32 4, %v3037
    %v3062 = vsel %vm2977, %v3061, %v3037
    %v3063 = vsel %vm2976, %v1806, %v3060
    %v3064 = vsel %vm2976, 0, %v3062
    %v3065 = vcosq.f32.pop %v3063
    %v3066 = vsinq.f32.pop %v3063
    %vm3067 = vweird.f32 %v1806
    %v3068 = vadd.s32 %v3064, 3
    %v3069 = vand.u32 %v3068, 3
    %vm3070 = vcmp.lt.s32.totalorder %v3069, 2
    %vm3071 = vcmp.eq.s32.totalorder %v3069, 0
    %v3072 = vxor.u32 %v3066, 2147483648
    %v3073 = vsel %vm3071, %v3065, %v3072
    %vm3074 = vcmp.eq.s32.totalorder %v3069, 2
    %v3075 = vxor.u32 %v3065, 2147483648
    %v3076 = vsel %vm3074, %v3075, %v3066
    %v3077 = vsel %vm3070, %v3073, %v3076
    %v3078 = vsel %vm3067, nan, %v3077
    %v3079 = vand.u32 2147483647, %v1812
    %vm3080 = vcmp.le.f32.partialorder %v3079, 0.7853982
    %vm3081 = vcmp.lt.s32.totalorder %v1812, 0
    %v3082 = vand.u32 %v1812, 2139095040
    %v3083 = vshrl.u32 %v3082, 23
    %v3084 = vsub.s32 %v3083, 127
    %v3085 = vand.u32 2147483647, %v1812
    %v3086 = vand.u32 %v3085, 8388607
    %v3087 = vor.u32 %v3086, 8388608
    %v3088 = vsub.s32 0, %v3087
    %v3089 = vadd.s32 %v3084, 1
    %vm3090 = vcmp.gt.s32.totalorder %v3089, 0
    %v3091 = vsel %vm3090, %v3089, 0
    %v3092 = vshrl.u32 %v3091, 5
    %v3093 = vand.u32 %v3091, 31
    %v3094 = vsub.s32 32, %v3093
    %v3095 = vshrl.u32 683565275, %v3094
    %v3096 = vshll.u32 683565275, %v3093
    %v3097 = vshrl.u32 2475754826, %v3094
    %v3098 = vor.u32 %v3096, %v3097
    %v3099 = vshll.u32 2475754826, %v3093
    %v3100 = vshrl.u32 2131351028, %v3094
    %v3101 = vor.u32 %v3099, %v3100
    %v3102 = vshll.u32 2131351028, %v3093
    %v3103 = vshrl.u32 2102212464, %v3094
    %v3104 = vor.u32 %v3102, %v3103
    %v3105 = vshll.u32 2102212464, %v3093
    %v3106 = vshrl.u32 920167782, %v3094
    %v3107 = vor.u32 %v3105, %v3106
    %v3108 = vshll.u32 920167782, %v3093
    %v3109 = vshrl.u32 1326507024, %v3094
    %v3110 = vor.u32 %v3108, %v3109
    %vm3111 = vcmp.lt.s32.totalorder %v3092, 1
    %vm3112 = vcmp.lt.s32.totalorder %v3092, 2
    %vm3113 = vcmp.lt.s32.totalorder %v3092, 3
    %vm3114 = vcmp.lt.s32.totalorder %v3092, 4
    %v3115 = vsel %vm3111, %v3095, %v3098
    %v3116 = vsel %vm3114, %v3104, 2102212464
    %v3117 = vsel %vm3113, %v3101, %v3116
    %v3118 = vsel %vm3112, %v3115, %v3117
    %v3119 = vsel %vm3111, %v3098, %v3101
    %v3120 = vsel %vm3114, %v3107, 920167782
    %v3121 = vsel %vm3113, %v3104, %v3120
    %v3122 = vsel %vm3112, %v3119, %v3121
    %v3123 = vsel %vm3111, %v3101, %v3104
    %v3124 = vsel %vm3114, %v3110, 1326507024
    %v3125 = vsel %vm3113, %v3107, %v3124
    %v3126 = vsel %vm3112, %v3123, %v3125
    %v3127 = vshll.u32 %v3087, 8
    %v3128 = vmul.u32.u64.compose %v3127, %v3126
    %v3129 = vextract.low.u32 %v3128
    %v3130 = vextract.high.u32 %v3128
    %v3131 = vmul.u32.u64.compose %v3127, %v3122
    %v3132 = vextract.low.u32 %v3131
    %v3133 = vextract.high.u32 %v3131
    %v3134 = vmul.u32 %v3127, %v3118
    %v3135 = vadd.s32 %v3130, %v3132
    %vm3136 = vc.u32 %v3130, %v3132
    %v3137 = vadd.s32 %v3133, 1
    %v3138 = vsel %vm3136, %v3137, %v3133
    %v3139 = vadd.s32 %v3134, %v3138
    %v3140 = vadd.s32 %v3139, 536870912
    %v3141 = vshrl.u32 %v3140, 30
    %v3142 = vshll.u32 %v3141, 30
    %v3143 = vsub.s32 %v3139, %v3142
    %vm3144 = vcmp.lt.s32.totalorder %v3143, 0
    %v3145 = vsub.s32 0, %v3143
    %v3146 = vsel %vm3144, %v3145, %v3143
    %v3147 = vclz %v3146
    %v3148 = vsub.s32 %v3147, 2
    %vm3149 = vcmp.gt.s32.totalorder 0, %v3148
    %v3150 = vsel %vm3149, 0, %v3148
    %v3151 = vsub.s32 32, %v3150
    %v3152 = vshll.u32 %v3143, %v3150
    %v3153 = vshrl.u32 %v3135, %v3151
    %v3154 = vor.u32 %v3152, %v3153
    %v3155 = vsub.s32 4294967266, %v3150
    %v3156 = vadd.s32 %v3155, 127
    %v3157 = vshll.u32 %v3156, 23
    %v3158 = vor.u32 4788187, %v3157
    %v3159 = vand.u32 2147483647, %v3158
    %v3161 = vcvt.s32.f32 %v3154
    %v3162 = vmul.f32 %v3161, %v3159
    %v3163 = vxor.u32 %v3162, 2147483648
    %v3164 = vsel %vm3081, %v3163, %v3162
    %v3165 = vsub.s32 4, %v3141
    %v3166 = vsel %vm3081, %v3165, %v3141
    %v3167 = vsel %vm3080, %v1812, %v3164
    %v3168 = vsel %vm3080, 0, %v3166
    %v3169 = vcosq.f32.pop %v3167
    %v3170 = vsinq.f32.pop %v3167
    %vm3171 = vweird.f32 %v1812
    %v3172 = vadd.s32 %v3168, 3
    %v3173 = vand.u32 %v3172, 3
    %vm3174 = vcmp.lt.s32.totalorder %v3173, 2
    %vm3175 = vcmp.eq.s32.totalorder %v3173, 0
    %v3176 = vxor.u32 %v3170, 2147483648
    %v3177 = vsel %vm3175, %v3169, %v3176
    %vm3178 = vcmp.eq.s32.totalorder %v3173, 2
    %v3179 = vxor.u32 %v3169, 2147483648
    %v3180 = vsel %vm3178, %v3179, %v3170
    %v3181 = vsel %vm3174, %v3177, %v3180
    %v3182 = vsel %vm3171, nan, %v3181
    %v3183 = vand.u32 2147483647, %v1818
    %vm3184 = vcmp.le.f32.partialorder %v3183, 0.7853982
    %vm3185 = vcmp.lt.s32.totalorder %v1818, 0
    %v3186 = vand.u32 %v1818, 2139095040
    %v3187 = vshrl.u32 %v3186, 23
    %v3188 = vsub.s32 %v3187, 127
    %v3189 = vand.u32 2147483647, %v1818
    %v3190 = vand.u32 %v3189, 8388607
    %v3191 = vor.u32 %v3190, 8388608
    %v3192 = vsub.s32 0, %v3191
    %v3193 = vadd.s32 %v3188, 1
    %vm3194 = vcmp.gt.s32.totalorder %v3193, 0
    %v3195 = vsel %vm3194, %v3193, 0
    %v3196 = vshrl.u32 %v3195, 5
    %v3197 = vand.u32 %v3195, 31
    %v3198 = vsub.s32 32, %v3197
    %v3199 = vshrl.u32 683565275, %v3198
    %v3200 = vshll.u32 683565275, %v3197
    %v3201 = vshrl.u32 2475754826, %v3198
    %v3202 = vor.u32 %v3200, %v3201
    %v3203 = vshll.u32 2475754826, %v3197
    %v3204 = vshrl.u32 2131351028, %v3198
    %v3205 = vor.u32 %v3203, %v3204
    %v3206 = vshll.u32 2131351028, %v3197
    %v3207 = vshrl.u32 2102212464, %v3198
    %v3208 = vor.u32 %v3206, %v3207
    %v3209 = vshll.u32 2102212464, %v3197
    %v3210 = vshrl.u32 920167782, %v3198
    %v3211 = vor.u32 %v3209, %v3210
    %v3212 = vshll.u32 920167782, %v3197
    %v3213 = vshrl.u32 1326507024, %v3198
    %v3214 = vor.u32 %v3212, %v3213
    %vm3215 = vcmp.lt.s32.totalorder %v3196, 1
    %vm3216 = vcmp.lt.s32.totalorder %v3196, 2
    %vm3217 = vcmp.lt.s32.totalorder %v3196, 3
    %vm3218 = vcmp.lt.s32.totalorder %v3196, 4
    %v3219 = vsel %vm3215, %v3199, %v3202
    %v3220 = vsel %vm3218, %v3208, 2102212464
    %v3221 = vsel %vm3217, %v3205, %v3220
    %v3222 = vsel %vm3216, %v3219, %v3221
    %v3223 = vsel %vm3215, %v3202, %v3205
    %v3224 = vsel %vm3218, %v3211, 920167782
    %v3225 = vsel %vm3217, %v3208, %v3224
    %v3226 = vsel %vm3216, %v3223, %v3225
    %v3227 = vsel %vm3215, %v3205, %v3208
    %v3228 = vsel %vm3218, %v3214, 1326507024
    %v3229 = vsel %vm3217, %v3211, %v3228
    %v3230 = vsel %vm3216, %v3227, %v3229
    %v3231 = vshll.u32 %v3191, 8
    %v3232 = vmul.u32.u64.compose %v3231, %v3230
    %v3233 = vextract.low.u32 %v3232
    %v3234 = vextract.high.u32 %v3232
    %v3235 = vmul.u32.u64.compose %v3231, %v3226
    %v3236 = vextract.low.u32 %v3235
    %v3237 = vextract.high.u32 %v3235
    %v3238 = vmul.u32 %v3231, %v3222
    %v3239 = vadd.s32 %v3234, %v3236
    %vm3240 = vc.u32 %v3234, %v3236
    %v3241 = vadd.s32 %v3237, 1
    %v3242 = vsel %vm3240, %v3241, %v3237
    %v3243 = vadd.s32 %v3238, %v3242
    %v3244 = vadd.s32 %v3243, 536870912
    %v3245 = vshrl.u32 %v3244, 30
    %v3246 = vshll.u32 %v3245, 30
    %v3247 = vsub.s32 %v3243, %v3246
    %vm3248 = vcmp.lt.s32.totalorder %v3247, 0
    %v3249 = vsub.s32 0, %v3247
    %v3250 = vsel %vm3248, %v3249, %v3247
    %v3251 = vclz %v3250
    %v3252 = vsub.s32 %v3251, 2
    %vm3253 = vcmp.gt.s32.totalorder 0, %v3252
    %v3254 = vsel %vm3253, 0, %v3252
    %v3255 = vsub.s32 32, %v3254
    %v3256 = vshll.u32 %v3247, %v3254
    %v3257 = vshrl.u32 %v3239, %v3255
    %v3258 = vor.u32 %v3256, %v3257
    %v3259 = vsub.s32 4294967266, %v3254
    %v3260 = vadd.s32 %v3259, 127
    %v3261 = vshll.u32 %v3260, 23
    %v3262 = vor.u32 4788187, %v3261
    %v3263 = vand.u32 2147483647, %v3262
    %v3265 = vcvt.s32.f32 %v3258
    %v3266 = vmul.f32 %v3265, %v3263
    %v3267 = vxor.u32 %v3266, 2147483648
    %v3268 = vsel %vm3185, %v3267, %v3266
    %v3269 = vsub.s32 4, %v3245
    %v3270 = vsel %vm3185, %v3269, %v3245
    %v3271 = vsel %vm3184, %v1818, %v3268
    %v3272 = vsel %vm3184, 0, %v3270
    %v3273 = vcosq.f32.pop %v3271
    %v3274 = vsinq.f32.pop %v3271
    %vm3275 = vweird.f32 %v1818
    %v3276 = vadd.s32 %v3272, 3
    %v3277 = vand.u32 %v3276, 3
    %vm3278 = vcmp.lt.s32.totalorder %v3277, 2
    %vm3279 = vcmp.eq.s32.totalorder %v3277, 0
    %v3280 = vxor.u32 %v3274, 2147483648
    %v3281 = vsel %vm3279, %v3273, %v3280
    %vm3282 = vcmp.eq.s32.totalorder %v3277, 2
    %v3283 = vxor.u32 %v3273, 2147483648
    %v3284 = vsel %vm3282, %v3283, %v3274
    %v3285 = vsel %vm3278, %v3281, %v3284
    %v3286 = vsel %vm3275, nan, %v3285
    %v3287 = vand.u32 2147483647, %v1824
    %vm3288 = vcmp.le.f32.partialorder %v3287, 0.7853982
    %vm3289 = vcmp.lt.s32.totalorder %v1824, 0
    %v3290 = vand.u32 %v1824, 2139095040
    %v3291 = vshrl.u32 %v3290, 23
    %v3292 = vsub.s32 %v3291, 127
    %v3293 = vand.u32 2147483647, %v1824
    %v3294 = vand.u32 %v3293, 8388607
    %v3295 = vor.u32 %v3294, 8388608
    %v3296 = vsub.s32 0, %v3295
    %v3297 = vadd.s32 %v3292, 1
    %vm3298 = vcmp.gt.s32.totalorder %v3297, 0
    %v3299 = vsel %vm3298, %v3297, 0
    %v3300 = vshrl.u32 %v3299, 5
    %v3301 = vand.u32 %v3299, 31
    %v3302 = vsub.s32 32, %v3301
    %v3303 = vshrl.u32 683565275, %v3302
    %v3304 = vshll.u32 683565275, %v3301
    %v3305 = vshrl.u32 2475754826, %v3302
    %v3306 = vor.u32 %v3304, %v3305
    %v3307 = vshll.u32 2475754826, %v3301
    %v3308 = vshrl.u32 2131351028, %v3302
    %v3309 = vor.u32 %v3307, %v3308
    %v3310 = vshll.u32 2131351028, %v3301
    %v3311 = vshrl.u32 2102212464, %v3302
    %v3312 = vor.u32 %v3310, %v3311
    %v3313 = vshll.u32 2102212464, %v3301
    %v3314 = vshrl.u32 920167782, %v3302
    %v3315 = vor.u32 %v3313, %v3314
    %v3316 = vshll.u32 920167782, %v3301
    %v3317 = vshrl.u32 1326507024, %v3302
    %v3318 = vor.u32 %v3316, %v3317
    %vm3319 = vcmp.lt.s32.totalorder %v3300, 1
    %vm3320 = vcmp.lt.s32.totalorder %v3300, 2
    %vm3321 = vcmp.lt.s32.totalorder %v3300, 3
    %vm3322 = vcmp.lt.s32.totalorder %v3300, 4
    %v3323 = vsel %vm3319, %v3303, %v3306
    %v3324 = vsel %vm3322, %v3312, 2102212464
    %v3325 = vsel %vm3321, %v3309, %v3324
    %v3326 = vsel %vm3320, %v3323, %v3325
    %v3327 = vsel %vm3319, %v3306, %v3309
    %v3328 = vsel %vm3322, %v3315, 920167782
    %v3329 = vsel %vm3321, %v3312, %v3328
    %v3330 = vsel %vm3320, %v3327, %v3329
    %v3331 = vsel %vm3319, %v3309, %v3312
    %v3332 = vsel %vm3322, %v3318, 1326507024
    %v3333 = vsel %vm3321, %v3315, %v3332
    %v3334 = vsel %vm3320, %v3331, %v3333
    %v3335 = vshll.u32 %v3295, 8
    %v3336 = vmul.u32.u64.compose %v3335, %v3334
    %v3337 = vextract.low.u32 %v3336
    %v3338 = vextract.high.u32 %v3336
    %v3339 = vmul.u32.u64.compose %v3335, %v3330
    %v3340 = vextract.low.u32 %v3339
    %v3341 = vextract.high.u32 %v3339
    %v3342 = vmul.u32 %v3335, %v3326
    %v3343 = vadd.s32 %v3338, %v3340
    %vm3344 = vc.u32 %v3338, %v3340
    %v3345 = vadd.s32 %v3341, 1
    %v3346 = vsel %vm3344, %v3345, %v3341
    %v3347 = vadd.s32 %v3342, %v3346
    %v3348 = vadd.s32 %v3347, 536870912
    %v3349 = vshrl.u32 %v3348, 30
    %v3350 = vshll.u32 %v3349, 30
    %v3351 = vsub.s32 %v3347, %v3350
    %vm3352 = vcmp.lt.s32.totalorder %v3351, 0
    %v3353 = vsub.s32 0, %v3351
    %v3354 = vsel %vm3352, %v3353, %v3351
    %v3355 = vclz %v3354
    %v3356 = vsub.s32 %v3355, 2
    %vm3357 = vcmp.gt.s32.totalorder 0, %v3356
    %v3358 = vsel %vm3357, 0, %v3356
    %v3359 = vsub.s32 32, %v3358
    %v3360 = vshll.u32 %v3351, %v3358
    %v3361 = vshrl.u32 %v3343, %v3359
    %v3362 = vor.u32 %v3360, %v3361
    %v3363 = vsub.s32 4294967266, %v3358
    %v3364 = vadd.s32 %v3363, 127
    %v3365 = vshll.u32 %v3364, 23
    %v3366 = vor.u32 4788187, %v3365
    %v3367 = vand.u32 2147483647, %v3366
    %v3369 = vcvt.s32.f32 %v3362
    %v3370 = vmul.f32 %v3369, %v3367
    %v3371 = vxor.u32 %v3370, 2147483648
    %v3372 = vsel %vm3289, %v3371, %v3370
    %v3373 = vsub.s32 4, %v3349
    %v3374 = vsel %vm3289, %v3373, %v3349
    %v3375 = vsel %vm3288, %v1824, %v3372
    %v3376 = vsel %vm3288, 0, %v3374
    %v3377 = vcosq.f32.pop %v3375
    %v3378 = vsinq.f32.pop %v3375
    %vm3379 = vweird.f32 %v1824
    %v3380 = vadd.s32 %v3376, 3
    %v3381 = vand.u32 %v3380, 3
    %vm3382 = vcmp.lt.s32.totalorder %v3381, 2
    %vm3383 = vcmp.eq.s32.totalorder %v3381, 0
    %v3384 = vxor.u32 %v3378, 2147483648
    %v3385 = vsel %vm3383, %v3377, %v3384
    %vm3386 = vcmp.eq.s32.totalorder %v3381, 2
    %v3387 = vxor.u32 %v3377, 2147483648
    %v3388 = vsel %vm3386, %v3387, %v3378
    %v3389 = vsel %vm3382, %v3385, %v3388
    %v3390 = vsel %vm3379, nan, %v3389
    %v3391 = vand.u32 2147483647, %v1830
    %vm3392 = vcmp.le.f32.partialorder %v3391, 0.7853982
    %vm3393 = vcmp.lt.s32.totalorder %v1830, 0
    %v3394 = vand.u32 %v1830, 2139095040
    %v3395 = vshrl.u32 %v3394, 23
    %v3396 = vsub.s32 %v3395, 127
    %v3397 = vand.u32 2147483647, %v1830
    %v3398 = vand.u32 %v3397, 8388607
    %v3399 = vor.u32 %v3398, 8388608
    %v3400 = vsub.s32 0, %v3399
    %v3401 = vadd.s32 %v3396, 1
    %vm3402 = vcmp.gt.s32.totalorder %v3401, 0
    %v3403 = vsel %vm3402, %v3401, 0
    %v3404 = vshrl.u32 %v3403, 5
    %v3405 = vand.u32 %v3403, 31
    %v3406 = vsub.s32 32, %v3405
    %v3407 = vshrl.u32 683565275, %v3406
    %v3408 = vshll.u32 683565275, %v3405
    %v3409 = vshrl.u32 2475754826, %v3406
    %v3410 = vor.u32 %v3408, %v3409
    %v3411 = vshll.u32 2475754826, %v3405
    %v3412 = vshrl.u32 2131351028, %v3406
    %v3413 = vor.u32 %v3411, %v3412
    %v3414 = vshll.u32 2131351028, %v3405
    %v3415 = vshrl.u32 2102212464, %v3406
    %v3416 = vor.u32 %v3414, %v3415
    %v3417 = vshll.u32 2102212464, %v3405
    %v3418 = vshrl.u32 920167782, %v3406
    %v3419 = vor.u32 %v3417, %v3418
    %v3420 = vshll.u32 920167782, %v3405
    %v3421 = vshrl.u32 1326507024, %v3406
    %v3422 = vor.u32 %v3420, %v3421
    %vm3423 = vcmp.lt.s32.totalorder %v3404, 1
    %vm3424 = vcmp.lt.s32.totalorder %v3404, 2
    %vm3425 = vcmp.lt.s32.totalorder %v3404, 3
    %vm3426 = vcmp.lt.s32.totalorder %v3404, 4
    %v3427 = vsel %vm3423, %v3407, %v3410
    %v3428 = vsel %vm3426, %v3416, 2102212464
    %v3429 = vsel %vm3425, %v3413, %v3428
    %v3430 = vsel %vm3424, %v3427, %v3429
    %v3431 = vsel %vm3423, %v3410, %v3413
    %v3432 = vsel %vm3426, %v3419, 920167782
    %v3433 = vsel %vm3425, %v3416, %v3432
    %v3434 = vsel %vm3424, %v3431, %v3433
    %v3435 = vsel %vm3423, %v3413, %v3416
    %v3436 = vsel %vm3426, %v3422, 1326507024
    %v3437 = vsel %vm3425, %v3419, %v3436
    %v3438 = vsel %vm3424, %v3435, %v3437
    %v3439 = vshll.u32 %v3399, 8
    %v3440 = vmul.u32.u64.compose %v3439, %v3438
    %v3441 = vextract.low.u32 %v3440
    %v3442 = vextract.high.u32 %v3440
    %v3443 = vmul.u32.u64.compose %v3439, %v3434
    %v3444 = vextract.low.u32 %v3443
    %v3445 = vextract.high.u32 %v3443
    %v3446 = vmul.u32 %v3439, %v3430
    %v3447 = vadd.s32 %v3442, %v3444
    %vm3448 = vc.u32 %v3442, %v3444
    %v3449 = vadd.s32 %v3445, 1
    %v3450 = vsel %vm3448, %v3449, %v3445
    %v3451 = vadd.s32 %v3446, %v3450
    %v3452 = vadd.s32 %v3451, 536870912
    %v3453 = vshrl.u32 %v3452, 30
    %v3454 = vshll.u32 %v3453, 30
    %v3455 = vsub.s32 %v3451, %v3454
    %vm3456 = vcmp.lt.s32.totalorder %v3455, 0
    %v3457 = vsub.s32 0, %v3455
    %v3458 = vsel %vm3456, %v3457, %v3455
    %v3459 = vclz %v3458
    %v3460 = vsub.s32 %v3459, 2
    %vm3461 = vcmp.gt.s32.totalorder 0, %v3460
    %v3462 = vsel %vm3461, 0, %v3460
    %v3463 = vsub.s32 32, %v3462
    %v3464 = vshll.u32 %v3455, %v3462
    %v3465 = vshrl.u32 %v3447, %v3463
    %v3466 = vor.u32 %v3464, %v3465
    %v3467 = vsub.s32 4294967266, %v3462
    %v3468 = vadd.s32 %v3467, 127
    %v3469 = vshll.u32 %v3468, 23
    %v3470 = vor.u32 4788187, %v3469
    %v3471 = vand.u32 2147483647, %v3470
    %v3473 = vcvt.s32.f32 %v3466
    %v3474 = vmul.f32 %v3473, %v3471
    %v3475 = vxor.u32 %v3474, 2147483648
    %v3476 = vsel %vm3393, %v3475, %v3474
    %v3477 = vsub.s32 4, %v3453
    %v3478 = vsel %vm3393, %v3477, %v3453
    %v3479 = vsel %vm3392, %v1830, %v3476
    %v3480 = vsel %vm3392, 0, %v3478
    %v3481 = vcosq.f32.pop %v3479
    %v3482 = vsinq.f32.pop %v3479
    %vm3483 = vweird.f32 %v1830
    %v3484 = vadd.s32 %v3480, 3
    %v3485 = vand.u32 %v3484, 3
    %vm3486 = vcmp.lt.s32.totalorder %v3485, 2
    %vm3487 = vcmp.eq.s32.totalorder %v3485, 0
    %v3488 = vxor.u32 %v3482, 2147483648
    %v3489 = vsel %vm3487, %v3481, %v3488
    %vm3490 = vcmp.eq.s32.totalorder %v3485, 2
    %v3491 = vxor.u32 %v3481, 2147483648
    %v3492 = vsel %vm3490, %v3491, %v3482
    %v3493 = vsel %vm3486, %v3489, %v3492
    %v3494 = vsel %vm3483, nan, %v3493
    %v3495 = vand.u32 2147483647, %v1836
    %vm3496 = vcmp.le.f32.partialorder %v3495, 0.7853982
    %vm3497 = vcmp.lt.s32.totalorder %v1836, 0
    %v3498 = vand.u32 %v1836, 2139095040
    %v3499 = vshrl.u32 %v3498, 23
    %v3500 = vsub.s32 %v3499, 127
    %v3501 = vand.u32 2147483647, %v1836
    %v3502 = vand.u32 %v3501, 8388607
    %v3503 = vor.u32 %v3502, 8388608
    %v3504 = vsub.s32 0, %v3503
    %v3505 = vadd.s32 %v3500, 1
    %vm3506 = vcmp.gt.s32.totalorder %v3505, 0
    %v3507 = vsel %vm3506, %v3505, 0
    %v3508 = vshrl.u32 %v3507, 5
    %v3509 = vand.u32 %v3507, 31
    %v3510 = vsub.s32 32, %v3509
    %v3511 = vshrl.u32 683565275, %v3510
    %v3512 = vshll.u32 683565275, %v3509
    %v3513 = vshrl.u32 2475754826, %v3510
    %v3514 = vor.u32 %v3512, %v3513
    %v3515 = vshll.u32 2475754826, %v3509
    %v3516 = vshrl.u32 2131351028, %v3510
    %v3517 = vor.u32 %v3515, %v3516
    %v3518 = vshll.u32 2131351028, %v3509
    %v3519 = vshrl.u32 2102212464, %v3510
    %v3520 = vor.u32 %v3518, %v3519
    %v3521 = vshll.u32 2102212464, %v3509
    %v3522 = vshrl.u32 920167782, %v3510
    %v3523 = vor.u32 %v3521, %v3522
    %v3524 = vshll.u32 920167782, %v3509
    %v3525 = vshrl.u32 1326507024, %v3510
    %v3526 = vor.u32 %v3524, %v3525
    %vm3527 = vcmp.lt.s32.totalorder %v3508, 1
    %vm3528 = vcmp.lt.s32.totalorder %v3508, 2
    %vm3529 = vcmp.lt.s32.totalorder %v3508, 3
    %vm3530 = vcmp.lt.s32.totalorder %v3508, 4
    %v3531 = vsel %vm3527, %v3511, %v3514
    %v3532 = vsel %vm3530, %v3520, 2102212464
    %v3533 = vsel %vm3529, %v3517, %v3532
    %v3534 = vsel %vm3528, %v3531, %v3533
    %v3535 = vsel %vm3527, %v3514, %v3517
    %v3536 = vsel %vm3530, %v3523, 920167782
    %v3537 = vsel %vm3529, %v3520, %v3536
    %v3538 = vsel %vm3528, %v3535, %v3537
    %v3539 = vsel %vm3527, %v3517, %v3520
    %v3540 = vsel %vm3530, %v3526, 1326507024
    %v3541 = vsel %vm3529, %v3523, %v3540
    %v3542 = vsel %vm3528, %v3539, %v3541
    %v3543 = vshll.u32 %v3503, 8
    %v3544 = vmul.u32.u64.compose %v3543, %v3542
    %v3545 = vextract.low.u32 %v3544
    %v3546 = vextract.high.u32 %v3544
    %v3547 = vmul.u32.u64.compose %v3543, %v3538
    %v3548 = vextract.low.u32 %v3547
    %v3549 = vextract.high.u32 %v3547
    %v3550 = vmul.u32 %v3543, %v3534
    %v3551 = vadd.s32 %v3546, %v3548
    %vm3552 = vc.u32 %v3546, %v3548
    %v3553 = vadd.s32 %v3549, 1
    %v3554 = vsel %vm3552, %v3553, %v3549
    %v3555 = vadd.s32 %v3550, %v3554
    %v3556 = vadd.s32 %v3555, 536870912
    %v3557 = vshrl.u32 %v3556, 30
    %v3558 = vshll.u32 %v3557, 30
    %v3559 = vsub.s32 %v3555, %v3558
    %vm3560 = vcmp.lt.s32.totalorder %v3559, 0
    %v3561 = vsub.s32 0, %v3559
    %v3562 = vsel %vm3560, %v3561, %v3559
    %v3563 = vclz %v3562
    %v3564 = vsub.s32 %v3563, 2
    %vm3565 = vcmp.gt.s32.totalorder 0, %v3564
    %v3566 = vsel %vm3565, 0, %v3564
    %v3567 = vsub.s32 32, %v3566
    %v3568 = vshll.u32 %v3559, %v3566
    %v3569 = vshrl.u32 %v3551, %v3567
    %v3570 = vor.u32 %v3568, %v3569
    %v3571 = vsub.s32 4294967266, %v3566
    %v3572 = vadd.s32 %v3571, 127
    %v3573 = vshll.u32 %v3572, 23
    %v3574 = vor.u32 4788187, %v3573
    %v3575 = vand.u32 2147483647, %v3574
    %v3577 = vcvt.s32.f32 %v3570
    %v3578 = vmul.f32 %v3577, %v3575
    %v3579 = vxor.u32 %v3578, 2147483648
    %v3580 = vsel %vm3497, %v3579, %v3578
    %v3581 = vsub.s32 4, %v3557
    %v3582 = vsel %vm3497, %v3581, %v3557
    %v3583 = vsel %vm3496, %v1836, %v3580
    %v3584 = vsel %vm3496, 0, %v3582
    %v3585 = vcosq.f32.pop %v3583
    %v3586 = vsinq.f32.pop %v3583
    %vm3587 = vweird.f32 %v1836
    %v3588 = vadd.s32 %v3584, 3
    %v3589 = vand.u32 %v3588, 3
    %vm3590 = vcmp.lt.s32.totalorder %v3589, 2
    %vm3591 = vcmp.eq.s32.totalorder %v3589, 0
    %v3592 = vxor.u32 %v3586, 2147483648
    %v3593 = vsel %vm3591, %v3585, %v3592
    %vm3594 = vcmp.eq.s32.totalorder %v3589, 2
    %v3595 = vxor.u32 %v3585, 2147483648
    %v3596 = vsel %vm3594, %v3595, %v3586
    %v3597 = vsel %vm3590, %v3593, %v3596
    %v3598 = vsel %vm3587, nan, %v3597
    %v3599 = vand.u32 2147483647, %v1842
    %vm3600 = vcmp.le.f32.partialorder %v3599, 0.7853982
    %vm3601 = vcmp.lt.s32.totalorder %v1842, 0
    %v3602 = vand.u32 %v1842, 2139095040
    %v3603 = vshrl.u32 %v3602, 23
    %v3604 = vsub.s32 %v3603, 127
    %v3605 = vand.u32 2147483647, %v1842
    %v3606 = vand.u32 %v3605, 8388607
    %v3607 = vor.u32 %v3606, 8388608
    %v3608 = vsub.s32 0, %v3607
    %v3609 = vadd.s32 %v3604, 1
    %vm3610 = vcmp.gt.s32.totalorder %v3609, 0
    %v3611 = vsel %vm3610, %v3609, 0
    %v3612 = vshrl.u32 %v3611, 5
    %v3613 = vand.u32 %v3611, 31
    %v3614 = vsub.s32 32, %v3613
    %v3615 = vshrl.u32 683565275, %v3614
    %v3616 = vshll.u32 683565275, %v3613
    %v3617 = vshrl.u32 2475754826, %v3614
    %v3618 = vor.u32 %v3616, %v3617
    %v3619 = vshll.u32 2475754826, %v3613
    %v3620 = vshrl.u32 2131351028, %v3614
    %v3621 = vor.u32 %v3619, %v3620
    %v3622 = vshll.u32 2131351028, %v3613
    %v3623 = vshrl.u32 2102212464, %v3614
    %v3624 = vor.u32 %v3622, %v3623
    %v3625 = vshll.u32 2102212464, %v3613
    %v3626 = vshrl.u32 920167782, %v3614
    %v3627 = vor.u32 %v3625, %v3626
    %v3628 = vshll.u32 920167782, %v3613
    %v3629 = vshrl.u32 1326507024, %v3614
    %v3630 = vor.u32 %v3628, %v3629
    %vm3631 = vcmp.lt.s32.totalorder %v3612, 1
    %vm3632 = vcmp.lt.s32.totalorder %v3612, 2
    %vm3633 = vcmp.lt.s32.totalorder %v3612, 3
    %vm3634 = vcmp.lt.s32.totalorder %v3612, 4
    %v3635 = vsel %vm3631, %v3615, %v3618
    %v3636 = vsel %vm3634, %v3624, 2102212464
    %v3637 = vsel %vm3633, %v3621, %v3636
    %v3638 = vsel %vm3632, %v3635, %v3637
    %v3639 = vsel %vm3631, %v3618, %v3621
    %v3640 = vsel %vm3634, %v3627, 920167782
    %v3641 = vsel %vm3633, %v3624, %v3640
    %v3642 = vsel %vm3632, %v3639, %v3641
    %v3643 = vsel %vm3631, %v3621, %v3624
    %v3644 = vsel %vm3634, %v3630, 1326507024
    %v3645 = vsel %vm3633, %v3627, %v3644
    %v3646 = vsel %vm3632, %v3643, %v3645
    %v3647 = vshll.u32 %v3607, 8
    %v3648 = vmul.u32.u64.compose %v3647, %v3646
    %v3649 = vextract.low.u32 %v3648
    %v3650 = vextract.high.u32 %v3648
    %v3651 = vmul.u32.u64.compose %v3647, %v3642
    %v3652 = vextract.low.u32 %v3651
    %v3653 = vextract.high.u32 %v3651
    %v3654 = vmul.u32 %v3647, %v3638
    %v3655 = vadd.s32 %v3650, %v3652
    %vm3656 = vc.u32 %v3650, %v3652
    %v3657 = vadd.s32 %v3653, 1
    %v3658 = vsel %vm3656, %v3657, %v3653
    %v3659 = vadd.s32 %v3654, %v3658
    %v3660 = vadd.s32 %v3659, 536870912
    %v3661 = vshrl.u32 %v3660, 30
    %v3662 = vshll.u32 %v3661, 30
    %v3663 = vsub.s32 %v3659, %v3662
    %vm3664 = vcmp.lt.s32.totalorder %v3663, 0
    %v3665 = vsub.s32 0, %v3663
    %v3666 = vsel %vm3664, %v3665, %v3663
    %v3667 = vclz %v3666
    %v3668 = vsub.s32 %v3667, 2
    %vm3669 = vcmp.gt.s32.totalorder 0, %v3668
    %v3670 = vsel %vm3669, 0, %v3668
    %v3671 = vsub.s32 32, %v3670
    %v3672 = vshll.u32 %v3663, %v3670
    %v3673 = vshrl.u32 %v3655, %v3671
    %v3674 = vor.u32 %v3672, %v3673
    %v3675 = vsub.s32 4294967266, %v3670
    %v3676 = vadd.s32 %v3675, 127
    %v3677 = vshll.u32 %v3676, 23
    %v3678 = vor.u32 4788187, %v3677
    %v3679 = vand.u32 2147483647, %v3678
    %v3681 = vcvt.s32.f32 %v3674
    %v3682 = vmul.f32 %v3681, %v3679
    %v3683 = vxor.u32 %v3682, 2147483648
    %v3684 = vsel %vm3601, %v3683, %v3682
    %v3685 = vsub.s32 4, %v3661
    %v3686 = vsel %vm3601, %v3685, %v3661
    %v3687 = vsel %vm3600, %v1842, %v3684
    %v3688 = vsel %vm3600, 0, %v3686
    %v3689 = vcosq.f32.pop %v3687
    %v3690 = vsinq.f32.pop %v3687
    %vm3691 = vweird.f32 %v1842
    %v3692 = vadd.s32 %v3688, 3
    %v3693 = vand.u32 %v3692, 3
    %vm3694 = vcmp.lt.s32.totalorder %v3693, 2
    %vm3695 = vcmp.eq.s32.totalorder %v3693, 0
    %v3696 = vxor.u32 %v3690, 2147483648
    %v3697 = vsel %vm3695, %v3689, %v3696
    %vm3698 = vcmp.eq.s32.totalorder %v3693, 2
    %v3699 = vxor.u32 %v3689, 2147483648
    %v3700 = vsel %vm3698, %v3699, %v3690
    %v3701 = vsel %vm3694, %v3697, %v3700
    %v3702 = vsel %vm3691, nan, %v3701
    %v3703 = vand.u32 2147483647, %v1848
    %vm3704 = vcmp.le.f32.partialorder %v3703, 0.7853982
    %vm3705 = vcmp.lt.s32.totalorder %v1848, 0
    %v3706 = vand.u32 %v1848, 2139095040
    %v3707 = vshrl.u32 %v3706, 23
    %v3708 = vsub.s32 %v3707, 127
    %v3709 = vand.u32 2147483647, %v1848
    %v3710 = vand.u32 %v3709, 8388607
    %v3711 = vor.u32 %v3710, 8388608
    %v3712 = vsub.s32 0, %v3711
    %v3713 = vadd.s32 %v3708, 1
    %vm3714 = vcmp.gt.s32.totalorder %v3713, 0
    %v3715 = vsel %vm3714, %v3713, 0
    %v3716 = vshrl.u32 %v3715, 5
    %v3717 = vand.u32 %v3715, 31
    %v3718 = vsub.s32 32, %v3717
    %v3719 = vshrl.u32 683565275, %v3718
    %v3720 = vshll.u32 683565275, %v3717
    %v3721 = vshrl.u32 2475754826, %v3718
    %v3722 = vor.u32 %v3720, %v3721
    %v3723 = vshll.u32 2475754826, %v3717
    %v3724 = vshrl.u32 2131351028, %v3718
    %v3725 = vor.u32 %v3723, %v3724
    %v3726 = vshll.u32 2131351028, %v3717
    %v3727 = vshrl.u32 2102212464, %v3718
    %v3728 = vor.u32 %v3726, %v3727
    %v3729 = vshll.u32 2102212464, %v3717
    %v3730 = vshrl.u32 920167782, %v3718
    %v3731 = vor.u32 %v3729, %v3730
    %v3732 = vshll.u32 920167782, %v3717
    %v3733 = vshrl.u32 1326507024, %v3718
    %v3734 = vor.u32 %v3732, %v3733
    %vm3735 = vcmp.lt.s32.totalorder %v3716, 1
    %vm3736 = vcmp.lt.s32.totalorder %v3716, 2
    %vm3737 = vcmp.lt.s32.totalorder %v3716, 3
    %vm3738 = vcmp.lt.s32.totalorder %v3716, 4
    %v3739 = vsel %vm3735, %v3719, %v3722
    %v3740 = vsel %vm3738, %v3728, 2102212464
    %v3741 = vsel %vm3737, %v3725, %v3740
    %v3742 = vsel %vm3736, %v3739, %v3741
    %v3743 = vsel %vm3735, %v3722, %v3725
    %v3744 = vsel %vm3738, %v3731, 920167782
    %v3745 = vsel %vm3737, %v3728, %v3744
    %v3746 = vsel %vm3736, %v3743, %v3745
    %v3747 = vsel %vm3735, %v3725, %v3728
    %v3748 = vsel %vm3738, %v3734, 1326507024
    %v3749 = vsel %vm3737, %v3731, %v3748
    %v3750 = vsel %vm3736, %v3747, %v3749
    %v3751 = vshll.u32 %v3711, 8
    %v3752 = vmul.u32.u64.compose %v3751, %v3750
    %v3753 = vextract.low.u32 %v3752
    %v3754 = vextract.high.u32 %v3752
    %v3755 = vmul.u32.u64.compose %v3751, %v3746
    %v3756 = vextract.low.u32 %v3755
    %v3757 = vextract.high.u32 %v3755
    %v3758 = vmul.u32 %v3751, %v3742
    %v3759 = vadd.s32 %v3754, %v3756
    %vm3760 = vc.u32 %v3754, %v3756
    %v3761 = vadd.s32 %v3757, 1
    %v3762 = vsel %vm3760, %v3761, %v3757
    %v3763 = vadd.s32 %v3758, %v3762
    %v3764 = vadd.s32 %v3763, 536870912
    %v3765 = vshrl.u32 %v3764, 30
    %v3766 = vshll.u32 %v3765, 30
    %v3767 = vsub.s32 %v3763, %v3766
    %vm3768 = vcmp.lt.s32.totalorder %v3767, 0
    %v3769 = vsub.s32 0, %v3767
    %v3770 = vsel %vm3768, %v3769, %v3767
    %v3771 = vclz %v3770
    %v3772 = vsub.s32 %v3771, 2
    %vm3773 = vcmp.gt.s32.totalorder 0, %v3772
    %v3774 = vsel %vm3773, 0, %v3772
    %v3775 = vsub.s32 32, %v3774
    %v3776 = vshll.u32 %v3767, %v3774
    %v3777 = vshrl.u32 %v3759, %v3775
    %v3778 = vor.u32 %v3776, %v3777
    %v3779 = vsub.s32 4294967266, %v3774
    %v3780 = vadd.s32 %v3779, 127
    %v3781 = vshll.u32 %v3780, 23
    %v3782 = vor.u32 4788187, %v3781
    %v3783 = vand.u32 2147483647, %v3782
    %v3785 = vcvt.s32.f32 %v3778
    %v3786 = vmul.f32 %v3785, %v3783
    %v3787 = vxor.u32 %v3786, 2147483648
    %v3788 = vsel %vm3705, %v3787, %v3786
    %v3789 = vsub.s32 4, %v3765
    %v3790 = vsel %vm3705, %v3789, %v3765
    %v3791 = vsel %vm3704, %v1848, %v3788
    %v3792 = vsel %vm3704, 0, %v3790
    %v3793 = vcosq.f32.pop %v3791
    %v3794 = vsinq.f32.pop %v3791
    %vm3795 = vweird.f32 %v1848
    %v3796 = vadd.s32 %v3792, 3
    %v3797 = vand.u32 %v3796, 3
    %vm3798 = vcmp.lt.s32.totalorder %v3797, 2
    %vm3799 = vcmp.eq.s32.totalorder %v3797, 0
    %v3800 = vxor.u32 %v3794, 2147483648
    %v3801 = vsel %vm3799, %v3793, %v3800
    %vm3802 = vcmp.eq.s32.totalorder %v3797, 2
    %v3803 = vxor.u32 %v3793, 2147483648
    %v3804 = vsel %vm3802, %v3803, %v3794
    %v3805 = vsel %vm3798, %v3801, %v3804
    %v3806 = vsel %vm3795, nan, %v3805
    %v3807 = vand.u32 2147483647, %v1854
    %vm3808 = vcmp.le.f32.partialorder %v3807, 0.7853982
    %vm3809 = vcmp.lt.s32.totalorder %v1854, 0
    %v3810 = vand.u32 %v1854, 2139095040
    %v3811 = vshrl.u32 %v3810, 23
    %v3812 = vsub.s32 %v3811, 127
    %v3813 = vand.u32 2147483647, %v1854
    %v3814 = vand.u32 %v3813, 8388607
    %v3815 = vor.u32 %v3814, 8388608
    %v3816 = vsub.s32 0, %v3815
    %v3817 = vadd.s32 %v3812, 1
    %vm3818 = vcmp.gt.s32.totalorder %v3817, 0
    %v3819 = vsel %vm3818, %v3817, 0
    %v3820 = vshrl.u32 %v3819, 5
    %v3821 = vand.u32 %v3819, 31
    %v3822 = vsub.s32 32, %v3821
    %v3823 = vshrl.u32 683565275, %v3822
    %v3824 = vshll.u32 683565275, %v3821
    %v3825 = vshrl.u32 2475754826, %v3822
    %v3826 = vor.u32 %v3824, %v3825
    %v3827 = vshll.u32 2475754826, %v3821
    %v3828 = vshrl.u32 2131351028, %v3822
    %v3829 = vor.u32 %v3827, %v3828
    %v3830 = vshll.u32 2131351028, %v3821
    %v3831 = vshrl.u32 2102212464, %v3822
    %v3832 = vor.u32 %v3830, %v3831
    %v3833 = vshll.u32 2102212464, %v3821
    %v3834 = vshrl.u32 920167782, %v3822
    %v3835 = vor.u32 %v3833, %v3834
    %v3836 = vshll.u32 920167782, %v3821
    %v3837 = vshrl.u32 1326507024, %v3822
    %v3838 = vor.u32 %v3836, %v3837
    %vm3839 = vcmp.lt.s32.totalorder %v3820, 1
    %vm3840 = vcmp.lt.s32.totalorder %v3820, 2
    %vm3841 = vcmp.lt.s32.totalorder %v3820, 3
    %vm3842 = vcmp.lt.s32.totalorder %v3820, 4
    %v3843 = vsel %vm3839, %v3823, %v3826
    %v3844 = vsel %vm3842, %v3832, 2102212464
    %v3845 = vsel %vm3841, %v3829, %v3844
    %v3846 = vsel %vm3840, %v3843, %v3845
    %v3847 = vsel %vm3839, %v3826, %v3829
    %v3848 = vsel %vm3842, %v3835, 920167782
    %v3849 = vsel %vm3841, %v3832, %v3848
    %v3850 = vsel %vm3840, %v3847, %v3849
    %v3851 = vsel %vm3839, %v3829, %v3832
    %v3852 = vsel %vm3842, %v3838, 1326507024
    %v3853 = vsel %vm3841, %v3835, %v3852
    %v3854 = vsel %vm3840, %v3851, %v3853
    %v3855 = vshll.u32 %v3815, 8
    %v3856 = vmul.u32.u64.compose %v3855, %v3854
    %v3857 = vextract.low.u32 %v3856
    %v3858 = vextract.high.u32 %v3856
    %v3859 = vmul.u32.u64.compose %v3855, %v3850
    %v3860 = vextract.low.u32 %v3859
    %v3861 = vextract.high.u32 %v3859
    %v3862 = vmul.u32 %v3855, %v3846
    %v3863 = vadd.s32 %v3858, %v3860
    %vm3864 = vc.u32 %v3858, %v3860
    %v3865 = vadd.s32 %v3861, 1
    %v3866 = vsel %vm3864, %v3865, %v3861
    %v3867 = vadd.s32 %v3862, %v3866
    %v3868 = vadd.s32 %v3867, 536870912
    %v3869 = vshrl.u32 %v3868, 30
    %v3870 = vshll.u32 %v3869, 30
    %v3871 = vsub.s32 %v3867, %v3870
    %vm3872 = vcmp.lt.s32.totalorder %v3871, 0
    %v3873 = vsub.s32 0, %v3871
    %v3874 = vsel %vm3872, %v3873, %v3871
    %v3875 = vclz %v3874
    %v3876 = vsub.s32 %v3875, 2
    %vm3877 = vcmp.gt.s32.totalorder 0, %v3876
    %v3878 = vsel %vm3877, 0, %v3876
    %v3879 = vsub.s32 32, %v3878
    %v3880 = vshll.u32 %v3871, %v3878
    %v3881 = vshrl.u32 %v3863, %v3879
    %v3882 = vor.u32 %v3880, %v3881
    %v3883 = vsub.s32 4294967266, %v3878
    %v3884 = vadd.s32 %v3883, 127
    %v3885 = vshll.u32 %v3884, 23
    %v3886 = vor.u32 4788187, %v3885
    %v3887 = vand.u32 2147483647, %v3886
    %v3889 = vcvt.s32.f32 %v3882
    %v3890 = vmul.f32 %v3889, %v3887
    %v3891 = vxor.u32 %v3890, 2147483648
    %v3892 = vsel %vm3809, %v3891, %v3890
    %v3893 = vsub.s32 4, %v3869
    %v3894 = vsel %vm3809, %v3893, %v3869
    %v3895 = vsel %vm3808, %v1854, %v3892
    %v3896 = vsel %vm3808, 0, %v3894
    %v3897 = vcosq.f32.pop %v3895
    %v3898 = vsinq.f32.pop %v3895
    %vm3899 = vweird.f32 %v1854
    %v3900 = vadd.s32 %v3896, 3
    %v3901 = vand.u32 %v3900, 3
    %vm3902 = vcmp.lt.s32.totalorder %v3901, 2
    %vm3903 = vcmp.eq.s32.totalorder %v3901, 0
    %v3904 = vxor.u32 %v3898, 2147483648
    %v3905 = vsel %vm3903, %v3897, %v3904
    %vm3906 = vcmp.eq.s32.totalorder %v3901, 2
    %v3907 = vxor.u32 %v3897, 2147483648
    %v3908 = vsel %vm3906, %v3907, %v3898
    %v3909 = vsel %vm3902, %v3905, %v3908
    %v3910 = vsel %vm3899, nan, %v3909
    %v3911 = vand.u32 2147483647, %v1860
    %vm3912 = vcmp.le.f32.partialorder %v3911, 0.7853982
    %vm3913 = vcmp.lt.s32.totalorder %v1860, 0
    %v3914 = vand.u32 %v1860, 2139095040
    %v3915 = vshrl.u32 %v3914, 23
    %v3916 = vsub.s32 %v3915, 127
    %v3917 = vand.u32 2147483647, %v1860
    %v3918 = vand.u32 %v3917, 8388607
    %v3919 = vor.u32 %v3918, 8388608
    %v3920 = vsub.s32 0, %v3919
    %v3921 = vadd.s32 %v3916, 1
    %vm3922 = vcmp.gt.s32.totalorder %v3921, 0
    %v3923 = vsel %vm3922, %v3921, 0
    %v3924 = vshrl.u32 %v3923, 5
    %v3925 = vand.u32 %v3923, 31
    %v3926 = vsub.s32 32, %v3925
    %v3927 = vshrl.u32 683565275, %v3926
    %v3928 = vshll.u32 683565275, %v3925
    %v3929 = vshrl.u32 2475754826, %v3926
    %v3930 = vor.u32 %v3928, %v3929
    %v3931 = vshll.u32 2475754826, %v3925
    %v3932 = vshrl.u32 2131351028, %v3926
    %v3933 = vor.u32 %v3931, %v3932
    %v3934 = vshll.u32 2131351028, %v3925
    %v3935 = vshrl.u32 2102212464, %v3926
    %v3936 = vor.u32 %v3934, %v3935
    %v3937 = vshll.u32 2102212464, %v3925
    %v3938 = vshrl.u32 920167782, %v3926
    %v3939 = vor.u32 %v3937, %v3938
    %v3940 = vshll.u32 920167782, %v3925
    %v3941 = vshrl.u32 1326507024, %v3926
    %v3942 = vor.u32 %v3940, %v3941
    %vm3943 = vcmp.lt.s32.totalorder %v3924, 1
    %vm3944 = vcmp.lt.s32.totalorder %v3924, 2
    %vm3945 = vcmp.lt.s32.totalorder %v3924, 3
    %vm3946 = vcmp.lt.s32.totalorder %v3924, 4
    %v3947 = vsel %vm3943, %v3927, %v3930
    %v3948 = vsel %vm3946, %v3936, 2102212464
    %v3949 = vsel %vm3945, %v3933, %v3948
    %v3950 = vsel %vm3944, %v3947, %v3949
    %v3951 = vsel %vm3943, %v3930, %v3933
    %v3952 = vsel %vm3946, %v3939, 920167782
    %v3953 = vsel %vm3945, %v3936, %v3952
    %v3954 = vsel %vm3944, %v3951, %v3953
    %v3955 = vsel %vm3943, %v3933, %v3936
    %v3956 = vsel %vm3946, %v3942, 1326507024
    %v3957 = vsel %vm3945, %v3939, %v3956
    %v3958 = vsel %vm3944, %v3955, %v3957
    %v3959 = vshll.u32 %v3919, 8
    %v3960 = vmul.u32.u64.compose %v3959, %v3958
    %v3961 = vextract.low.u32 %v3960
    %v3962 = vextract.high.u32 %v3960
    %v3963 = vmul.u32.u64.compose %v3959, %v3954
    %v3964 = vextract.low.u32 %v3963
    %v3965 = vextract.high.u32 %v3963
    %v3966 = vmul.u32 %v3959, %v3950
    %v3967 = vadd.s32 %v3962, %v3964
    %vm3968 = vc.u32 %v3962, %v3964
    %v3969 = vadd.s32 %v3965, 1
    %v3970 = vsel %vm3968, %v3969, %v3965
    %v3971 = vadd.s32 %v3966, %v3970
    %v3972 = vadd.s32 %v3971, 536870912
    %v3973 = vshrl.u32 %v3972, 30
    %v3974 = vshll.u32 %v3973, 30
    %v3975 = vsub.s32 %v3971, %v3974
    %vm3976 = vcmp.lt.s32.totalorder %v3975, 0
    %v3977 = vsub.s32 0, %v3975
    %v3978 = vsel %vm3976, %v3977, %v3975
    %v3979 = vclz %v3978
    %v3980 = vsub.s32 %v3979, 2
    %vm3981 = vcmp.gt.s32.totalorder 0, %v3980
    %v3982 = vsel %vm3981, 0, %v3980
    %v3983 = vsub.s32 32, %v3982
    %v3984 = vshll.u32 %v3975, %v3982
    %v3985 = vshrl.u32 %v3967, %v3983
    %v3986 = vor.u32 %v3984, %v3985
    %v3987 = vsub.s32 4294967266, %v3982
    %v3988 = vadd.s32 %v3987, 127
    %v3989 = vshll.u32 %v3988, 23
    %v3990 = vor.u32 4788187, %v3989
    %v3991 = vand.u32 2147483647, %v3990
    %v3993 = vcvt.s32.f32 %v3986
    %v3994 = vmul.f32 %v3993, %v3991
    %v3995 = vxor.u32 %v3994, 2147483648
    %v3996 = vsel %vm3913, %v3995, %v3994
    %v3997 = vsub.s32 4, %v3973
    %v3998 = vsel %vm3913, %v3997, %v3973
    %v3999 = vsel %vm3912, %v1860, %v3996
    %v4000 = vsel %vm3912, 0, %v3998
    %v4001 = vcosq.f32.pop %v3999
    %v4002 = vsinq.f32.pop %v3999
    %vm4003 = vweird.f32 %v1860
    %v4004 = vadd.s32 %v4000, 3
    %v4005 = vand.u32 %v4004, 3
    %vm4006 = vcmp.lt.s32.totalorder %v4005, 2
    %vm4007 = vcmp.eq.s32.totalorder %v4005, 0
    %v4008 = vxor.u32 %v4002, 2147483648
    %v4009 = vsel %vm4007, %v4001, %v4008
    %vm4010 = vcmp.eq.s32.totalorder %v4005, 2
    %v4011 = vxor.u32 %v4001, 2147483648
    %v4012 = vsel %vm4010, %v4011, %v4002
    %v4013 = vsel %vm4006, %v4009, %v4012
    %v4014 = vsel %vm4003, nan, %v4013
    %v4015 = vand.u32 2147483647, %v1866
    %vm4016 = vcmp.le.f32.partialorder %v4015, 0.7853982
    %vm4017 = vcmp.lt.s32.totalorder %v1866, 0
    %v4018 = vand.u32 %v1866, 2139095040
    %v4019 = vshrl.u32 %v4018, 23
    %v4020 = vsub.s32 %v4019, 127
    %v4021 = vand.u32 2147483647, %v1866
    %v4022 = vand.u32 %v4021, 8388607
    %v4023 = vor.u32 %v4022, 8388608
    %v4024 = vsub.s32 0, %v4023
    %v4025 = vadd.s32 %v4020, 1
    %vm4026 = vcmp.gt.s32.totalorder %v4025, 0
    %v4027 = vsel %vm4026, %v4025, 0
    %v4028 = vshrl.u32 %v4027, 5
    %v4029 = vand.u32 %v4027, 31
    %v4030 = vsub.s32 32, %v4029
    %v4031 = vshrl.u32 683565275, %v4030
    %v4032 = vshll.u32 683565275, %v4029
    %v4033 = vshrl.u32 2475754826, %v4030
    %v4034 = vor.u32 %v4032, %v4033
    %v4035 = vshll.u32 2475754826, %v4029
    %v4036 = vshrl.u32 2131351028, %v4030
    %v4037 = vor.u32 %v4035, %v4036
    %v4038 = vshll.u32 2131351028, %v4029
    %v4039 = vshrl.u32 2102212464, %v4030
    %v4040 = vor.u32 %v4038, %v4039
    %v4041 = vshll.u32 2102212464, %v4029
    %v4042 = vshrl.u32 920167782, %v4030
    %v4043 = vor.u32 %v4041, %v4042
    %v4044 = vshll.u32 920167782, %v4029
    %v4045 = vshrl.u32 1326507024, %v4030
    %v4046 = vor.u32 %v4044, %v4045
    %vm4047 = vcmp.lt.s32.totalorder %v4028, 1
    %vm4048 = vcmp.lt.s32.totalorder %v4028, 2
    %vm4049 = vcmp.lt.s32.totalorder %v4028, 3
    %vm4050 = vcmp.lt.s32.totalorder %v4028, 4
    %v4051 = vsel %vm4047, %v4031, %v4034
    %v4052 = vsel %vm4050, %v4040, 2102212464
    %v4053 = vsel %vm4049, %v4037, %v4052
    %v4054 = vsel %vm4048, %v4051, %v4053
    %v4055 = vsel %vm4047, %v4034, %v4037
    %v4056 = vsel %vm4050, %v4043, 920167782
    %v4057 = vsel %vm4049, %v4040, %v4056
    %v4058 = vsel %vm4048, %v4055, %v4057
    %v4059 = vsel %vm4047, %v4037, %v4040
    %v4060 = vsel %vm4050, %v4046, 1326507024
    %v4061 = vsel %vm4049, %v4043, %v4060
    %v4062 = vsel %vm4048, %v4059, %v4061
    %v4063 = vshll.u32 %v4023, 8
    %v4064 = vmul.u32.u64.compose %v4063, %v4062
    %v4065 = vextract.low.u32 %v4064
    %v4066 = vextract.high.u32 %v4064
    %v4067 = vmul.u32.u64.compose %v4063, %v4058
    %v4068 = vextract.low.u32 %v4067
    %v4069 = vextract.high.u32 %v4067
    %v4070 = vmul.u32 %v4063, %v4054
    %v4071 = vadd.s32 %v4066, %v4068
    %vm4072 = vc.u32 %v4066, %v4068
    %v4073 = vadd.s32 %v4069, 1
    %v4074 = vsel %vm4072, %v4073, %v4069
    %v4075 = vadd.s32 %v4070, %v4074
    %v4076 = vadd.s32 %v4075, 536870912
    %v4077 = vshrl.u32 %v4076, 30
    %v4078 = vshll.u32 %v4077, 30
    %v4079 = vsub.s32 %v4075, %v4078
    %vm4080 = vcmp.lt.s32.totalorder %v4079, 0
    %v4081 = vsub.s32 0, %v4079
    %v4082 = vsel %vm4080, %v4081, %v4079
    %v4083 = vclz %v4082
    %v4084 = vsub.s32 %v4083, 2
    %vm4085 = vcmp.gt.s32.totalorder 0, %v4084
    %v4086 = vsel %vm4085, 0, %v4084
    %v4087 = vsub.s32 32, %v4086
    %v4088 = vshll.u32 %v4079, %v4086
    %v4089 = vshrl.u32 %v4071, %v4087
    %v4090 = vor.u32 %v4088, %v4089
    %v4091 = vsub.s32 4294967266, %v4086
    %v4092 = vadd.s32 %v4091, 127
    %v4093 = vshll.u32 %v4092, 23
    %v4094 = vor.u32 4788187, %v4093
    %v4095 = vand.u32 2147483647, %v4094
    %v4097 = vcvt.s32.f32 %v4090
    %v4098 = vmul.f32 %v4097, %v4095
    %v4099 = vxor.u32 %v4098, 2147483648
    %v4100 = vsel %vm4017, %v4099, %v4098
    %v4101 = vsub.s32 4, %v4077
    %v4102 = vsel %vm4017, %v4101, %v4077
    %v4103 = vsel %vm4016, %v1866, %v4100
    %v4104 = vsel %vm4016, 0, %v4102
    %v4105 = vcosq.f32.pop %v4103
    %v4106 = vsinq.f32.pop %v4103
    %vm4107 = vweird.f32 %v1866
    %v4108 = vadd.s32 %v4104, 3
    %v4109 = vand.u32 %v4108, 3
    %vm4110 = vcmp.lt.s32.totalorder %v4109, 2
    %vm4111 = vcmp.eq.s32.totalorder %v4109, 0
    %v4112 = vxor.u32 %v4106, 2147483648
    %v4113 = vsel %vm4111, %v4105, %v4112
    %vm4114 = vcmp.eq.s32.totalorder %v4109, 2
    %v4115 = vxor.u32 %v4105, 2147483648
    %v4116 = vsel %vm4114, %v4115, %v4106
    %v4117 = vsel %vm4110, %v4113, %v4116
    %v4118 = vsel %vm4107, nan, %v4117
    %v4119 = vand.u32 2147483647, %v1872
    %vm4120 = vcmp.le.f32.partialorder %v4119, 0.7853982
    %vm4121 = vcmp.lt.s32.totalorder %v1872, 0
    %v4122 = vand.u32 %v1872, 2139095040
    %v4123 = vshrl.u32 %v4122, 23
    %v4124 = vsub.s32 %v4123, 127
    %v4125 = vand.u32 2147483647, %v1872
    %v4126 = vand.u32 %v4125, 8388607
    %v4127 = vor.u32 %v4126, 8388608
    %v4128 = vsub.s32 0, %v4127
    %v4129 = vadd.s32 %v4124, 1
    %vm4130 = vcmp.gt.s32.totalorder %v4129, 0
    %v4131 = vsel %vm4130, %v4129, 0
    %v4132 = vshrl.u32 %v4131, 5
    %v4133 = vand.u32 %v4131, 31
    %v4134 = vsub.s32 32, %v4133
    %v4135 = vshrl.u32 683565275, %v4134
    %v4136 = vshll.u32 683565275, %v4133
    %v4137 = vshrl.u32 2475754826, %v4134
    %v4138 = vor.u32 %v4136, %v4137
    %v4139 = vshll.u32 2475754826, %v4133
    %v4140 = vshrl.u32 2131351028, %v4134
    %v4141 = vor.u32 %v4139, %v4140
    %v4142 = vshll.u32 2131351028, %v4133
    %v4143 = vshrl.u32 2102212464, %v4134
    %v4144 = vor.u32 %v4142, %v4143
    %v4145 = vshll.u32 2102212464, %v4133
    %v4146 = vshrl.u32 920167782, %v4134
    %v4147 = vor.u32 %v4145, %v4146
    %v4148 = vshll.u32 920167782, %v4133
    %v4149 = vshrl.u32 1326507024, %v4134
    %v4150 = vor.u32 %v4148, %v4149
    %vm4151 = vcmp.lt.s32.totalorder %v4132, 1
    %vm4152 = vcmp.lt.s32.totalorder %v4132, 2
    %vm4153 = vcmp.lt.s32.totalorder %v4132, 3
    %vm4154 = vcmp.lt.s32.totalorder %v4132, 4
    %v4155 = vsel %vm4151, %v4135, %v4138
    %v4156 = vsel %vm4154, %v4144, 2102212464
    %v4157 = vsel %vm4153, %v4141, %v4156
    %v4158 = vsel %vm4152, %v4155, %v4157
    %v4159 = vsel %vm4151, %v4138, %v4141
    %v4160 = vsel %vm4154, %v4147, 920167782
    %v4161 = vsel %vm4153, %v4144, %v4160
    %v4162 = vsel %vm4152, %v4159, %v4161
    %v4163 = vsel %vm4151, %v4141, %v4144
    %v4164 = vsel %vm4154, %v4150, 1326507024
    %v4165 = vsel %vm4153, %v4147, %v4164
    %v4166 = vsel %vm4152, %v4163, %v4165
    %v4167 = vshll.u32 %v4127, 8
    %v4168 = vmul.u32.u64.compose %v4167, %v4166
    %v4169 = vextract.low.u32 %v4168
    %v4170 = vextract.high.u32 %v4168
    %v4171 = vmul.u32.u64.compose %v4167, %v4162
    %v4172 = vextract.low.u32 %v4171
    %v4173 = vextract.high.u32 %v4171
    %v4174 = vmul.u32 %v4167, %v4158
    %v4175 = vadd.s32 %v4170, %v4172
    %vm4176 = vc.u32 %v4170, %v4172
    %v4177 = vadd.s32 %v4173, 1
    %v4178 = vsel %vm4176, %v4177, %v4173
    %v4179 = vadd.s32 %v4174, %v4178
    %v4180 = vadd.s32 %v4179, 536870912
    %v4181 = vshrl.u32 %v4180, 30
    %v4182 = vshll.u32 %v4181, 30
    %v4183 = vsub.s32 %v4179, %v4182
    %vm4184 = vcmp.lt.s32.totalorder %v4183, 0
    %v4185 = vsub.s32 0, %v4183
    %v4186 = vsel %vm4184, %v4185, %v4183
    %v4187 = vclz %v4186
    %v4188 = vsub.s32 %v4187, 2
    %vm4189 = vcmp.gt.s32.totalorder 0, %v4188
    %v4190 = vsel %vm4189, 0, %v4188
    %v4191 = vsub.s32 32, %v4190
    %v4192 = vshll.u32 %v4183, %v4190
    %v4193 = vshrl.u32 %v4175, %v4191
    %v4194 = vor.u32 %v4192, %v4193
    %v4195 = vsub.s32 4294967266, %v4190
    %v4196 = vadd.s32 %v4195, 127
    %v4197 = vshll.u32 %v4196, 23
    %v4198 = vor.u32 4788187, %v4197
    %v4199 = vand.u32 2147483647, %v4198
    %v4201 = vcvt.s32.f32 %v4194
    %v4202 = vmul.f32 %v4201, %v4199
    %v4203 = vxor.u32 %v4202, 2147483648
    %v4204 = vsel %vm4121, %v4203, %v4202
    %v4205 = vsub.s32 4, %v4181
    %v4206 = vsel %vm4121, %v4205, %v4181
    %v4207 = vsel %vm4120, %v1872, %v4204
    %v4208 = vsel %vm4120, 0, %v4206
    %v4209 = vcosq.f32.pop %v4207
    %v4210 = vsinq.f32.pop %v4207
    %vm4211 = vweird.f32 %v1872
    %v4212 = vadd.s32 %v4208, 3
    %v4213 = vand.u32 %v4212, 3
    %vm4214 = vcmp.lt.s32.totalorder %v4213, 2
    %vm4215 = vcmp.eq.s32.totalorder %v4213, 0
    %v4216 = vxor.u32 %v4210, 2147483648
    %v4217 = vsel %vm4215, %v4209, %v4216
    %vm4218 = vcmp.eq.s32.totalorder %v4213, 2
    %v4219 = vxor.u32 %v4209, 2147483648
    %v4220 = vsel %vm4218, %v4219, %v4210
    %v4221 = vsel %vm4214, %v4217, %v4220
    %v4222 = vsel %vm4211, nan, %v4221
    %v4223 = vand.u32 2147483647, %v1878
    %vm4224 = vcmp.le.f32.partialorder %v4223, 0.7853982
    %vm4225 = vcmp.lt.s32.totalorder %v1878, 0
    %v4226 = vand.u32 %v1878, 2139095040
    %v4227 = vshrl.u32 %v4226, 23
    %v4228 = vsub.s32 %v4227, 127
    %v4229 = vand.u32 2147483647, %v1878
    %v4230 = vand.u32 %v4229, 8388607
    %v4231 = vor.u32 %v4230, 8388608
    %v4232 = vsub.s32 0, %v4231
    %v4233 = vadd.s32 %v4228, 1
    %vm4234 = vcmp.gt.s32.totalorder %v4233, 0
    %v4235 = vsel %vm4234, %v4233, 0
    %v4236 = vshrl.u32 %v4235, 5
    %v4237 = vand.u32 %v4235, 31
    %v4238 = vsub.s32 32, %v4237
    %v4239 = vshrl.u32 683565275, %v4238
    %v4240 = vshll.u32 683565275, %v4237
    %v4241 = vshrl.u32 2475754826, %v4238
    %v4242 = vor.u32 %v4240, %v4241
    %v4243 = vshll.u32 2475754826, %v4237
    %v4244 = vshrl.u32 2131351028, %v4238
    %v4245 = vor.u32 %v4243, %v4244
    %v4246 = vshll.u32 2131351028, %v4237
    %v4247 = vshrl.u32 2102212464, %v4238
    %v4248 = vor.u32 %v4246, %v4247
    %v4249 = vshll.u32 2102212464, %v4237
    %v4250 = vshrl.u32 920167782, %v4238
    %v4251 = vor.u32 %v4249, %v4250
    %v4252 = vshll.u32 920167782, %v4237
    %v4253 = vshrl.u32 1326507024, %v4238
    %v4254 = vor.u32 %v4252, %v4253
    %vm4255 = vcmp.lt.s32.totalorder %v4236, 1
    %vm4256 = vcmp.lt.s32.totalorder %v4236, 2
    %vm4257 = vcmp.lt.s32.totalorder %v4236, 3
    %vm4258 = vcmp.lt.s32.totalorder %v4236, 4
    %v4259 = vsel %vm4255, %v4239, %v4242
    %v4260 = vsel %vm4258, %v4248, 2102212464
    %v4261 = vsel %vm4257, %v4245, %v4260
    %v4262 = vsel %vm4256, %v4259, %v4261
    %v4263 = vsel %vm4255, %v4242, %v4245
    %v4264 = vsel %vm4258, %v4251, 920167782
    %v4265 = vsel %vm4257, %v4248, %v4264
    %v4266 = vsel %vm4256, %v4263, %v4265
    %v4267 = vsel %vm4255, %v4245, %v4248
    %v4268 = vsel %vm4258, %v4254, 1326507024
    %v4269 = vsel %vm4257, %v4251, %v4268
    %v4270 = vsel %vm4256, %v4267, %v4269
    %v4271 = vshll.u32 %v4231, 8
    %v4272 = vmul.u32.u64.compose %v4271, %v4270
    %v4273 = vextract.low.u32 %v4272
    %v4274 = vextract.high.u32 %v4272
    %v4275 = vmul.u32.u64.compose %v4271, %v4266
    %v4276 = vextract.low.u32 %v4275
    %v4277 = vextract.high.u32 %v4275
    %v4278 = vmul.u32 %v4271, %v4262
    %v4279 = vadd.s32 %v4274, %v4276
    %vm4280 = vc.u32 %v4274, %v4276
    %v4281 = vadd.s32 %v4277, 1
    %v4282 = vsel %vm4280, %v4281, %v4277
    %v4283 = vadd.s32 %v4278, %v4282
    %v4284 = vadd.s32 %v4283, 536870912
    %v4285 = vshrl.u32 %v4284, 30
    %v4286 = vshll.u32 %v4285, 30
    %v4287 = vsub.s32 %v4283, %v4286
    %vm4288 = vcmp.lt.s32.totalorder %v4287, 0
    %v4289 = vsub.s32 0, %v4287
    %v4290 = vsel %vm4288, %v4289, %v4287
    %v4291 = vclz %v4290
    %v4292 = vsub.s32 %v4291, 2
    %vm4293 = vcmp.gt.s32.totalorder 0, %v4292
    %v4294 = vsel %vm4293, 0, %v4292
    %v4295 = vsub.s32 32, %v4294
    %v4296 = vshll.u32 %v4287, %v4294
    %v4297 = vshrl.u32 %v4279, %v4295
    %v4298 = vor.u32 %v4296, %v4297
    %v4299 = vsub.s32 4294967266, %v4294
    %v4300 = vadd.s32 %v4299, 127
    %v4301 = vshll.u32 %v4300, 23
    %v4302 = vor.u32 4788187, %v4301
    %v4303 = vand.u32 2147483647, %v4302
    %v4305 = vcvt.s32.f32 %v4298
    %v4306 = vmul.f32 %v4305, %v4303
    %v4307 = vxor.u32 %v4306, 2147483648
    %v4308 = vsel %vm4225, %v4307, %v4306
    %v4309 = vsub.s32 4, %v4285
    %v4310 = vsel %vm4225, %v4309, %v4285
    %v4311 = vsel %vm4224, %v1878, %v4308
    %v4312 = vsel %vm4224, 0, %v4310
    %v4313 = vcosq.f32.pop %v4311
    %v4314 = vsinq.f32.pop %v4311
    %vm4315 = vweird.f32 %v1878
    %v4316 = vadd.s32 %v4312, 3
    %v4317 = vand.u32 %v4316, 3
    %vm4318 = vcmp.lt.s32.totalorder %v4317, 2
    %vm4319 = vcmp.eq.s32.totalorder %v4317, 0
    %v4320 = vxor.u32 %v4314, 2147483648
    %v4321 = vsel %vm4319, %v4313, %v4320
    %vm4322 = vcmp.eq.s32.totalorder %v4317, 2
    %v4323 = vxor.u32 %v4313, 2147483648
    %v4324 = vsel %vm4322, %v4323, %v4314
    %v4325 = vsel %vm4318, %v4321, %v4324
    %v4326 = vsel %vm4315, nan, %v4325
    %v4327 = vand.u32 2147483647, %v1884
    %vm4328 = vcmp.le.f32.partialorder %v4327, 0.7853982
    %vm4329 = vcmp.lt.s32.totalorder %v1884, 0
    %v4330 = vand.u32 %v1884, 2139095040
    %v4331 = vshrl.u32 %v4330, 23
    %v4332 = vsub.s32 %v4331, 127
    %v4333 = vand.u32 2147483647, %v1884
    %v4334 = vand.u32 %v4333, 8388607
    %v4335 = vor.u32 %v4334, 8388608
    %v4336 = vsub.s32 0, %v4335
    %v4337 = vadd.s32 %v4332, 1
    %vm4338 = vcmp.gt.s32.totalorder %v4337, 0
    %v4339 = vsel %vm4338, %v4337, 0
    %v4340 = vshrl.u32 %v4339, 5
    %v4341 = vand.u32 %v4339, 31
    %v4342 = vsub.s32 32, %v4341
    %v4343 = vshrl.u32 683565275, %v4342
    %v4344 = vshll.u32 683565275, %v4341
    %v4345 = vshrl.u32 2475754826, %v4342
    %v4346 = vor.u32 %v4344, %v4345
    %v4347 = vshll.u32 2475754826, %v4341
    %v4348 = vshrl.u32 2131351028, %v4342
    %v4349 = vor.u32 %v4347, %v4348
    %v4350 = vshll.u32 2131351028, %v4341
    %v4351 = vshrl.u32 2102212464, %v4342
    %v4352 = vor.u32 %v4350, %v4351
    %v4353 = vshll.u32 2102212464, %v4341
    %v4354 = vshrl.u32 920167782, %v4342
    %v4355 = vor.u32 %v4353, %v4354
    %v4356 = vshll.u32 920167782, %v4341
    %v4357 = vshrl.u32 1326507024, %v4342
    %v4358 = vor.u32 %v4356, %v4357
    %vm4359 = vcmp.lt.s32.totalorder %v4340, 1
    %vm4360 = vcmp.lt.s32.totalorder %v4340, 2
    %vm4361 = vcmp.lt.s32.totalorder %v4340, 3
    %vm4362 = vcmp.lt.s32.totalorder %v4340, 4
    %v4363 = vsel %vm4359, %v4343, %v4346
    %v4364 = vsel %vm4362, %v4352, 2102212464
    %v4365 = vsel %vm4361, %v4349, %v4364
    %v4366 = vsel %vm4360, %v4363, %v4365
    %v4367 = vsel %vm4359, %v4346, %v4349
    %v4368 = vsel %vm4362, %v4355, 920167782
    %v4369 = vsel %vm4361, %v4352, %v4368
    %v4370 = vsel %vm4360, %v4367, %v4369
    %v4371 = vsel %vm4359, %v4349, %v4352
    %v4372 = vsel %vm4362, %v4358, 1326507024
    %v4373 = vsel %vm4361, %v4355, %v4372
    %v4374 = vsel %vm4360, %v4371, %v4373
    %v4375 = vshll.u32 %v4335, 8
    %v4376 = vmul.u32.u64.compose %v4375, %v4374
    %v4377 = vextract.low.u32 %v4376
    %v4378 = vextract.high.u32 %v4376
    %v4379 = vmul.u32.u64.compose %v4375, %v4370
    %v4380 = vextract.low.u32 %v4379
    %v4381 = vextract.high.u32 %v4379
    %v4382 = vmul.u32 %v4375, %v4366
    %v4383 = vadd.s32 %v4378, %v4380
    %vm4384 = vc.u32 %v4378, %v4380
    %v4385 = vadd.s32 %v4381, 1
    %v4386 = vsel %vm4384, %v4385, %v4381
    %v4387 = vadd.s32 %v4382, %v4386
    %v4388 = vadd.s32 %v4387, 536870912
    %v4389 = vshrl.u32 %v4388, 30
    %v4390 = vshll.u32 %v4389, 30
    %v4391 = vsub.s32 %v4387, %v4390
    %vm4392 = vcmp.lt.s32.totalorder %v4391, 0
    %v4393 = vsub.s32 0, %v4391
    %v4394 = vsel %vm4392, %v4393, %v4391
    %v4395 = vclz %v4394
    %v4396 = vsub.s32 %v4395, 2
    %vm4397 = vcmp.gt.s32.totalorder 0, %v4396
    %v4398 = vsel %vm4397, 0, %v4396
    %v4399 = vsub.s32 32, %v4398
    %v4400 = vshll.u32 %v4391, %v4398
    %v4401 = vshrl.u32 %v4383, %v4399
    %v4402 = vor.u32 %v4400, %v4401
    %v4403 = vsub.s32 4294967266, %v4398
    %v4404 = vadd.s32 %v4403, 127
    %v4405 = vshll.u32 %v4404, 23
    %v4406 = vor.u32 4788187, %v4405
    %v4407 = vand.u32 2147483647, %v4406
    %v4409 = vcvt.s32.f32 %v4402
    %v4410 = vmul.f32 %v4409, %v4407
    %v4411 = vxor.u32 %v4410, 2147483648
    %v4412 = vsel %vm4329, %v4411, %v4410
    %v4413 = vsub.s32 4, %v4389
    %v4414 = vsel %vm4329, %v4413, %v4389
    %v4415 = vsel %vm4328, %v1884, %v4412
    %v4416 = vsel %vm4328, 0, %v4414
    %v4417 = vcosq.f32.pop %v4415
    %v4418 = vsinq.f32.pop %v4415
    %vm4419 = vweird.f32 %v1884
    %v4420 = vadd.s32 %v4416, 3
    %v4421 = vand.u32 %v4420, 3
    %vm4422 = vcmp.lt.s32.totalorder %v4421, 2
    %vm4423 = vcmp.eq.s32.totalorder %v4421, 0
    %v4424 = vxor.u32 %v4418, 2147483648
    %v4425 = vsel %vm4423, %v4417, %v4424
    %vm4426 = vcmp.eq.s32.totalorder %v4421, 2
    %v4427 = vxor.u32 %v4417, 2147483648
    %v4428 = vsel %vm4426, %v4427, %v4418
    %v4429 = vsel %vm4422, %v4425, %v4428
    %v4430 = vsel %vm4419, nan, %v4429
    %v4431 = vand.u32 2147483647, %v1890
    %vm4432 = vcmp.le.f32.partialorder %v4431, 0.7853982
    %vm4433 = vcmp.lt.s32.totalorder %v1890, 0
    %v4434 = vand.u32 %v1890, 2139095040
    %v4435 = vshrl.u32 %v4434, 23
    %v4436 = vsub.s32 %v4435, 127
    %v4437 = vand.u32 2147483647, %v1890
    %v4438 = vand.u32 %v4437, 8388607
    %v4439 = vor.u32 %v4438, 8388608
    %v4440 = vsub.s32 0, %v4439
    %v4441 = vadd.s32 %v4436, 1
    %vm4442 = vcmp.gt.s32.totalorder %v4441, 0
    %v4443 = vsel %vm4442, %v4441, 0
    %v4444 = vshrl.u32 %v4443, 5
    %v4445 = vand.u32 %v4443, 31
    %v4446 = vsub.s32 32, %v4445
    %v4447 = vshrl.u32 683565275, %v4446
    %v4448 = vshll.u32 683565275, %v4445
    %v4449 = vshrl.u32 2475754826, %v4446
    %v4450 = vor.u32 %v4448, %v4449
    %v4451 = vshll.u32 2475754826, %v4445
    %v4452 = vshrl.u32 2131351028, %v4446
    %v4453 = vor.u32 %v4451, %v4452
    %v4454 = vshll.u32 2131351028, %v4445
    %v4455 = vshrl.u32 2102212464, %v4446
    %v4456 = vor.u32 %v4454, %v4455
    %v4457 = vshll.u32 2102212464, %v4445
    %v4458 = vshrl.u32 920167782, %v4446
    %v4459 = vor.u32 %v4457, %v4458
    %v4460 = vshll.u32 920167782, %v4445
    %v4461 = vshrl.u32 1326507024, %v4446
    %v4462 = vor.u32 %v4460, %v4461
    %vm4463 = vcmp.lt.s32.totalorder %v4444, 1
    %vm4464 = vcmp.lt.s32.totalorder %v4444, 2
    %vm4465 = vcmp.lt.s32.totalorder %v4444, 3
    %vm4466 = vcmp.lt.s32.totalorder %v4444, 4
    %v4467 = vsel %vm4463, %v4447, %v4450
    %v4468 = vsel %vm4466, %v4456, 2102212464
    %v4469 = vsel %vm4465, %v4453, %v4468
    %v4470 = vsel %vm4464, %v4467, %v4469
    %v4471 = vsel %vm4463, %v4450, %v4453
    %v4472 = vsel %vm4466, %v4459, 920167782
    %v4473 = vsel %vm4465, %v4456, %v4472
    %v4474 = vsel %vm4464, %v4471, %v4473
    %v4475 = vsel %vm4463, %v4453, %v4456
    %v4476 = vsel %vm4466, %v4462, 1326507024
    %v4477 = vsel %vm4465, %v4459, %v4476
    %v4478 = vsel %vm4464, %v4475, %v4477
    %v4479 = vshll.u32 %v4439, 8
    %v4480 = vmul.u32.u64.compose %v4479, %v4478
    %v4481 = vextract.low.u32 %v4480
    %v4482 = vextract.high.u32 %v4480
    %v4483 = vmul.u32.u64.compose %v4479, %v4474
    %v4484 = vextract.low.u32 %v4483
    %v4485 = vextract.high.u32 %v4483
    %v4486 = vmul.u32 %v4479, %v4470
    %v4487 = vadd.s32 %v4482, %v4484
    %vm4488 = vc.u32 %v4482, %v4484
    %v4489 = vadd.s32 %v4485, 1
    %v4490 = vsel %vm4488, %v4489, %v4485
    %v4491 = vadd.s32 %v4486, %v4490
    %v4492 = vadd.s32 %v4491, 536870912
    %v4493 = vshrl.u32 %v4492, 30
    %v4494 = vshll.u32 %v4493, 30
    %v4495 = vsub.s32 %v4491, %v4494
    %vm4496 = vcmp.lt.s32.totalorder %v4495, 0
    %v4497 = vsub.s32 0, %v4495
    %v4498 = vsel %vm4496, %v4497, %v4495
    %v4499 = vclz %v4498
    %v4500 = vsub.s32 %v4499, 2
    %vm4501 = vcmp.gt.s32.totalorder 0, %v4500
    %v4502 = vsel %vm4501, 0, %v4500
    %v4503 = vsub.s32 32, %v4502
    %v4504 = vshll.u32 %v4495, %v4502
    %v4505 = vshrl.u32 %v4487, %v4503
    %v4506 = vor.u32 %v4504, %v4505
    %v4507 = vsub.s32 4294967266, %v4502
    %v4508 = vadd.s32 %v4507, 127
    %v4509 = vshll.u32 %v4508, 23
    %v4510 = vor.u32 4788187, %v4509
    %v4511 = vand.u32 2147483647, %v4510
    %v4513 = vcvt.s32.f32 %v4506
    %v4514 = vmul.f32 %v4513, %v4511
    %v4515 = vxor.u32 %v4514, 2147483648
    %v4516 = vsel %vm4433, %v4515, %v4514
    %v4517 = vsub.s32 4, %v4493
    %v4518 = vsel %vm4433, %v4517, %v4493
    %v4519 = vsel %vm4432, %v1890, %v4516
    %v4520 = vsel %vm4432, 0, %v4518
    %v4521 = vcosq.f32.pop %v4519
    %v4522 = vsinq.f32.pop %v4519
    %vm4523 = vweird.f32 %v1890
    %v4524 = vadd.s32 %v4520, 3
    %v4525 = vand.u32 %v4524, 3
    %vm4526 = vcmp.lt.s32.totalorder %v4525, 2
    %vm4527 = vcmp.eq.s32.totalorder %v4525, 0
    %v4528 = vxor.u32 %v4522, 2147483648
    %v4529 = vsel %vm4527, %v4521, %v4528
    %vm4530 = vcmp.eq.s32.totalorder %v4525, 2
    %v4531 = vxor.u32 %v4521, 2147483648
    %v4532 = vsel %vm4530, %v4531, %v4522
    %v4533 = vsel %vm4526, %v4529, %v4532
    %v4534 = vsel %vm4523, nan, %v4533
    %v4535 = vand.u32 2147483647, %v1896
    %vm4536 = vcmp.le.f32.partialorder %v4535, 0.7853982
    %vm4537 = vcmp.lt.s32.totalorder %v1896, 0
    %v4538 = vand.u32 %v1896, 2139095040
    %v4539 = vshrl.u32 %v4538, 23
    %v4540 = vsub.s32 %v4539, 127
    %v4541 = vand.u32 2147483647, %v1896
    %v4542 = vand.u32 %v4541, 8388607
    %v4543 = vor.u32 %v4542, 8388608
    %v4544 = vsub.s32 0, %v4543
    %v4545 = vadd.s32 %v4540, 1
    %vm4546 = vcmp.gt.s32.totalorder %v4545, 0
    %v4547 = vsel %vm4546, %v4545, 0
    %v4548 = vshrl.u32 %v4547, 5
    %v4549 = vand.u32 %v4547, 31
    %v4550 = vsub.s32 32, %v4549
    %v4551 = vshrl.u32 683565275, %v4550
    %v4552 = vshll.u32 683565275, %v4549
    %v4553 = vshrl.u32 2475754826, %v4550
    %v4554 = vor.u32 %v4552, %v4553
    %v4555 = vshll.u32 2475754826, %v4549
    %v4556 = vshrl.u32 2131351028, %v4550
    %v4557 = vor.u32 %v4555, %v4556
    %v4558 = vshll.u32 2131351028, %v4549
    %v4559 = vshrl.u32 2102212464, %v4550
    %v4560 = vor.u32 %v4558, %v4559
    %v4561 = vshll.u32 2102212464, %v4549
    %v4562 = vshrl.u32 920167782, %v4550
    %v4563 = vor.u32 %v4561, %v4562
    %v4564 = vshll.u32 920167782, %v4549
    %v4565 = vshrl.u32 1326507024, %v4550
    %v4566 = vor.u32 %v4564, %v4565
    %vm4567 = vcmp.lt.s32.totalorder %v4548, 1
    %vm4568 = vcmp.lt.s32.totalorder %v4548, 2
    %vm4569 = vcmp.lt.s32.totalorder %v4548, 3
    %vm4570 = vcmp.lt.s32.totalorder %v4548, 4
    %v4571 = vsel %vm4567, %v4551, %v4554
    %v4572 = vsel %vm4570, %v4560, 2102212464
    %v4573 = vsel %vm4569, %v4557, %v4572
    %v4574 = vsel %vm4568, %v4571, %v4573
    %v4575 = vsel %vm4567, %v4554, %v4557
    %v4576 = vsel %vm4570, %v4563, 920167782
    %v4577 = vsel %vm4569, %v4560, %v4576
    %v4578 = vsel %vm4568, %v4575, %v4577
    %v4579 = vsel %vm4567, %v4557, %v4560
    %v4580 = vsel %vm4570, %v4566, 1326507024
    %v4581 = vsel %vm4569, %v4563, %v4580
    %v4582 = vsel %vm4568, %v4579, %v4581
    %v4583 = vshll.u32 %v4543, 8
    %v4584 = vmul.u32.u64.compose %v4583, %v4582
    %v4585 = vextract.low.u32 %v4584
    %v4586 = vextract.high.u32 %v4584
    %v4587 = vmul.u32.u64.compose %v4583, %v4578
    %v4588 = vextract.low.u32 %v4587
    %v4589 = vextract.high.u32 %v4587
    %v4590 = vmul.u32 %v4583, %v4574
    %v4591 = vadd.s32 %v4586, %v4588
    %vm4592 = vc.u32 %v4586, %v4588
    %v4593 = vadd.s32 %v4589, 1
    %v4594 = vsel %vm4592, %v4593, %v4589
    %v4595 = vadd.s32 %v4590, %v4594
    %v4596 = vadd.s32 %v4595, 536870912
    %v4597 = vshrl.u32 %v4596, 30
    %v4598 = vshll.u32 %v4597, 30
    %v4599 = vsub.s32 %v4595, %v4598
    %vm4600 = vcmp.lt.s32.totalorder %v4599, 0
    %v4601 = vsub.s32 0, %v4599
    %v4602 = vsel %vm4600, %v4601, %v4599
    %v4603 = vclz %v4602
    %v4604 = vsub.s32 %v4603, 2
    %vm4605 = vcmp.gt.s32.totalorder 0, %v4604
    %v4606 = vsel %vm4605, 0, %v4604
    %v4607 = vsub.s32 32, %v4606
    %v4608 = vshll.u32 %v4599, %v4606
    %v4609 = vshrl.u32 %v4591, %v4607
    %v4610 = vor.u32 %v4608, %v4609
    %v4611 = vsub.s32 4294967266, %v4606
    %v4612 = vadd.s32 %v4611, 127
    %v4613 = vshll.u32 %v4612, 23
    %v4614 = vor.u32 4788187, %v4613
    %v4615 = vand.u32 2147483647, %v4614
    %v4617 = vcvt.s32.f32 %v4610
    %v4618 = vmul.f32 %v4617, %v4615
    %v4619 = vxor.u32 %v4618, 2147483648
    %v4620 = vsel %vm4537, %v4619, %v4618
    %v4621 = vsub.s32 4, %v4597
    %v4622 = vsel %vm4537, %v4621, %v4597
    %v4623 = vsel %vm4536, %v1896, %v4620
    %v4624 = vsel %vm4536, 0, %v4622
    %v4625 = vcosq.f32.pop %v4623
    %v4626 = vsinq.f32.pop %v4623
    %vm4627 = vweird.f32 %v1896
    %v4628 = vadd.s32 %v4624, 3
    %v4629 = vand.u32 %v4628, 3
    %vm4630 = vcmp.lt.s32.totalorder %v4629, 2
    %vm4631 = vcmp.eq.s32.totalorder %v4629, 0
    %v4632 = vxor.u32 %v4626, 2147483648
    %v4633 = vsel %vm4631, %v4625, %v4632
    %vm4634 = vcmp.eq.s32.totalorder %v4629, 2
    %v4635 = vxor.u32 %v4625, 2147483648
    %v4636 = vsel %vm4634, %v4635, %v4626
    %v4637 = vsel %vm4630, %v4633, %v4636
    %v4638 = vsel %vm4627, nan, %v4637
    %v4639 = vand.u32 2147483647, %v1902
    %vm4640 = vcmp.le.f32.partialorder %v4639, 0.7853982
    %vm4641 = vcmp.lt.s32.totalorder %v1902, 0
    %v4642 = vand.u32 %v1902, 2139095040
    %v4643 = vshrl.u32 %v4642, 23
    %v4644 = vsub.s32 %v4643, 127
    %v4645 = vand.u32 2147483647, %v1902
    %v4646 = vand.u32 %v4645, 8388607
    %v4647 = vor.u32 %v4646, 8388608
    %v4648 = vsub.s32 0, %v4647
    %v4649 = vadd.s32 %v4644, 1
    %vm4650 = vcmp.gt.s32.totalorder %v4649, 0
    %v4651 = vsel %vm4650, %v4649, 0
    %v4652 = vshrl.u32 %v4651, 5
    %v4653 = vand.u32 %v4651, 31
    %v4654 = vsub.s32 32, %v4653
    %v4655 = vshrl.u32 683565275, %v4654
    %v4656 = vshll.u32 683565275, %v4653
    %v4657 = vshrl.u32 2475754826, %v4654
    %v4658 = vor.u32 %v4656, %v4657
    %v4659 = vshll.u32 2475754826, %v4653
    %v4660 = vshrl.u32 2131351028, %v4654
    %v4661 = vor.u32 %v4659, %v4660
    %v4662 = vshll.u32 2131351028, %v4653
    %v4663 = vshrl.u32 2102212464, %v4654
    %v4664 = vor.u32 %v4662, %v4663
    %v4665 = vshll.u32 2102212464, %v4653
    %v4666 = vshrl.u32 920167782, %v4654
    %v4667 = vor.u32 %v4665, %v4666
    %v4668 = vshll.u32 920167782, %v4653
    %v4669 = vshrl.u32 1326507024, %v4654
    %v4670 = vor.u32 %v4668, %v4669
    %vm4671 = vcmp.lt.s32.totalorder %v4652, 1
    %vm4672 = vcmp.lt.s32.totalorder %v4652, 2
    %vm4673 = vcmp.lt.s32.totalorder %v4652, 3
    %vm4674 = vcmp.lt.s32.totalorder %v4652, 4
    %v4675 = vsel %vm4671, %v4655, %v4658
    %v4676 = vsel %vm4674, %v4664, 2102212464
    %v4677 = vsel %vm4673, %v4661, %v4676
    %v4678 = vsel %vm4672, %v4675, %v4677
    %v4679 = vsel %vm4671, %v4658, %v4661
    %v4680 = vsel %vm4674, %v4667, 920167782
    %v4681 = vsel %vm4673, %v4664, %v4680
    %v4682 = vsel %vm4672, %v4679, %v4681
    %v4683 = vsel %vm4671, %v4661, %v4664
    %v4684 = vsel %vm4674, %v4670, 1326507024
    %v4685 = vsel %vm4673, %v4667, %v4684
    %v4686 = vsel %vm4672, %v4683, %v4685
    %v4687 = vshll.u32 %v4647, 8
    %v4688 = vmul.u32.u64.compose %v4687, %v4686
    %v4689 = vextract.low.u32 %v4688
    %v4690 = vextract.high.u32 %v4688
    %v4691 = vmul.u32.u64.compose %v4687, %v4682
    %v4692 = vextract.low.u32 %v4691
    %v4693 = vextract.high.u32 %v4691
    %v4694 = vmul.u32 %v4687, %v4678
    %v4695 = vadd.s32 %v4690, %v4692
    %vm4696 = vc.u32 %v4690, %v4692
    %v4697 = vadd.s32 %v4693, 1
    %v4698 = vsel %vm4696, %v4697, %v4693
    %v4699 = vadd.s32 %v4694, %v4698
    %v4700 = vadd.s32 %v4699, 536870912
    %v4701 = vshrl.u32 %v4700, 30
    %v4702 = vshll.u32 %v4701, 30
    %v4703 = vsub.s32 %v4699, %v4702
    %vm4704 = vcmp.lt.s32.totalorder %v4703, 0
    %v4705 = vsub.s32 0, %v4703
    %v4706 = vsel %vm4704, %v4705, %v4703
    %v4707 = vclz %v4706
    %v4708 = vsub.s32 %v4707, 2
    %vm4709 = vcmp.gt.s32.totalorder 0, %v4708
    %v4710 = vsel %vm4709, 0, %v4708
    %v4711 = vsub.s32 32, %v4710
    %v4712 = vshll.u32 %v4703, %v4710
    %v4713 = vshrl.u32 %v4695, %v4711
    %v4714 = vor.u32 %v4712, %v4713
    %v4715 = vsub.s32 4294967266, %v4710
    %v4716 = vadd.s32 %v4715, 127
    %v4717 = vshll.u32 %v4716, 23
    %v4718 = vor.u32 4788187, %v4717
    %v4719 = vand.u32 2147483647, %v4718
    %v4721 = vcvt.s32.f32 %v4714
    %v4722 = vmul.f32 %v4721, %v4719
    %v4723 = vxor.u32 %v4722, 2147483648
    %v4724 = vsel %vm4641, %v4723, %v4722
    %v4725 = vsub.s32 4, %v4701
    %v4726 = vsel %vm4641, %v4725, %v4701
    %v4727 = vsel %vm4640, %v1902, %v4724
    %v4728 = vsel %vm4640, 0, %v4726
    %v4729 = vcosq.f32.pop %v4727
    %v4730 = vsinq.f32.pop %v4727
    %vm4731 = vweird.f32 %v1902
    %v4732 = vadd.s32 %v4728, 3
    %v4733 = vand.u32 %v4732, 3
    %vm4734 = vcmp.lt.s32.totalorder %v4733, 2
    %vm4735 = vcmp.eq.s32.totalorder %v4733, 0
    %v4736 = vxor.u32 %v4730, 2147483648
    %v4737 = vsel %vm4735, %v4729, %v4736
    %vm4738 = vcmp.eq.s32.totalorder %v4733, 2
    %v4739 = vxor.u32 %v4729, 2147483648
    %v4740 = vsel %vm4738, %v4739, %v4730
    %v4741 = vsel %vm4734, %v4737, %v4740
    %v4742 = vsel %vm4731, nan, %v4741
    %v4743 = vand.u32 2147483647, %v1908
    %vm4744 = vcmp.le.f32.partialorder %v4743, 0.7853982
    %vm4745 = vcmp.lt.s32.totalorder %v1908, 0
    %v4746 = vand.u32 %v1908, 2139095040
    %v4747 = vshrl.u32 %v4746, 23
    %v4748 = vsub.s32 %v4747, 127
    %v4749 = vand.u32 2147483647, %v1908
    %v4750 = vand.u32 %v4749, 8388607
    %v4751 = vor.u32 %v4750, 8388608
    %v4752 = vsub.s32 0, %v4751
    %v4753 = vadd.s32 %v4748, 1
    %vm4754 = vcmp.gt.s32.totalorder %v4753, 0
    %v4755 = vsel %vm4754, %v4753, 0
    %v4756 = vshrl.u32 %v4755, 5
    %v4757 = vand.u32 %v4755, 31
    %v4758 = vsub.s32 32, %v4757
    %v4759 = vshrl.u32 683565275, %v4758
    %v4760 = vshll.u32 683565275, %v4757
    %v4761 = vshrl.u32 2475754826, %v4758
    %v4762 = vor.u32 %v4760, %v4761
    %v4763 = vshll.u32 2475754826, %v4757
    %v4764 = vshrl.u32 2131351028, %v4758
    %v4765 = vor.u32 %v4763, %v4764
    %v4766 = vshll.u32 2131351028, %v4757
    %v4767 = vshrl.u32 2102212464, %v4758
    %v4768 = vor.u32 %v4766, %v4767
    %v4769 = vshll.u32 2102212464, %v4757
    %v4770 = vshrl.u32 920167782, %v4758
    %v4771 = vor.u32 %v4769, %v4770
    %v4772 = vshll.u32 920167782, %v4757
    %v4773 = vshrl.u32 1326507024, %v4758
    %v4774 = vor.u32 %v4772, %v4773
    %vm4775 = vcmp.lt.s32.totalorder %v4756, 1
    %vm4776 = vcmp.lt.s32.totalorder %v4756, 2
    %vm4777 = vcmp.lt.s32.totalorder %v4756, 3
    %vm4778 = vcmp.lt.s32.totalorder %v4756, 4
    %v4779 = vsel %vm4775, %v4759, %v4762
    %v4780 = vsel %vm4778, %v4768, 2102212464
    %v4781 = vsel %vm4777, %v4765, %v4780
    %v4782 = vsel %vm4776, %v4779, %v4781
    %v4783 = vsel %vm4775, %v4762, %v4765
    %v4784 = vsel %vm4778, %v4771, 920167782
    %v4785 = vsel %vm4777, %v4768, %v4784
    %v4786 = vsel %vm4776, %v4783, %v4785
    %v4787 = vsel %vm4775, %v4765, %v4768
    %v4788 = vsel %vm4778, %v4774, 1326507024
    %v4789 = vsel %vm4777, %v4771, %v4788
    %v4790 = vsel %vm4776, %v4787, %v4789
    %v4791 = vshll.u32 %v4751, 8
    %v4792 = vmul.u32.u64.compose %v4791, %v4790
    %v4793 = vextract.low.u32 %v4792
    %v4794 = vextract.high.u32 %v4792
    %v4795 = vmul.u32.u64.compose %v4791, %v4786
    %v4796 = vextract.low.u32 %v4795
    %v4797 = vextract.high.u32 %v4795
    %v4798 = vmul.u32 %v4791, %v4782
    %v4799 = vadd.s32 %v4794, %v4796
    %vm4800 = vc.u32 %v4794, %v4796
    %v4801 = vadd.s32 %v4797, 1
    %v4802 = vsel %vm4800, %v4801, %v4797
    %v4803 = vadd.s32 %v4798, %v4802
    %v4804 = vadd.s32 %v4803, 536870912
    %v4805 = vshrl.u32 %v4804, 30
    %v4806 = vshll.u32 %v4805, 30
    %v4807 = vsub.s32 %v4803, %v4806
    %vm4808 = vcmp.lt.s32.totalorder %v4807, 0
    %v4809 = vsub.s32 0, %v4807
    %v4810 = vsel %vm4808, %v4809, %v4807
    %v4811 = vclz %v4810
    %v4812 = vsub.s32 %v4811, 2
    %vm4813 = vcmp.gt.s32.totalorder 0, %v4812
    %v4814 = vsel %vm4813, 0, %v4812
    %v4815 = vsub.s32 32, %v4814
    %v4816 = vshll.u32 %v4807, %v4814
    %v4817 = vshrl.u32 %v4799, %v4815
    %v4818 = vor.u32 %v4816, %v4817
    %v4819 = vsub.s32 4294967266, %v4814
    %v4820 = vadd.s32 %v4819, 127
    %v4821 = vshll.u32 %v4820, 23
    %v4822 = vor.u32 4788187, %v4821
    %v4823 = vand.u32 2147483647, %v4822
    %v4825 = vcvt.s32.f32 %v4818
    %v4826 = vmul.f32 %v4825, %v4823
    %v4827 = vxor.u32 %v4826, 2147483648
    %v4828 = vsel %vm4745, %v4827, %v4826
    %v4829 = vsub.s32 4, %v4805
    %v4830 = vsel %vm4745, %v4829, %v4805
    %v4831 = vsel %vm4744, %v1908, %v4828
    %v4832 = vsel %vm4744, 0, %v4830
    %v4833 = vcosq.f32.pop %v4831
    %v4834 = vsinq.f32.pop %v4831
    %vm4835 = vweird.f32 %v1908
    %v4836 = vadd.s32 %v4832, 3
    %v4837 = vand.u32 %v4836, 3
    %vm4838 = vcmp.lt.s32.totalorder %v4837, 2
    %vm4839 = vcmp.eq.s32.totalorder %v4837, 0
    %v4840 = vxor.u32 %v4834, 2147483648
    %v4841 = vsel %vm4839, %v4833, %v4840
    %vm4842 = vcmp.eq.s32.totalorder %v4837, 2
    %v4843 = vxor.u32 %v4833, 2147483648
    %v4844 = vsel %vm4842, %v4843, %v4834
    %v4845 = vsel %vm4838, %v4841, %v4844
    %v4846 = vsel %vm4835, nan, %v4845
    %v4847 = vand.u32 2147483647, %v1914
    %vm4848 = vcmp.le.f32.partialorder %v4847, 0.7853982
    %vm4849 = vcmp.lt.s32.totalorder %v1914, 0
    %v4850 = vand.u32 %v1914, 2139095040
    %v4851 = vshrl.u32 %v4850, 23
    %v4852 = vsub.s32 %v4851, 127
    %v4853 = vand.u32 2147483647, %v1914
    %v4854 = vand.u32 %v4853, 8388607
    %v4855 = vor.u32 %v4854, 8388608
    %v4856 = vsub.s32 0, %v4855
    %v4857 = vadd.s32 %v4852, 1
    %vm4858 = vcmp.gt.s32.totalorder %v4857, 0
    %v4859 = vsel %vm4858, %v4857, 0
    %v4860 = vshrl.u32 %v4859, 5
    %v4861 = vand.u32 %v4859, 31
    %v4862 = vsub.s32 32, %v4861
    %v4863 = vshrl.u32 683565275, %v4862
    %v4864 = vshll.u32 683565275, %v4861
    %v4865 = vshrl.u32 2475754826, %v4862
    %v4866 = vor.u32 %v4864, %v4865
    %v4867 = vshll.u32 2475754826, %v4861
    %v4868 = vshrl.u32 2131351028, %v4862
    %v4869 = vor.u32 %v4867, %v4868
    %v4870 = vshll.u32 2131351028, %v4861
    %v4871 = vshrl.u32 2102212464, %v4862
    %v4872 = vor.u32 %v4870, %v4871
    %v4873 = vshll.u32 2102212464, %v4861
    %v4874 = vshrl.u32 920167782, %v4862
    %v4875 = vor.u32 %v4873, %v4874
    %v4876 = vshll.u32 920167782, %v4861
    %v4877 = vshrl.u32 1326507024, %v4862
    %v4878 = vor.u32 %v4876, %v4877
    %vm4879 = vcmp.lt.s32.totalorder %v4860, 1
    %vm4880 = vcmp.lt.s32.totalorder %v4860, 2
    %vm4881 = vcmp.lt.s32.totalorder %v4860, 3
    %vm4882 = vcmp.lt.s32.totalorder %v4860, 4
    %v4883 = vsel %vm4879, %v4863, %v4866
    %v4884 = vsel %vm4882, %v4872, 2102212464
    %v4885 = vsel %vm4881, %v4869, %v4884
    %v4886 = vsel %vm4880, %v4883, %v4885
    %v4887 = vsel %vm4879, %v4866, %v4869
    %v4888 = vsel %vm4882, %v4875, 920167782
    %v4889 = vsel %vm4881, %v4872, %v4888
    %v4890 = vsel %vm4880, %v4887, %v4889
    %v4891 = vsel %vm4879, %v4869, %v4872
    %v4892 = vsel %vm4882, %v4878, 1326507024
    %v4893 = vsel %vm4881, %v4875, %v4892
    %v4894 = vsel %vm4880, %v4891, %v4893
    %v4895 = vshll.u32 %v4855, 8
    %v4896 = vmul.u32.u64.compose %v4895, %v4894
    %v4897 = vextract.low.u32 %v4896
    %v4898 = vextract.high.u32 %v4896
    %v4899 = vmul.u32.u64.compose %v4895, %v4890
    %v4900 = vextract.low.u32 %v4899
    %v4901 = vextract.high.u32 %v4899
    %v4902 = vmul.u32 %v4895, %v4886
    %v4903 = vadd.s32 %v4898, %v4900
    %vm4904 = vc.u32 %v4898, %v4900
    %v4905 = vadd.s32 %v4901, 1
    %v4906 = vsel %vm4904, %v4905, %v4901
    %v4907 = vadd.s32 %v4902, %v4906
    %v4908 = vadd.s32 %v4907, 536870912
    %v4909 = vshrl.u32 %v4908, 30
    %v4910 = vshll.u32 %v4909, 30
    %v4911 = vsub.s32 %v4907, %v4910
    %vm4912 = vcmp.lt.s32.totalorder %v4911, 0
    %v4913 = vsub.s32 0, %v4911
    %v4914 = vsel %vm4912, %v4913, %v4911
    %v4915 = vclz %v4914
    %v4916 = vsub.s32 %v4915, 2
    %vm4917 = vcmp.gt.s32.totalorder 0, %v4916
    %v4918 = vsel %vm4917, 0, %v4916
    %v4919 = vsub.s32 32, %v4918
    %v4920 = vshll.u32 %v4911, %v4918
    %v4921 = vshrl.u32 %v4903, %v4919
    %v4922 = vor.u32 %v4920, %v4921
    %v4923 = vsub.s32 4294967266, %v4918
    %v4924 = vadd.s32 %v4923, 127
    %v4925 = vshll.u32 %v4924, 23
    %v4926 = vor.u32 4788187, %v4925
    %v4927 = vand.u32 2147483647, %v4926
    %v4929 = vcvt.s32.f32 %v4922
    %v4930 = vmul.f32 %v4929, %v4927
    %v4931 = vxor.u32 %v4930, 2147483648
    %v4932 = vsel %vm4849, %v4931, %v4930
    %v4933 = vsub.s32 4, %v4909
    %v4934 = vsel %vm4849, %v4933, %v4909
    %v4935 = vsel %vm4848, %v1914, %v4932
    %v4936 = vsel %vm4848, 0, %v4934
    %v4937 = vcosq.f32.pop %v4935
    %v4938 = vsinq.f32.pop %v4935
    %vm4939 = vweird.f32 %v1914
    %v4940 = vadd.s32 %v4936, 3
    %v4941 = vand.u32 %v4940, 3
    %vm4942 = vcmp.lt.s32.totalorder %v4941, 2
    %vm4943 = vcmp.eq.s32.totalorder %v4941, 0
    %v4944 = vxor.u32 %v4938, 2147483648
    %v4945 = vsel %vm4943, %v4937, %v4944
    %vm4946 = vcmp.eq.s32.totalorder %v4941, 2
    %v4947 = vxor.u32 %v4937, 2147483648
    %v4948 = vsel %vm4946, %v4947, %v4938
    %v4949 = vsel %vm4942, %v4945, %v4948
    %v4950 = vsel %vm4939, nan, %v4949
    %v4951 = vand.u32 2147483647, %v1920
    %vm4952 = vcmp.le.f32.partialorder %v4951, 0.7853982
    %vm4953 = vcmp.lt.s32.totalorder %v1920, 0
    %v4954 = vand.u32 %v1920, 2139095040
    %v4955 = vshrl.u32 %v4954, 23
    %v4956 = vsub.s32 %v4955, 127
    %v4957 = vand.u32 2147483647, %v1920
    %v4958 = vand.u32 %v4957, 8388607
    %v4959 = vor.u32 %v4958, 8388608
    %v4960 = vsub.s32 0, %v4959
    %v4961 = vadd.s32 %v4956, 1
    %vm4962 = vcmp.gt.s32.totalorder %v4961, 0
    %v4963 = vsel %vm4962, %v4961, 0
    %v4964 = vshrl.u32 %v4963, 5
    %v4965 = vand.u32 %v4963, 31
    %v4966 = vsub.s32 32, %v4965
    %v4967 = vshrl.u32 683565275, %v4966
    %v4968 = vshll.u32 683565275, %v4965
    %v4969 = vshrl.u32 2475754826, %v4966
    %v4970 = vor.u32 %v4968, %v4969
    %v4971 = vshll.u32 2475754826, %v4965
    %v4972 = vshrl.u32 2131351028, %v4966
    %v4973 = vor.u32 %v4971, %v4972
    %v4974 = vshll.u32 2131351028, %v4965
    %v4975 = vshrl.u32 2102212464, %v4966
    %v4976 = vor.u32 %v4974, %v4975
    %v4977 = vshll.u32 2102212464, %v4965
    %v4978 = vshrl.u32 920167782, %v4966
    %v4979 = vor.u32 %v4977, %v4978
    %v4980 = vshll.u32 920167782, %v4965
    %v4981 = vshrl.u32 1326507024, %v4966
    %v4982 = vor.u32 %v4980, %v4981
    %vm4983 = vcmp.lt.s32.totalorder %v4964, 1
    %vm4984 = vcmp.lt.s32.totalorder %v4964, 2
    %vm4985 = vcmp.lt.s32.totalorder %v4964, 3
    %vm4986 = vcmp.lt.s32.totalorder %v4964, 4
    %v4987 = vsel %vm4983, %v4967, %v4970
    %v4988 = vsel %vm4986, %v4976, 2102212464
    %v4989 = vsel %vm4985, %v4973, %v4988
    %v4990 = vsel %vm4984, %v4987, %v4989
    %v4991 = vsel %vm4983, %v4970, %v4973
    %v4992 = vsel %vm4986, %v4979, 920167782
    %v4993 = vsel %vm4985, %v4976, %v4992
    %v4994 = vsel %vm4984, %v4991, %v4993
    %v4995 = vsel %vm4983, %v4973, %v4976
    %v4996 = vsel %vm4986, %v4982, 1326507024
    %v4997 = vsel %vm4985, %v4979, %v4996
    %v4998 = vsel %vm4984, %v4995, %v4997
    %v4999 = vshll.u32 %v4959, 8
    %v5000 = vmul.u32.u64.compose %v4999, %v4998
    %v5001 = vextract.low.u32 %v5000
    %v5002 = vextract.high.u32 %v5000
    %v5003 = vmul.u32.u64.compose %v4999, %v4994
    %v5004 = vextract.low.u32 %v5003
    %v5005 = vextract.high.u32 %v5003
    %v5006 = vmul.u32 %v4999, %v4990
    %v5007 = vadd.s32 %v5002, %v5004
    %vm5008 = vc.u32 %v5002, %v5004
    %v5009 = vadd.s32 %v5005, 1
    %v5010 = vsel %vm5008, %v5009, %v5005
    %v5011 = vadd.s32 %v5006, %v5010
    %v5012 = vadd.s32 %v5011, 536870912
    %v5013 = vshrl.u32 %v5012, 30
    %v5014 = vshll.u32 %v5013, 30
    %v5015 = vsub.s32 %v5011, %v5014
    %vm5016 = vcmp.lt.s32.totalorder %v5015, 0
    %v5017 = vsub.s32 0, %v5015
    %v5018 = vsel %vm5016, %v5017, %v5015
    %v5019 = vclz %v5018
    %v5020 = vsub.s32 %v5019, 2
    %vm5021 = vcmp.gt.s32.totalorder 0, %v5020
    %v5022 = vsel %vm5021, 0, %v5020
    %v5023 = vsub.s32 32, %v5022
    %v5024 = vshll.u32 %v5015, %v5022
    %v5025 = vshrl.u32 %v5007, %v5023
    %v5026 = vor.u32 %v5024, %v5025
    %v5027 = vsub.s32 4294967266, %v5022
    %v5028 = vadd.s32 %v5027, 127
    %v5029 = vshll.u32 %v5028, 23
    %v5030 = vor.u32 4788187, %v5029
    %v5031 = vand.u32 2147483647, %v5030
    %v5033 = vcvt.s32.f32 %v5026
    %v5034 = vmul.f32 %v5033, %v5031
    %v5035 = vxor.u32 %v5034, 2147483648
    %v5036 = vsel %vm4953, %v5035, %v5034
    %v5037 = vsub.s32 4, %v5013
    %v5038 = vsel %vm4953, %v5037, %v5013
    %v5039 = vsel %vm4952, %v1920, %v5036
    %v5040 = vsel %vm4952, 0, %v5038
    %v5041 = vcosq.f32.pop %v5039
    %v5042 = vsinq.f32.pop %v5039
    %vm5043 = vweird.f32 %v1920
    %v5044 = vadd.s32 %v5040, 3
    %v5045 = vand.u32 %v5044, 3
    %vm5046 = vcmp.lt.s32.totalorder %v5045, 2
    %vm5047 = vcmp.eq.s32.totalorder %v5045, 0
    %v5048 = vxor.u32 %v5042, 2147483648
    %v5049 = vsel %vm5047, %v5041, %v5048
    %vm5050 = vcmp.eq.s32.totalorder %v5045, 2
    %v5051 = vxor.u32 %v5041, 2147483648
    %v5052 = vsel %vm5050, %v5051, %v5042
    %v5053 = vsel %vm5046, %v5049, %v5052
    %v5054 = vsel %vm5043, nan, %v5053
    %v5055 = vand.u32 2147483647, %v1926
    %vm5056 = vcmp.le.f32.partialorder %v5055, 0.7853982
    %vm5057 = vcmp.lt.s32.totalorder %v1926, 0
    %v5058 = vand.u32 %v1926, 2139095040
    %v5059 = vshrl.u32 %v5058, 23
    %v5060 = vsub.s32 %v5059, 127
    %v5061 = vand.u32 2147483647, %v1926
    %v5062 = vand.u32 %v5061, 8388607
    %v5063 = vor.u32 %v5062, 8388608
    %v5064 = vsub.s32 0, %v5063
    %v5065 = vadd.s32 %v5060, 1
    %vm5066 = vcmp.gt.s32.totalorder %v5065, 0
    %v5067 = vsel %vm5066, %v5065, 0
    %v5068 = vshrl.u32 %v5067, 5
    %v5069 = vand.u32 %v5067, 31
    %v5070 = vsub.s32 32, %v5069
    %v5071 = vshrl.u32 683565275, %v5070
    %v5072 = vshll.u32 683565275, %v5069
    %v5073 = vshrl.u32 2475754826, %v5070
    %v5074 = vor.u32 %v5072, %v5073
    %v5075 = vshll.u32 2475754826, %v5069
    %v5076 = vshrl.u32 2131351028, %v5070
    %v5077 = vor.u32 %v5075, %v5076
    %v5078 = vshll.u32 2131351028, %v5069
    %v5079 = vshrl.u32 2102212464, %v5070
    %v5080 = vor.u32 %v5078, %v5079
    %v5081 = vshll.u32 2102212464, %v5069
    %v5082 = vshrl.u32 920167782, %v5070
    %v5083 = vor.u32 %v5081, %v5082
    %v5084 = vshll.u32 920167782, %v5069
    %v5085 = vshrl.u32 1326507024, %v5070
    %v5086 = vor.u32 %v5084, %v5085
    %vm5087 = vcmp.lt.s32.totalorder %v5068, 1
    %vm5088 = vcmp.lt.s32.totalorder %v5068, 2
    %vm5089 = vcmp.lt.s32.totalorder %v5068, 3
    %vm5090 = vcmp.lt.s32.totalorder %v5068, 4
    %v5091 = vsel %vm5087, %v5071, %v5074
    %v5092 = vsel %vm5090, %v5080, 2102212464
    %v5093 = vsel %vm5089, %v5077, %v5092
    %v5094 = vsel %vm5088, %v5091, %v5093
    %v5095 = vsel %vm5087, %v5074, %v5077
    %v5096 = vsel %vm5090, %v5083, 920167782
    %v5097 = vsel %vm5089, %v5080, %v5096
    %v5098 = vsel %vm5088, %v5095, %v5097
    %v5099 = vsel %vm5087, %v5077, %v5080
    %v5100 = vsel %vm5090, %v5086, 1326507024
    %v5101 = vsel %vm5089, %v5083, %v5100
    %v5102 = vsel %vm5088, %v5099, %v5101
    %v5103 = vshll.u32 %v5063, 8
    %v5104 = vmul.u32.u64.compose %v5103, %v5102
    %v5105 = vextract.low.u32 %v5104
    %v5106 = vextract.high.u32 %v5104
    %v5107 = vmul.u32.u64.compose %v5103, %v5098
    %v5108 = vextract.low.u32 %v5107
    %v5109 = vextract.high.u32 %v5107
    %v5110 = vmul.u32 %v5103, %v5094
    %v5111 = vadd.s32 %v5106, %v5108
    %vm5112 = vc.u32 %v5106, %v5108
    %v5113 = vadd.s32 %v5109, 1
    %v5114 = vsel %vm5112, %v5113, %v5109
    %v5115 = vadd.s32 %v5110, %v5114
    %v5116 = vadd.s32 %v5115, 536870912
    %v5117 = vshrl.u32 %v5116, 30
    %v5118 = vshll.u32 %v5117, 30
    %v5119 = vsub.s32 %v5115, %v5118
    %vm5120 = vcmp.lt.s32.totalorder %v5119, 0
    %v5121 = vsub.s32 0, %v5119
    %v5122 = vsel %vm5120, %v5121, %v5119
    %v5123 = vclz %v5122
    %v5124 = vsub.s32 %v5123, 2
    %vm5125 = vcmp.gt.s32.totalorder 0, %v5124
    %v5126 = vsel %vm5125, 0, %v5124
    %v5127 = vsub.s32 32, %v5126
    %v5128 = vshll.u32 %v5119, %v5126
    %v5129 = vshrl.u32 %v5111, %v5127
    %v5130 = vor.u32 %v5128, %v5129
    %v5131 = vsub.s32 4294967266, %v5126
    %v5132 = vadd.s32 %v5131, 127
    %v5133 = vshll.u32 %v5132, 23
    %v5134 = vor.u32 4788187, %v5133
    %v5135 = vand.u32 2147483647, %v5134
    %v5137 = vcvt.s32.f32 %v5130
    %v5138 = vmul.f32 %v5137, %v5135
    %v5139 = vxor.u32 %v5138, 2147483648
    %v5140 = vsel %vm5057, %v5139, %v5138
    %v5141 = vsub.s32 4, %v5117
    %v5142 = vsel %vm5057, %v5141, %v5117
    %v5143 = vsel %vm5056, %v1926, %v5140
    %v5144 = vsel %vm5056, 0, %v5142
    %v5145 = vcosq.f32.pop %v5143
    %v5146 = vsinq.f32.pop %v5143
    %vm5147 = vweird.f32 %v1926
    %v5148 = vadd.s32 %v5144, 3
    %v5149 = vand.u32 %v5148, 3
    %vm5150 = vcmp.lt.s32.totalorder %v5149, 2
    %vm5151 = vcmp.eq.s32.totalorder %v5149, 0
    %v5152 = vxor.u32 %v5146, 2147483648
    %v5153 = vsel %vm5151, %v5145, %v5152
    %vm5154 = vcmp.eq.s32.totalorder %v5149, 2
    %v5155 = vxor.u32 %v5145, 2147483648
    %v5156 = vsel %vm5154, %v5155, %v5146
    %v5157 = vsel %vm5150, %v5153, %v5156
    %v5158 = vsel %vm5147, nan, %v5157
    %v5159 = vand.u32 2147483647, %v1932
    %vm5160 = vcmp.le.f32.partialorder %v5159, 0.7853982
    %vm5161 = vcmp.lt.s32.totalorder %v1932, 0
    %v5162 = vand.u32 %v1932, 2139095040
    %v5163 = vshrl.u32 %v5162, 23
    %v5164 = vsub.s32 %v5163, 127
    %v5165 = vand.u32 2147483647, %v1932
    %v5166 = vand.u32 %v5165, 8388607
    %v5167 = vor.u32 %v5166, 8388608
    %v5168 = vsub.s32 0, %v5167
    %v5169 = vadd.s32 %v5164, 1
    %vm5170 = vcmp.gt.s32.totalorder %v5169, 0
    %v5171 = vsel %vm5170, %v5169, 0
    %v5172 = vshrl.u32 %v5171, 5
    %v5173 = vand.u32 %v5171, 31
    %v5174 = vsub.s32 32, %v5173
    %v5175 = vshrl.u32 683565275, %v5174
    %v5176 = vshll.u32 683565275, %v5173
    %v5177 = vshrl.u32 2475754826, %v5174
    %v5178 = vor.u32 %v5176, %v5177
    %v5179 = vshll.u32 2475754826, %v5173
    %v5180 = vshrl.u32 2131351028, %v5174
    %v5181 = vor.u32 %v5179, %v5180
    %v5182 = vshll.u32 2131351028, %v5173
    %v5183 = vshrl.u32 2102212464, %v5174
    %v5184 = vor.u32 %v5182, %v5183
    %v5185 = vshll.u32 2102212464, %v5173
    %v5186 = vshrl.u32 920167782, %v5174
    %v5187 = vor.u32 %v5185, %v5186
    %v5188 = vshll.u32 920167782, %v5173
    %v5189 = vshrl.u32 1326507024, %v5174
    %v5190 = vor.u32 %v5188, %v5189
    %vm5191 = vcmp.lt.s32.totalorder %v5172, 1
    %vm5192 = vcmp.lt.s32.totalorder %v5172, 2
    %vm5193 = vcmp.lt.s32.totalorder %v5172, 3
    %vm5194 = vcmp.lt.s32.totalorder %v5172, 4
    %v5195 = vsel %vm5191, %v5175, %v5178
    %v5196 = vsel %vm5194, %v5184, 2102212464
    %v5197 = vsel %vm5193, %v5181, %v5196
    %v5198 = vsel %vm5192, %v5195, %v5197
    %v5199 = vsel %vm5191, %v5178, %v5181
    %v5200 = vsel %vm5194, %v5187, 920167782
    %v5201 = vsel %vm5193, %v5184, %v5200
    %v5202 = vsel %vm5192, %v5199, %v5201
    %v5203 = vsel %vm5191, %v5181, %v5184
    %v5204 = vsel %vm5194, %v5190, 1326507024
    %v5205 = vsel %vm5193, %v5187, %v5204
    %v5206 = vsel %vm5192, %v5203, %v5205
    %v5207 = vshll.u32 %v5167, 8
    %v5208 = vmul.u32.u64.compose %v5207, %v5206
    %v5209 = vextract.low.u32 %v5208
    %v5210 = vextract.high.u32 %v5208
    %v5211 = vmul.u32.u64.compose %v5207, %v5202
    %v5212 = vextract.low.u32 %v5211
    %v5213 = vextract.high.u32 %v5211
    %v5214 = vmul.u32 %v5207, %v5198
    %v5215 = vadd.s32 %v5210, %v5212
    %vm5216 = vc.u32 %v5210, %v5212
    %v5217 = vadd.s32 %v5213, 1
    %v5218 = vsel %vm5216, %v5217, %v5213
    %v5219 = vadd.s32 %v5214, %v5218
    %v5220 = vadd.s32 %v5219, 536870912
    %v5221 = vshrl.u32 %v5220, 30
    %v5222 = vshll.u32 %v5221, 30
    %v5223 = vsub.s32 %v5219, %v5222
    %vm5224 = vcmp.lt.s32.totalorder %v5223, 0
    %v5225 = vsub.s32 0, %v5223
    %v5226 = vsel %vm5224, %v5225, %v5223
    %v5227 = vclz %v5226
    %v5228 = vsub.s32 %v5227, 2
    %vm5229 = vcmp.gt.s32.totalorder 0, %v5228
    %v5230 = vsel %vm5229, 0, %v5228
    %v5231 = vsub.s32 32, %v5230
    %v5232 = vshll.u32 %v5223, %v5230
    %v5233 = vshrl.u32 %v5215, %v5231
    %v5234 = vor.u32 %v5232, %v5233
    %v5235 = vsub.s32 4294967266, %v5230
    %v5236 = vadd.s32 %v5235, 127
    %v5237 = vshll.u32 %v5236, 23
    %v5238 = vor.u32 4788187, %v5237
    %v5239 = vand.u32 2147483647, %v5238
    %v5241 = vcvt.s32.f32 %v5234
    %v5242 = vmul.f32 %v5241, %v5239
    %v5243 = vxor.u32 %v5242, 2147483648
    %v5244 = vsel %vm5161, %v5243, %v5242
    %v5245 = vsub.s32 4, %v5221
    %v5246 = vsel %vm5161, %v5245, %v5221
    %v5247 = vsel %vm5160, %v1932, %v5244
    %v5248 = vsel %vm5160, 0, %v5246
    %v5249 = vcosq.f32.pop %v5247
    %v5250 = vsinq.f32.pop %v5247
    %vm5251 = vweird.f32 %v1932
    %v5252 = vadd.s32 %v5248, 3
    %v5253 = vand.u32 %v5252, 3
    %vm5254 = vcmp.lt.s32.totalorder %v5253, 2
    %vm5255 = vcmp.eq.s32.totalorder %v5253, 0
    %v5256 = vxor.u32 %v5250, 2147483648
    %v5257 = vsel %vm5255, %v5249, %v5256
    %vm5258 = vcmp.eq.s32.totalorder %v5253, 2
    %v5259 = vxor.u32 %v5249, 2147483648
    %v5260 = vsel %vm5258, %v5259, %v5250
    %v5261 = vsel %vm5254, %v5257, %v5260
    %v5262 = vsel %vm5251, nan, %v5261
    %5263 = vst [vmem:[#allocation2] sm:$0xff] %v2038
    %5264 = vst [vmem:[#allocation2 + $0x8] sm:$0xff] %v2142
    %5265 = vst [vmem:[#allocation2 + $0x10] sm:$0xff] %v2246
    %5266 = vst [vmem:[#allocation2 + $0x18] sm:$0xff] %v2350
    %5267 = vst [vmem:[#allocation2 + $0x20] sm:$0xff] %v2454
    %5268 = vst [vmem:[#allocation2 + $0x28] sm:$0xff] %v2558
    %5269 = vst [vmem:[#allocation2 + $0x30] sm:$0xff] %v2662
    %5270 = vst [vmem:[#allocation2 + $0x38] sm:$0xff] %v2766
    %5271 = vst [vmem:[#allocation2 + $0x40] sm:$0xff] %v2870
    %5272 = vst [vmem:[#allocation2 + $0x48] sm:$0xff] %v2974
    %5273 = vst [vmem:[#allocation2 + $0x50] sm:$0xff] %v3078
    %5274 = vst [vmem:[#allocation2 + $0x58] sm:$0xff] %v3182
    %5275 = vst [vmem:[#allocation2 + $0x60] sm:$0xff] %v3286
    %5276 = vst [vmem:[#allocation2 + $0x68] sm:$0xff] %v3390
    %5277 = vst [vmem:[#allocation2 + $0x70] sm:$0xff] %v3494
    %5278 = vst [vmem:[#allocation2 + $0x78] sm:$0xff] %v3598
    %5279 = vst [vmem:[#allocation2 + $0x80] sm:$0xff] %v3702
    %5280 = vst [vmem:[#allocation2 + $0x88] sm:$0xff] %v3806
    %5281 = vst [vmem:[#allocation2 + $0x90] sm:$0xff] %v3910
    %5282 = vst [vmem:[#allocation2 + $0x98] sm:$0xff] %v4014
    %5283 = vst [vmem:[#allocation2 + $0xa0] sm:$0xff] %v4118
    %5284 = vst [vmem:[#allocation2 + $0xa8] sm:$0xff] %v4222
    %5285 = vst [vmem:[#allocation2 + $0xb0] sm:$0xff] %v4326
    %5286 = vst [vmem:[#allocation2 + $0xb8] sm:$0xff] %v4430
    %5287 = vst [vmem:[#allocation2 + $0xc0] sm:$0xff] %v4534
    %5288 = vst [vmem:[#allocation2 + $0xc8] sm:$0xff] %v4638
    %5289 = vst [vmem:[#allocation2 + $0xd0] sm:$0xff] %v4742
    %5290 = vst [vmem:[#allocation2 + $0xd8] sm:$0xff] %v4846
    %5291 = vst [vmem:[#allocation2 + $0xe0] sm:$0xff] %v4950
    %5292 = vst [vmem:[#allocation2 + $0xe8] sm:$0xff] %v5054
    %5293 = vst [vmem:[#allocation2 + $0xf0] sm:$0xff] %v5158
    %5294 = vst [vmem:[#allocation2 + $0xf8] sm:$0xff] %v5262
    // Predicated region
    $region14: #{tpu_custom_call.1} parent=1 // pred_check
      _
    $region15: #{tpu_custom_call.1} parent=1 // pred_check_branch
      %5296 = sbr.rel (0) target = $region17
    $region16: #{tpu_custom_call.1} parent=1 // pred_region
      %s5298 = ssub.s32 4096, 4096
      %5299 = vsyncadd [#allocation3], %s5298
      %s5300 = sshll.u32 [#allocation2], 4
      %s5301 = int_to_ptr.vmem [resolvable:$true] %s5300
      %5306 = dma.vmem_to_hbm [thread:$0]  %s5301, 4096, %s3, [#allocation3], 128, 128, 8
    $region17: #{tpu_custom_call.1} parent=1 // pred_fallthru
      _
    // Predicated region
    $region18: #{tpu_custom_call.1} parent=1 // pred_check
      _
    $region19: #{tpu_custom_call.1} parent=1 // pred_check_branch
      %5308 = sbr.rel (0) target = $region21
    $region20: #{tpu_custom_call.1} parent=1 // pred_region
      %5309 = dma.done [#allocation3], 4096
    $region21: #{tpu_custom_call.1} parent=1 // pred_fallthru
      _
    %5310 = vsyncpa [#allocation3], 1

</llo_original>
